<compile_context>
chip_gen: v6e
topology: v6e:2x2x1
jax: 0.10.0
libtpu: 0.0.40
codegen_flags: <defaults>
</compile_context>

<pallas_src>
import functools
import math

import jax
import jax.numpy as jnp
from jax import lax
from jax.experimental import pallas as pl
from jax.experimental.pallas import tpu as pltpu

NEG_INF = -1000000000.0
LN_EPS = 1e-5


# ----------------------------- Pallas kernel ------------------------------ #

def bert_encoder_kernel(x_ref, mask_ref,
                        wq_ref, bq_ref, wk_ref, bk_ref, wv_ref, bv_ref,
                        wph_ref, bp_ref, g1_ref, be1_ref,
                        w1_ref, b1_ref, w2_ref, b2_ref, g2_ref, be2_ref,
                        o_ref,
                        act_s, q_s, k_s, v_s,
                        *, n_heads):
    l = pl.program_id(0)
    n_layers = pl.num_programs(0)
    B, S, D = o_ref.shape
    H = n_heads
    dk = D // H
    bf16 = jnp.bfloat16
    f32 = jnp.float32

    # Layer 0 consumes the embedding output; later layers consume the activation that
    # stays resident in VMEM scratch across the sequential layer grid axis.
    @pl.when(l == 0)
    def _():
        act_s[...] = x_ref[...]

    # Per-layer weights (bf16; q-scale already folded into wq/bq at prep time).
    wq, wk, wv = wq_ref[0], wk_ref[0], wv_ref[0]          # (D, D) bf16
    wph = wph_ref[0]                                      # (H, dk, D) bf16
    w1, w2 = w1_ref[0], w2_ref[0]                         # (D, F), (F, D) bf16
    bq, bk, bv, bp = bq_ref[0], bk_ref[0], bv_ref[0], bp_ref[0]   # (1, D) f32
    b1, b2 = b1_ref[0], b2_ref[0]
    g1, be1, g2, be2 = g1_ref[0], be1_ref[0], g2_ref[0], be2_ref[0]

    # Additive attention bias from (B, 1, S) key-validity mask (computed once per call).
    bias = jnp.where(mask_ref[...] == 0.0, NEG_INF, 0.0).astype(f32)   # (B, 1, S)

    for b in range(B):                       # static unroll; B is small
        x = act_s[b]                         # (S, D) f32 residual stream
        x16 = x.astype(bf16)

        # QKV projections: full (S,D)x(D,D) MXU matmuls, f32 accumulation.
        q = jnp.dot(x16, wq, preferred_element_type=f32) + bq   # 1/sqrt(dk) folded in
        k = jnp.dot(x16, wk, preferred_element_type=f32) + bk
        v = jnp.dot(x16, wv, preferred_element_type=f32) + bv

        # Relayout (S, H*dk) -> (H, S, dk) through VMEM scratch (no concatenate).
        for h in range(H):
            sl = slice(h * dk, (h + 1) * dk)
            q_s[h] = q[:, sl]
            k_s[h] = k[:, sl]
            v_s[h] = v[:, sl]
        qh = q_s[...].astype(bf16)           # (H, S, dk)
        kh = k_s[...].astype(bf16)
        vh = v_s[...].astype(bf16)

        # One head-batched matmul for scores, one for the context.
        scores = jnp.einsum("hqd,hkd->hqk", qh, kh,
                            preferred_element_type=f32)          # (H, S, S)
        scores = scores + bias[b:b + 1]                          # (1,1,S) broadcast
        scores = scores - jnp.max(scores, axis=-1, keepdims=True)
        p = jnp.exp(scores)
        attn = p * pl.reciprocal(jnp.sum(p, axis=-1, keepdims=True), approx=True)
        ctx = jnp.einsum("hqk,hkd->hqd", attn.astype(bf16), vh,
                         preferred_element_type=f32)             # (H, S, dk)

        # Output projection: head-batched (S,dk)x(dk,D) then reduce over heads.
        proj = jnp.sum(jnp.einsum("hsd,hdo->hso", ctx.astype(bf16), wph,
                                  preferred_element_type=f32), axis=0) + bp
        y = x + proj
        mu = jnp.mean(y, axis=-1, keepdims=True)
        yc = y - mu
        var = jnp.mean(yc * yc, axis=-1, keepdims=True)
        y = yc * lax.rsqrt(var + LN_EPS) * g1 + be1

        # Feed-forward: the reference module applies ReLU to BOTH linears.
        h1 = jnp.maximum(jnp.dot(y.astype(bf16), w1, preferred_element_type=f32) + b1, 0.0)
        h2 = jnp.maximum(jnp.dot(h1.astype(bf16), w2, preferred_element_type=f32) + b2, 0.0)
        z = y + h2
        mu2 = jnp.mean(z, axis=-1, keepdims=True)
        zc = z - mu2
        var2 = jnp.mean(zc * zc, axis=-1, keepdims=True)
        z = zc * lax.rsqrt(var2 + LN_EPS) * g2 + be2

        act_s[b] = z

    @pl.when(l == n_layers - 1)
    def _():
        o_ref[...] = act_s[...].astype(o_ref.dtype)


# --------------------------- parameter packing ----------------------------- #

def stack_layer_params(layers, n_heads):
    """Stack per-layer params to (L, ...), cast matmul weights to bf16, fold q scale."""
    d_model = layers[0]["wq"].shape[0]
    dk = d_model // n_heads
    scale = 1.0 / math.sqrt(dk)

    def st(name):
        return jnp.stack([lp[name] for lp in layers], axis=0)

    wp = st("wp")                                        # (L, D, D)
    L = wp.shape[0]
    wph = wp.reshape(L, n_heads, dk, d_model)            # heads split proj's input dim

    return dict(
        wq=(st("wq") * scale).astype(jnp.bfloat16), bq=st("bq") * scale,
        wk=st("wk").astype(jnp.bfloat16), bk=st("bk"),
        wv=st("wv").astype(jnp.bfloat16), bv=st("bv"),
        wph=wph.astype(jnp.bfloat16), bp=st("bp"),
        ln1g=st("ln1g"), ln1b=st("ln1b"),
        w1=st("w1").astype(jnp.bfloat16), b1=st("b1"),
        w2=st("w2").astype(jnp.bfloat16), b2=st("b2"),
        ln2g=st("ln2g"), ln2b=st("ln2b"),
    )


def bert_encoder_pallas(x_emb, keymask, sp, n_heads):
    B, S, D = x_emb.shape
    L = sp["wq"].shape[0]
    F = sp["w1"].shape[2]
    H = n_heads
    dk = D // H

    def layer_spec(*dims):
        n = len(dims)
        return pl.BlockSpec((1,) + tuple(dims), lambda l, n=n: (l,) + (0,) * n)

    def whole_spec(*dims):
        n = len(dims)
        return pl.BlockSpec(tuple(dims), lambda l, n=n: (0,) * n)

    in_specs = [
        whole_spec(B, S, D),                         # embeddings (resident, read at l==0)
        whole_spec(B, 1, S),                         # key-validity mask (resident)
        layer_spec(D, D), layer_spec(1, D),          # wq (pre-scaled), bq
        layer_spec(D, D), layer_spec(1, D),          # wk, bk
        layer_spec(D, D), layer_spec(1, D),          # wv, bv
        layer_spec(H, dk, D), layer_spec(1, D),      # wp (head-split), bp
        layer_spec(1, D), layer_spec(1, D),          # ln1 gamma, beta
        layer_spec(D, F), layer_spec(1, F),          # w1, b1
        layer_spec(F, D), layer_spec(1, D),          # w2, b2
        layer_spec(1, D), layer_spec(1, D),          # ln2 gamma, beta
    ]
    out_specs = whole_spec(B, S, D)

    operands = (x_emb, keymask,
                sp["wq"], sp["bq"], sp["wk"], sp["bk"], sp["wv"], sp["bv"],
                sp["wph"], sp["bp"], sp["ln1g"], sp["ln1b"],
                sp["w1"], sp["b1"], sp["w2"], sp["b2"], sp["ln2g"], sp["ln2b"])

    # Scoped-VMEM limit sized from the actual block footprint (weights double-buffered).
    weight_bytes = sum(int(op.nbytes) // L for op in operands[2:])
    resident_bytes = 3 * int(x_emb.nbytes) + int(keymask.nbytes)
    vmem_limit = int(min(max(2 * weight_bytes + resident_bytes + (16 << 20), 32 << 20),
                         60 << 20))

    return pl.pallas_call(
        functools.partial(bert_encoder_kernel, n_heads=n_heads),
        out_shape=jax.ShapeDtypeStruct((B, S, D), jnp.float32),
        grid_spec=pltpu.PrefetchScalarGridSpec(
            num_scalar_prefetch=0,
            grid=(L,),
            in_specs=in_specs,
            out_specs=out_specs,
            scratch_shapes=[
                pltpu.VMEM((B, S, D), jnp.float32),    # resident activations
                pltpu.VMEM((H, S, dk), jnp.float32),   # q heads
                pltpu.VMEM((H, S, dk), jnp.float32),   # k heads
                pltpu.VMEM((H, S, dk), jnp.float32),   # v heads
            ],
        ),
        compiler_params=pltpu.CompilerParams(
            dimension_semantics=("arbitrary",),
            vmem_limit_bytes=vmem_limit,
        ),
    )(*operands)


# ------------------------------- model glue -------------------------------- #

def make_positional_table(d_model, max_len):
    position = jnp.arange(max_len, dtype=jnp.float32)[:, None]
    div_term = jnp.exp(jnp.arange(0, d_model, 2, dtype=jnp.float32)
                       * -(math.log(10000.0) / d_model))
    pe = jnp.zeros((max_len, d_model), jnp.float32)
    pe = pe.at[:, 0::2].set(jnp.sin(position * div_term))
    pe = pe.at[:, 1::2].set(jnp.cos(position * div_term))
    return pe


def init_params(key, n_layers, d_model, d_ff, vocab_size, max_seq_len, pad_id):
    keys = jax.random.split(key, 3 + n_layers)
    scale = 0.02
    word_emb = scale * jax.random.normal(keys[0], (vocab_size, d_model), jnp.float32)
    word_emb = word_emb.at[pad_id].set(0.0)                 # padding_idx row = 0
    segment_emb = scale * jax.random.normal(keys[1], (2, d_model), jnp.float32)
    segment_emb = segment_emb.at[0].set(0.0)                # padding_idx=0 row = 0
    pos_table = make_positional_table(d_model, max_seq_len)

    layers = []
    for li in range(n_layers):
        lk = jax.random.split(keys[3 + li], 6)
        layers.append(dict(
            wq=scale * jax.random.normal(lk[0], (d_model, d_model), jnp.float32),
            bq=jnp.zeros((1, d_model), jnp.float32),
            wk=scale * jax.random.normal(lk[1], (d_model, d_model), jnp.float32),
            bk=jnp.zeros((1, d_model), jnp.float32),
            wv=scale * jax.random.normal(lk[2], (d_model, d_model), jnp.float32),
            bv=jnp.zeros((1, d_model), jnp.float32),
            wp=scale * jax.random.normal(lk[3], (d_model, d_model), jnp.float32),
            bp=jnp.zeros((1, d_model), jnp.float32),
            ln1g=jnp.ones((1, d_model), jnp.float32),
            ln1b=jnp.zeros((1, d_model), jnp.float32),
            w1=scale * jax.random.normal(lk[4], (d_model, d_ff), jnp.float32),
            b1=jnp.zeros((1, d_ff), jnp.float32),
            w2=scale * jax.random.normal(lk[5], (d_ff, d_model), jnp.float32),
            b2=jnp.zeros((1, d_model), jnp.float32),
            ln2g=jnp.ones((1, d_model), jnp.float32),
            ln2b=jnp.zeros((1, d_model), jnp.float32),
        ))
    return dict(word_emb=word_emb, segment_emb=segment_emb,
                pos_table=pos_table, layers=layers)


def embed(params, input_ids, token_type_ids):
    S = input_ids.shape[1]
    return (jnp.take(params["word_emb"], input_ids, axis=0)
            + params["pos_table"][None, :S, :]
            + jnp.take(params["segment_emb"], token_type_ids, axis=0))


def bert_forward_pallas(params, input_ids, token_type_ids, keymask, n_heads):
    x = embed(params, input_ids, token_type_ids)           # dropout_emb = identity (eval)
    sp = stack_layer_params(params["layers"], n_heads)
    return bert_encoder_pallas(x, keymask, sp, n_heads)


# ----------------------- pure-JAX reference (check) ------------------------ #

def _layer_norm(x, g, b, eps=LN_EPS):
    mu = jnp.mean(x, axis=-1, keepdims=True)
    var = jnp.mean((x - mu) ** 2, axis=-1, keepdims=True)
    return (x - mu) / jnp.sqrt(var + eps) * g + b


def encoder_layer_ref(x, keymask, p, n_heads):
    B, S, D = x.shape
    dk = D // n_heads
    q = (x @ p["wq"] + p["bq"]).reshape(B, S, n_heads, dk).transpose(0, 2, 1, 3)
    k = (x @ p["wk"] + p["bk"]).reshape(B, S, n_heads, dk).transpose(0, 2, 1, 3)
    v = (x @ p["wv"] + p["bv"]).reshape(B, S, n_heads, dk).transpose(0, 2, 1, 3)
    scores = jnp.einsum("bhqd,bhkd->bhqk", q, k) / math.sqrt(dk)
    scores = jnp.where(keymask[:, None, :, :] == 0, NEG_INF, scores)
    attn = jax.nn.softmax(scores, axis=-1)
    out = jnp.einsum("bhqk,bhkd->bhqd", attn, v).transpose(0, 2, 1, 3).reshape(B, S, D)
    y = _layer_norm(x + (out @ p["wp"] + p["bp"]), p["ln1g"], p["ln1b"])
    h1 = jax.nn.relu(y @ p["w1"] + p["b1"])
    h2 = jax.nn.relu(h1 @ p["w2"] + p["b2"])
    return _layer_norm(y + h2, p["ln2g"], p["ln2b"])


def bert_forward_ref(params, input_ids, token_type_ids, keymask, n_heads):
    out = embed(params, input_ids, token_type_ids)
    for p in params["layers"]:
        out = encoder_layer_ref(out, keymask, p, n_heads)
    return out


# ---------------------------------- main ----------------------------------- #

if __name__ == "__main__":
    n_layers, d_model, d_ff, n_heads = 2, 32, 64, 4
    max_seq_len, vocab_size, pad_id = 16, 50, 0
    B, S = 2, 8

    key = jax.random.PRNGKey(0)
    pkey, ikey = jax.random.split(key)
    params = init_params(pkey, n_layers, d_model, d_ff, vocab_size, max_seq_len, pad_id)

    input_ids = jax.random.randint(ikey, (B, S), 1, vocab_size, dtype=jnp.int32)
    input_ids = input_ids.at[1, -2:].set(pad_id)            # exercise the padding mask
    token_type_ids = jnp.concatenate(
        [jnp.zeros((B, S // 2), jnp.int32), jnp.ones((B, S // 2), jnp.int32)], axis=1)
    keymask = (input_ids != pad_id).astype(jnp.float32)[:, None, :]   # (B, 1, S)

    out = bert_forward_pallas(params, input_ids, token_type_ids, keymask, n_heads)
    out = jax.block_until_ready(out)

    ref = bert_forward_ref(params, input_ids, token_type_ids, keymask, n_heads)
    assert out.shape == (B, S, d_model)
    max_err = float(jnp.max(jnp.abs(out - ref)))
    assert jnp.allclose(out, ref, atol=2e-2, rtol=2e-2), \
        f"mismatch vs pure-JAX reference (max abs err {max_err})"

    print("KERNEL_OK")
</pallas_src>

<mosaic_0001>
module attributes {stable_mosaic.version = 11 : i64} {
  func.func @bert_encoder_kernel(%arg0: i32, %arg1: memref<2x8x32xf32, #tpu.memory_space<vmem>>, %arg2: memref<2x1x8xf32, #tpu.memory_space<vmem>>, %arg3: memref<1x32x32xbf16, #tpu.memory_space<vmem>>, %arg4: memref<1x1x32xf32, #tpu.memory_space<vmem>>, %arg5: memref<1x32x32xbf16, #tpu.memory_space<vmem>>, %arg6: memref<1x1x32xf32, #tpu.memory_space<vmem>>, %arg7: memref<1x32x32xbf16, #tpu.memory_space<vmem>>, %arg8: memref<1x1x32xf32, #tpu.memory_space<vmem>>, %arg9: memref<1x4x8x32xbf16, #tpu.memory_space<vmem>>, %arg10: memref<1x1x32xf32, #tpu.memory_space<vmem>>, %arg11: memref<1x1x32xf32, #tpu.memory_space<vmem>>, %arg12: memref<1x1x32xf32, #tpu.memory_space<vmem>>, %arg13: memref<1x32x64xbf16, #tpu.memory_space<vmem>>, %arg14: memref<1x1x64xf32, #tpu.memory_space<vmem>>, %arg15: memref<1x64x32xbf16, #tpu.memory_space<vmem>>, %arg16: memref<1x1x32xf32, #tpu.memory_space<vmem>>, %arg17: memref<1x1x32xf32, #tpu.memory_space<vmem>>, %arg18: memref<1x1x32xf32, #tpu.memory_space<vmem>>, %arg19: memref<2x8x32xf32, #tpu.memory_space<vmem>>, %arg20: memref<2x8x32xf32, #tpu.memory_space<vmem>>, %arg21: memref<4x8x8xf32, #tpu.memory_space<vmem>>, %arg22: memref<4x8x8xf32, #tpu.memory_space<vmem>>, %arg23: memref<4x8x8xf32, #tpu.memory_space<vmem>>) attributes {dimension_semantics = [#tpu.dimension_semantics<arbitrary>], iteration_bounds = array<i64: 2>, scalar_prefetch = 0 : i64, scratch_operands = 4 : i64, tpu.core_type = #tpu.core_type<tc>, window_params = [{pipeline_mode = #tpu.pipeline_mode<synchronous>, transform_indices = @transform_0, window_bounds = array<i64: 2, 8, 32>}, {pipeline_mode = #tpu.pipeline_mode<synchronous>, transform_indices = @transform_1, window_bounds = array<i64: 2, 1, 8>}, {transform_indices = @transform_2, window_bounds = array<i64: 1, 32, 32>}, {transform_indices = @transform_3, window_bounds = array<i64: 1, 1, 32>}, {transform_indices = @transform_4, window_bounds = array<i64: 1, 32, 32>}, {transform_indices = @transform_5, window_bounds = array<i64: 1, 1, 32>}, {transform_indices = @transform_6, window_bounds = array<i64: 1, 32, 32>}, {transform_indices = @transform_7, window_bounds = array<i64: 1, 1, 32>}, {transform_indices = @transform_8, window_bounds = array<i64: 1, 4, 8, 32>}, {transform_indices = @transform_9, window_bounds = array<i64: 1, 1, 32>}, {transform_indices = @transform_10, window_bounds = array<i64: 1, 1, 32>}, {transform_indices = @transform_11, window_bounds = array<i64: 1, 1, 32>}, {transform_indices = @transform_12, window_bounds = array<i64: 1, 32, 64>}, {transform_indices = @transform_13, window_bounds = array<i64: 1, 1, 64>}, {transform_indices = @transform_14, window_bounds = array<i64: 1, 64, 32>}, {transform_indices = @transform_15, window_bounds = array<i64: 1, 1, 32>}, {transform_indices = @transform_16, window_bounds = array<i64: 1, 1, 32>}, {transform_indices = @transform_17, window_bounds = array<i64: 1, 1, 32>}, {pipeline_mode = #tpu.pipeline_mode<synchronous>, transform_indices = @transform_18, window_bounds = array<i64: 2, 8, 32>}]} {
    %c0_i32 = arith.constant 0 : i32
    %0 = arith.cmpi eq, %arg0, %c0_i32 : i32
    %1 = arith.extui %0 : i1 to i32
    %c0_i32_0 = arith.constant 0 : i32
    %2 = arith.cmpi ne, %1, %c0_i32_0 : i32
    scf.if %2 {
      %c0_200 = arith.constant 0 : index
      %c0_201 = arith.constant 0 : index
      %c0_202 = arith.constant 0 : index
      %332 = vector.load %arg1[%c0_200, %c0_201, %c0_202] : memref<2x8x32xf32, #tpu.memory_space<vmem>>, vector<2x8x32xf32>
      %c0_203 = arith.constant 0 : index
      %c0_204 = arith.constant 0 : index
      %c0_205 = arith.constant 0 : index
      %333 = vector.load %arg20[%c0_203, %c0_204, %c0_205] : memref<2x8x32xf32, #tpu.memory_space<vmem>>, vector<2x8x32xf32>
      tpu.vector_store %arg20[%c0_203, %c0_204, %c0_205], %332 {strides = array<i32>} : memref<2x8x32xf32, #tpu.memory_space<vmem>>, vector<2x8x32xf32>,
    } else {
    }
    %c0 = arith.constant 0 : index
    %c0_1 = arith.constant 0 : index
    %c0_2 = arith.constant 0 : index
    %3 = vector.load %arg3[%c0, %c0_1, %c0_2] : memref<1x32x32xbf16, #tpu.memory_space<vmem>>, vector<1x32x32xbf16>
    %4 = vector.shape_cast %3 : vector<1x32x32xbf16> to vector<32x32xbf16>
    %c0_3 = arith.constant 0 : index
    %c0_4 = arith.constant 0 : index
    %c0_5 = arith.constant 0 : index
    %5 = vector.load %arg5[%c0_3, %c0_4, %c0_5] : memref<1x32x32xbf16, #tpu.memory_space<vmem>>, vector<1x32x32xbf16>
    %6 = vector.shape_cast %5 : vector<1x32x32xbf16> to vector<32x32xbf16>
    %c0_6 = arith.constant 0 : index
    %c0_7 = arith.constant 0 : index
    %c0_8 = arith.constant 0 : index
    %7 = vector.load %arg7[%c0_6, %c0_7, %c0_8] : memref<1x32x32xbf16, #tpu.memory_space<vmem>>, vector<1x32x32xbf16>
    %8 = vector.shape_cast %7 : vector<1x32x32xbf16> to vector<32x32xbf16>
    %c0_9 = arith.constant 0 : index
    %c0_10 = arith.constant 0 : index
    %c0_11 = arith.constant 0 : index
    %c0_12 = arith.constant 0 : index
    %9 = vector.load %arg9[%c0_9, %c0_10, %c0_11, %c0_12] : memref<1x4x8x32xbf16, #tpu.memory_space<vmem>>, vector<1x4x8x32xbf16>
    %10 = vector.shape_cast %9 : vector<1x4x8x32xbf16> to vector<4x8x32xbf16>
    %c0_13 = arith.constant 0 : index
    %c0_14 = arith.constant 0 : index
    %c0_15 = arith.constant 0 : index
    %11 = vector.load %arg13[%c0_13, %c0_14, %c0_15] : memref<1x32x64xbf16, #tpu.memory_space<vmem>>, vector<1x32x64xbf16>
    %12 = vector.shape_cast %11 : vector<1x32x64xbf16> to vector<32x64xbf16>
    %c0_16 = arith.constant 0 : index
    %c0_17 = arith.constant 0 : index
    %c0_18 = arith.constant 0 : index
    %13 = vector.load %arg15[%c0_16, %c0_17, %c0_18] : memref<1x64x32xbf16, #tpu.memory_space<vmem>>, vector<1x64x32xbf16>
    %14 = vector.shape_cast %13 : vector<1x64x32xbf16> to vector<64x32xbf16>
    %c0_19 = arith.constant 0 : index
    %c0_20 = arith.constant 0 : index
    %c0_21 = arith.constant 0 : index
    %15 = vector.load %arg4[%c0_19, %c0_20, %c0_21] : memref<1x1x32xf32, #tpu.memory_space<vmem>>, vector<1x1x32xf32>
    %16 = vector.shape_cast %15 : vector<1x1x32xf32> to vector<1x32xf32>
    %c0_22 = arith.constant 0 : index
    %c0_23 = arith.constant 0 : index
    %c0_24 = arith.constant 0 : index
    %17 = vector.load %arg6[%c0_22, %c0_23, %c0_24] : memref<1x1x32xf32, #tpu.memory_space<vmem>>, vector<1x1x32xf32>
    %18 = vector.shape_cast %17 : vector<1x1x32xf32> to vector<1x32xf32>
    %c0_25 = arith.constant 0 : index
    %c0_26 = arith.constant 0 : index
    %c0_27 = arith.constant 0 : index
    %19 = vector.load %arg8[%c0_25, %c0_26, %c0_27] : memref<1x1x32xf32, #tpu.memory_space<vmem>>, vector<1x1x32xf32>
    %20 = vector.shape_cast %19 : vector<1x1x32xf32> to vector<1x32xf32>
    %c0_28 = arith.constant 0 : index
    %c0_29 = arith.constant 0 : index
    %c0_30 = arith.constant 0 : index
    %21 = vector.load %arg10[%c0_28, %c0_29, %c0_30] : memref<1x1x32xf32, #tpu.memory_space<vmem>>, vector<1x1x32xf32>
    %22 = vector.shape_cast %21 : vector<1x1x32xf32> to vector<1x32xf32>
    %c0_31 = arith.constant 0 : index
    %c0_32 = arith.constant 0 : index
    %c0_33 = arith.constant 0 : index
    %23 = vector.load %arg14[%c0_31, %c0_32, %c0_33] : memref<1x1x64xf32, #tpu.memory_space<vmem>>, vector<1x1x64xf32>
    %24 = vector.shape_cast %23 : vector<1x1x64xf32> to vector<1x64xf32>
    %c0_34 = arith.constant 0 : index
    %c0_35 = arith.constant 0 : index
    %c0_36 = arith.constant 0 : index
    %25 = vector.load %arg16[%c0_34, %c0_35, %c0_36] : memref<1x1x32xf32, #tpu.memory_space<vmem>>, vector<1x1x32xf32>
    %26 = vector.shape_cast %25 : vector<1x1x32xf32> to vector<1x32xf32>
    %c0_37 = arith.constant 0 : index
    %c0_38 = arith.constant 0 : index
    %c0_39 = arith.constant 0 : index
    %27 = vector.load %arg11[%c0_37, %c0_38, %c0_39] : memref<1x1x32xf32, #tpu.memory_space<vmem>>, vector<1x1x32xf32>
    %28 = vector.shape_cast %27 : vector<1x1x32xf32> to vector<1x32xf32>
    %c0_40 = arith.constant 0 : index
    %c0_41 = arith.constant 0 : index
    %c0_42 = arith.constant 0 : index
    %29 = vector.load %arg12[%c0_40, %c0_41, %c0_42] : memref<1x1x32xf32, #tpu.memory_space<vmem>>, vector<1x1x32xf32>
    %30 = vector.shape_cast %29 : vector<1x1x32xf32> to vector<1x32xf32>
    %c0_43 = arith.constant 0 : index
    %c0_44 = arith.constant 0 : index
    %c0_45 = arith.constant 0 : index
    %31 = vector.load %arg17[%c0_43, %c0_44, %c0_45] : memref<1x1x32xf32, #tpu.memory_space<vmem>>, vector<1x1x32xf32>
    %32 = vector.shape_cast %31 : vector<1x1x32xf32> to vector<1x32xf32>
    %c0_46 = arith.constant 0 : index
    %c0_47 = arith.constant 0 : index
    %c0_48 = arith.constant 0 : index
    %33 = vector.load %arg18[%c0_46, %c0_47, %c0_48] : memref<1x1x32xf32, #tpu.memory_space<vmem>>, vector<1x1x32xf32>
    %34 = vector.shape_cast %33 : vector<1x1x32xf32> to vector<1x32xf32>
    %c0_49 = arith.constant 0 : index
    %c0_50 = arith.constant 0 : index
    %c0_51 = arith.constant 0 : index
    %35 = vector.load %arg2[%c0_49, %c0_50, %c0_51] : memref<2x1x8xf32, #tpu.memory_space<vmem>>, vector<2x1x8xf32>
    %cst = arith.constant 0.000000e+00 : f32
    %36 = vector.broadcast %cst : f32 to vector<2x1x8xf32>
    %37 = arith.cmpf oeq, %35, %36 : vector<2x1x8xf32>
    %cst_52 = arith.constant -1.000000e+09 : f32
    %cst_53 = arith.constant 0.000000e+00 : f32
    %38 = vector.broadcast %cst_52 : f32 to vector<2x1x8xf32>
    %39 = vector.broadcast %cst_53 : f32 to vector<2x1x8xf32>
    %40 = arith.select %37, %38, %39 : vector<2x1x8xi1>, vector<2x1x8xf32>
    %c0_54 = arith.constant 0 : index
    %c0_55 = arith.constant 0 : index
    %c0_56 = arith.constant 0 : index
    %41 = vector.load %arg20[%c0_54, %c0_55, %c0_56] : memref<2x8x32xf32, #tpu.memory_space<vmem>>, vector<1x8x32xf32>
    %42 = vector.shape_cast %41 : vector<1x8x32xf32> to vector<8x32xf32>
    %43 = arith.truncf %42 : vector<8x32xf32> to vector<8x32xbf16>
    %cst_57 = arith.constant dense<0.000000e+00> : vector<8x32xf32>
    %44 = tpu.matmul %43, %4, %cst_57 {dimension_numbers = #tpu.dot_dimension_numbers<[1], [0], [0], [1], [0, 0, 1, 1], [], []>} : vector<8x32xbf16>, vector<32x32xbf16>, vector<8x32xf32> -> vector<8x32xf32>
    %45 = vector.broadcast %16 : vector<1x32xf32> to vector<8x32xf32>
    %46 = arith.addf %44, %45 : vector<8x32xf32>
    %cst_58 = arith.constant dense<0.000000e+00> : vector<8x32xf32>
    %47 = tpu.matmul %43, %6, %cst_58 {dimension_numbers = #tpu.dot_dimension_numbers<[1], [0], [0], [1], [0, 0, 1, 1], [], []>} : vector<8x32xbf16>, vector<32x32xbf16>, vector<8x32xf32> -> vector<8x32xf32>
    %48 = vector.broadcast %18 : vector<1x32xf32> to vector<8x32xf32>
    %49 = arith.addf %47, %48 : vector<8x32xf32>
    %cst_59 = arith.constant dense<0.000000e+00> : vector<8x32xf32>
    %50 = tpu.matmul %43, %8, %cst_59 {dimension_numbers = #tpu.dot_dimension_numbers<[1], [0], [0], [1], [0, 0, 1, 1], [], []>} : vector<8x32xbf16>, vector<32x32xbf16>, vector<8x32xf32> -> vector<8x32xf32>
    %51 = vector.broadcast %20 : vector<1x32xf32> to vector<8x32xf32>
    %52 = arith.addf %50, %51 : vector<8x32xf32>
    %53 = vector.extract_strided_slice %46 {offsets = [0, 0], sizes = [8, 8], strides = [1, 1]} : vector<8x32xf32> to vector<8x8xf32>
    %c0_60 = arith.constant 0 : index
    %c0_61 = arith.constant 0 : index
    %c0_62 = arith.constant 0 : index
    %54 = vector.load %arg21[%c0_60, %c0_61, %c0_62] : memref<4x8x8xf32, #tpu.memory_space<vmem>>, vector<1x8x8xf32>
    %55 = vector.shape_cast %54 : vector<1x8x8xf32> to vector<8x8xf32>
    %56 = vector.shape_cast %53 : vector<8x8xf32> to vector<1x8x8xf32>
    tpu.vector_store %arg21[%c0_60, %c0_61, %c0_62], %56 {strides = array<i32>} : memref<4x8x8xf32, #tpu.memory_space<vmem>>, vector<1x8x8xf32>,
    %57 = vector.extract_strided_slice %49 {offsets = [0, 0], sizes = [8, 8], strides = [1, 1]} : vector<8x32xf32> to vector<8x8xf32>
    %c0_63 = arith.constant 0 : index
    %c0_64 = arith.constant 0 : index
    %c0_65 = arith.constant 0 : index
    %58 = vector.load %arg22[%c0_63, %c0_64, %c0_65] : memref<4x8x8xf32, #tpu.memory_space<vmem>>, vector<1x8x8xf32>
    %59 = vector.shape_cast %58 : vector<1x8x8xf32> to vector<8x8xf32>
    %60 = vector.shape_cast %57 : vector<8x8xf32> to vector<1x8x8xf32>
    tpu.vector_store %arg22[%c0_63, %c0_64, %c0_65], %60 {strides = array<i32>} : memref<4x8x8xf32, #tpu.memory_space<vmem>>, vector<1x8x8xf32>,
    %61 = vector.extract_strided_slice %52 {offsets = [0, 0], sizes = [8, 8], strides = [1, 1]} : vector<8x32xf32> to vector<8x8xf32>
    %c0_66 = arith.constant 0 : index
    %c0_67 = arith.constant 0 : index
    %c0_68 = arith.constant 0 : index
    %62 = vector.load %arg23[%c0_66, %c0_67, %c0_68] : memref<4x8x8xf32, #tpu.memory_space<vmem>>, vector<1x8x8xf32>
    %63 = vector.shape_cast %62 : vector<1x8x8xf32> to vector<8x8xf32>
    %64 = vector.shape_cast %61 : vector<8x8xf32> to vector<1x8x8xf32>
    tpu.vector_store %arg23[%c0_66, %c0_67, %c0_68], %64 {strides = array<i32>} : memref<4x8x8xf32, #tpu.memory_space<vmem>>, vector<1x8x8xf32>,
    %65 = vector.extract_strided_slice %46 {offsets = [0, 8], sizes = [8, 8], strides = [1, 1]} : vector<8x32xf32> to vector<8x8xf32>
    %c1 = arith.constant 1 : index
    %c0_69 = arith.constant 0 : index
    %c0_70 = arith.constant 0 : index
    %66 = vector.load %arg21[%c1, %c0_69, %c0_70] : memref<4x8x8xf32, #tpu.memory_space<vmem>>, vector<1x8x8xf32>
    %67 = vector.shape_cast %66 : vector<1x8x8xf32> to vector<8x8xf32>
    %68 = vector.shape_cast %65 : vector<8x8xf32> to vector<1x8x8xf32>
    tpu.vector_store %arg21[%c1, %c0_69, %c0_70], %68 {strides = array<i32>} : memref<4x8x8xf32, #tpu.memory_space<vmem>>, vector<1x8x8xf32>,
    %69 = vector.extract_strided_slice %49 {offsets = [0, 8], sizes = [8, 8], strides = [1, 1]} : vector<8x32xf32> to vector<8x8xf32>
    %c1_71 = arith.constant 1 : index
    %c0_72 = arith.constant 0 : index
    %c0_73 = arith.constant 0 : index
    %70 = vector.load %arg22[%c1_71, %c0_72, %c0_73] : memref<4x8x8xf32, #tpu.memory_space<vmem>>, vector<1x8x8xf32>
    %71 = vector.shape_cast %70 : vector<1x8x8xf32> to vector<8x8xf32>
    %72 = vector.shape_cast %69 : vector<8x8xf32> to vector<1x8x8xf32>
    tpu.vector_store %arg22[%c1_71, %c0_72, %c0_73], %72 {strides = array<i32>} : memref<4x8x8xf32, #tpu.memory_space<vmem>>, vector<1x8x8xf32>,
    %73 = vector.extract_strided_slice %52 {offsets = [0, 8], sizes = [8, 8], strides = [1, 1]} : vector<8x32xf32> to vector<8x8xf32>
    %c1_74 = arith.constant 1 : index
    %c0_75 = arith.constant 0 : index
    %c0_76 = arith.constant 0 : index
    %74 = vector.load %arg23[%c1_74, %c0_75, %c0_76] : memref<4x8x8xf32, #tpu.memory_space<vmem>>, vector<1x8x8xf32>
    %75 = vector.shape_cast %74 : vector<1x8x8xf32> to vector<8x8xf32>
    %76 = vector.shape_cast %73 : vector<8x8xf32> to vector<1x8x8xf32>
    tpu.vector_store %arg23[%c1_74, %c0_75, %c0_76], %76 {strides = array<i32>} : memref<4x8x8xf32, #tpu.memory_space<vmem>>, vector<1x8x8xf32>,
    %77 = vector.extract_strided_slice %46 {offsets = [0, 16], sizes = [8, 8], strides = [1, 1]} : vector<8x32xf32> to vector<8x8xf32>
    %c2 = arith.constant 2 : index
    %c0_77 = arith.constant 0 : index
    %c0_78 = arith.constant 0 : index
    %78 = vector.load %arg21[%c2, %c0_77, %c0_78] : memref<4x8x8xf32, #tpu.memory_space<vmem>>, vector<1x8x8xf32>
    %79 = vector.shape_cast %78 : vector<1x8x8xf32> to vector<8x8xf32>
    %80 = vector.shape_cast %77 : vector<8x8xf32> to vector<1x8x8xf32>
    tpu.vector_store %arg21[%c2, %c0_77, %c0_78], %80 {strides = array<i32>} : memref<4x8x8xf32, #tpu.memory_space<vmem>>, vector<1x8x8xf32>,
    %81 = vector.extract_strided_slice %49 {offsets = [0, 16], sizes = [8, 8], strides = [1, 1]} : vector<8x32xf32> to vector<8x8xf32>
    %c2_79 = arith.constant 2 : index
    %c0_80 = arith.constant 0 : index
    %c0_81 = arith.constant 0 : index
    %82 = vector.load %arg22[%c2_79, %c0_80, %c0_81] : memref<4x8x8xf32, #tpu.memory_space<vmem>>, vector<1x8x8xf32>
    %83 = vector.shape_cast %82 : vector<1x8x8xf32> to vector<8x8xf32>
    %84 = vector.shape_cast %81 : vector<8x8xf32> to vector<1x8x8xf32>
    tpu.vector_store %arg22[%c2_79, %c0_80, %c0_81], %84 {strides = array<i32>} : memref<4x8x8xf32, #tpu.memory_space<vmem>>, vector<1x8x8xf32>,
    %85 = vector.extract_strided_slice %52 {offsets = [0, 16], sizes = [8, 8], strides = [1, 1]} : vector<8x32xf32> to vector<8x8xf32>
    %c2_82 = arith.constant 2 : index
    %c0_83 = arith.constant 0 : index
    %c0_84 = arith.constant 0 : index
    %86 = vector.load %arg23[%c2_82, %c0_83, %c0_84] : memref<4x8x8xf32, #tpu.memory_space<vmem>>, vector<1x8x8xf32>
    %87 = vector.shape_cast %86 : vector<1x8x8xf32> to vector<8x8xf32>
    %88 = vector.shape_cast %85 : vector<8x8xf32> to vector<1x8x8xf32>
    tpu.vector_store %arg23[%c2_82, %c0_83, %c0_84], %88 {strides = array<i32>} : memref<4x8x8xf32, #tpu.memory_space<vmem>>, vector<1x8x8xf32>,
    %89 = vector.extract_strided_slice %46 {offsets = [0, 24], sizes = [8, 8], strides = [1, 1]} : vector<8x32xf32> to vector<8x8xf32>
    %c3 = arith.constant 3 : index
    %c0_85 = arith.constant 0 : index
    %c0_86 = arith.constant 0 : index
    %90 = vector.load %arg21[%c3, %c0_85, %c0_86] : memref<4x8x8xf32, #tpu.memory_space<vmem>>, vector<1x8x8xf32>
    %91 = vector.shape_cast %90 : vector<1x8x8xf32> to vector<8x8xf32>
    %92 = vector.shape_cast %89 : vector<8x8xf32> to vector<1x8x8xf32>
    tpu.vector_store %arg21[%c3, %c0_85, %c0_86], %92 {strides = array<i32>} : memref<4x8x8xf32, #tpu.memory_space<vmem>>, vector<1x8x8xf32>,
    %93 = vector.extract_strided_slice %49 {offsets = [0, 24], sizes = [8, 8], strides = [1, 1]} : vector<8x32xf32> to vector<8x8xf32>
    %c3_87 = arith.constant 3 : index
    %c0_88 = arith.constant 0 : index
    %c0_89 = arith.constant 0 : index
    %94 = vector.load %arg22[%c3_87, %c0_88, %c0_89] : memref<4x8x8xf32, #tpu.memory_space<vmem>>, vector<1x8x8xf32>
    %95 = vector.shape_cast %94 : vector<1x8x8xf32> to vector<8x8xf32>
    %96 = vector.shape_cast %93 : vector<8x8xf32> to vector<1x8x8xf32>
    tpu.vector_store %arg22[%c3_87, %c0_88, %c0_89], %96 {strides = array<i32>} : memref<4x8x8xf32, #tpu.memory_space<vmem>>, vector<1x8x8xf32>,
    %97 = vector.extract_strided_slice %52 {offsets = [0, 24], sizes = [8, 8], strides = [1, 1]} : vector<8x32xf32> to vector<8x8xf32>
    %c3_90 = arith.constant 3 : index
    %c0_91 = arith.constant 0 : index
    %c0_92 = arith.constant 0 : index
    %98 = vector.load %arg23[%c3_90, %c0_91, %c0_92] : memref<4x8x8xf32, #tpu.memory_space<vmem>>, vector<1x8x8xf32>
    %99 = vector.shape_cast %98 : vector<1x8x8xf32> to vector<8x8xf32>
    %100 = vector.shape_cast %97 : vector<8x8xf32> to vector<1x8x8xf32>
    tpu.vector_store %arg23[%c3_90, %c0_91, %c0_92], %100 {strides = array<i32>} : memref<4x8x8xf32, #tpu.memory_space<vmem>>, vector<1x8x8xf32>,
    %c0_93 = arith.constant 0 : index
    %c0_94 = arith.constant 0 : index
    %c0_95 = arith.constant 0 : index
    %101 = vector.load %arg21[%c0_93, %c0_94, %c0_95] : memref<4x8x8xf32, #tpu.memory_space<vmem>>, vector<4x8x8xf32>
    %102 = arith.truncf %101 : vector<4x8x8xf32> to vector<4x8x8xbf16>
    %c0_96 = arith.constant 0 : index
    %c0_97 = arith.constant 0 : index
    %c0_98 = arith.constant 0 : index
    %103 = vector.load %arg22[%c0_96, %c0_97, %c0_98] : memref<4x8x8xf32, #tpu.memory_space<vmem>>, vector<4x8x8xf32>
    %104 = arith.truncf %103 : vector<4x8x8xf32> to vector<4x8x8xbf16>
    %c0_99 = arith.constant 0 : index
    %c0_100 = arith.constant 0 : index
    %c0_101 = arith.constant 0 : index
    %105 = vector.load %arg23[%c0_99, %c0_100, %c0_101] : memref<4x8x8xf32, #tpu.memory_space<vmem>>, vector<4x8x8xf32>
    %106 = arith.truncf %105 : vector<4x8x8xf32> to vector<4x8x8xbf16>
    "tpu.trace_start"() <{level = 10 : i32, message = "hqd,hkd->hqk"}> : () -> ()
    %cst_102 = arith.constant dense<0.000000e+00> : vector<4x8x8xf32>
    %107 = tpu.matmul %102, %104, %cst_102 {dimension_numbers = #tpu.dot_dimension_numbers<[2], [2], [1], [1], [0, 0, 0, 1, 1, 1], [0], [0]>} : vector<4x8x8xbf16>, vector<4x8x8xbf16>, vector<4x8x8xf32> -> vector<4x8x8xf32>
    "tpu.trace_stop"() : () -> ()
    %108 = vector.extract_strided_slice %40 {offsets = [0, 0, 0], sizes = [1, 1, 8], strides = [1, 1, 1]} : vector<2x1x8xf32> to vector<1x1x8xf32>
    %109 = vector.broadcast %108 : vector<1x1x8xf32> to vector<4x8x8xf32>
    %110 = arith.addf %107, %109 : vector<4x8x8xf32>
    %cst_103 = arith.constant dense<0xFF800000> : vector<4x8xf32>
    %111 = vector.multi_reduction <maximumf>, %110, %cst_103 [2] : vector<4x8x8xf32> to vector<4x8xf32>
    %112 = vector.shape_cast %111 : vector<4x8xf32> to vector<4x8x1xf32>
    %113 = vector.broadcast %112 : vector<4x8x1xf32> to vector<4x8x8xf32>
    %114 = arith.subf %110, %113 : vector<4x8x8xf32>
    %115 = math.exp %114 : vector<4x8x8xf32>
    %cst_104 = arith.constant dense<0.000000e+00> : vector<4x8xf32>
    %116 = vector.multi_reduction <add>, %115, %cst_104 [2] : vector<4x8x8xf32> to vector<4x8xf32>
    %117 = vector.shape_cast %116 : vector<4x8xf32> to vector<4x8x1xf32>
    %118 = tpu.reciprocal %117 {approx = true} : vector<4x8x1xf32> -> vector<4x8x1xf32>
    %119 = vector.broadcast %118 : vector<4x8x1xf32> to vector<4x8x8xf32>
    %120 = arith.mulf %115, %119 : vector<4x8x8xf32>
    %121 = arith.truncf %120 : vector<4x8x8xf32> to vector<4x8x8xbf16>
    "tpu.trace_start"() <{level = 10 : i32, message = "hqk,hkd->hqd"}> : () -> ()
    %cst_105 = arith.constant dense<0.000000e+00> : vector<4x8x8xf32>
    %122 = tpu.matmul %121, %106, %cst_105 {dimension_numbers = #tpu.dot_dimension_numbers<[2], [1], [1], [2], [0, 0, 0, 1, 1, 2], [0], [0]>} : vector<4x8x8xbf16>, vector<4x8x8xbf16>, vector<4x8x8xf32> -> vector<4x8x8xf32>
    "tpu.trace_stop"() : () -> ()
    %123 = arith.truncf %122 : vector<4x8x8xf32> to vector<4x8x8xbf16>
    "tpu.trace_start"() <{level = 10 : i32, message = "hsd,hdo->hso"}> : () -> ()
    %cst_106 = arith.constant dense<0.000000e+00> : vector<4x8x32xf32>
    %124 = tpu.matmul %123, %10, %cst_106 {dimension_numbers = #tpu.dot_dimension_numbers<[2], [1], [1], [2], [0, 0, 0, 1, 1, 2], [0], [0]>} : vector<4x8x8xbf16>, vector<4x8x32xbf16>, vector<4x8x32xf32> -> vector<4x8x32xf32>
    "tpu.trace_stop"() : () -> ()
    %cst_107 = arith.constant dense<0.000000e+00> : vector<8x32xf32>
    %125 = vector.multi_reduction <add>, %124, %cst_107 [0] : vector<4x8x32xf32> to vector<8x32xf32>
    %126 = vector.broadcast %22 : vector<1x32xf32> to vector<8x32xf32>
    %127 = arith.addf %125, %126 : vector<8x32xf32>
    %128 = arith.addf %42, %127 : vector<8x32xf32>
    %cst_108 = arith.constant dense<0.000000e+00> : vector<8xf32>
    %129 = vector.multi_reduction <add>, %128, %cst_108 [1] : vector<8x32xf32> to vector<8xf32>
    %130 = vector.shape_cast %129 : vector<8xf32> to vector<8x1xf32>
    %cst_109 = arith.constant 3.200000e+01 : f32
    %131 = vector.broadcast %cst_109 : f32 to vector<8x1xf32>
    %132 = arith.divf %130, %131 : vector<8x1xf32>
    %133 = vector.broadcast %132 : vector<8x1xf32> to vector<8x32xf32>
    %134 = arith.subf %128, %133 : vector<8x32xf32>
    %135 = arith.mulf %134, %134 : vector<8x32xf32>
    %cst_110 = arith.constant dense<0.000000e+00> : vector<8xf32>
    %136 = vector.multi_reduction <add>, %135, %cst_110 [1] : vector<8x32xf32> to vector<8xf32>
    %137 = vector.shape_cast %136 : vector<8xf32> to vector<8x1xf32>
    %cst_111 = arith.constant 3.200000e+01 : f32
    %138 = vector.broadcast %cst_111 : f32 to vector<8x1xf32>
    %139 = arith.divf %137, %138 : vector<8x1xf32>
    %cst_112 = arith.constant 9.99999974E-6 : f32
    %140 = vector.broadcast %cst_112 : f32 to vector<8x1xf32>
    %141 = arith.addf %139, %140 : vector<8x1xf32>
    %142 = math.rsqrt %141 : vector<8x1xf32>
    %143 = vector.broadcast %142 : vector<8x1xf32> to vector<8x32xf32>
    %144 = arith.mulf %134, %143 : vector<8x32xf32>
    %145 = vector.broadcast %28 : vector<1x32xf32> to vector<8x32xf32>
    %146 = arith.mulf %144, %145 : vector<8x32xf32>
    %147 = vector.broadcast %30 : vector<1x32xf32> to vector<8x32xf32>
    %148 = arith.addf %146, %147 : vector<8x32xf32>
    %149 = arith.truncf %148 : vector<8x32xf32> to vector<8x32xbf16>
    %cst_113 = arith.constant dense<0.000000e+00> : vector<8x64xf32>
    %150 = tpu.matmul %149, %12, %cst_113 {dimension_numbers = #tpu.dot_dimension_numbers<[1], [0], [0], [1], [0, 0, 1, 1], [], []>} : vector<8x32xbf16>, vector<32x64xbf16>, vector<8x64xf32> -> vector<8x64xf32>
    %151 = vector.broadcast %24 : vector<1x64xf32> to vector<8x64xf32>
    %152 = arith.addf %150, %151 : vector<8x64xf32>
    %cst_114 = arith.constant 0.000000e+00 : f32
    %153 = vector.broadcast %cst_114 : f32 to vector<8x64xf32>
    %154 = arith.maximumf %152, %153 : vector<8x64xf32>
    %155 = arith.truncf %154 : vector<8x64xf32> to vector<8x64xbf16>
    %cst_115 = arith.constant dense<0.000000e+00> : vector<8x32xf32>
    %156 = tpu.matmul %155, %14, %cst_115 {dimension_numbers = #tpu.dot_dimension_numbers<[1], [0], [0], [1], [0, 0, 1, 1], [], []>} : vector<8x64xbf16>, vector<64x32xbf16>, vector<8x32xf32> -> vector<8x32xf32>
    %157 = vector.broadcast %26 : vector<1x32xf32> to vector<8x32xf32>
    %158 = arith.addf %156, %157 : vector<8x32xf32>
    %cst_116 = arith.constant 0.000000e+00 : f32
    %159 = vector.broadcast %cst_116 : f32 to vector<8x32xf32>
    %160 = arith.maximumf %158, %159 : vector<8x32xf32>
    %161 = arith.addf %148, %160 : vector<8x32xf32>
    %cst_117 = arith.constant dense<0.000000e+00> : vector<8xf32>
    %162 = vector.multi_reduction <add>, %161, %cst_117 [1] : vector<8x32xf32> to vector<8xf32>
    %163 = vector.shape_cast %162 : vector<8xf32> to vector<8x1xf32>
    %cst_118 = arith.constant 3.200000e+01 : f32
    %164 = vector.broadcast %cst_118 : f32 to vector<8x1xf32>
    %165 = arith.divf %163, %164 : vector<8x1xf32>
    %166 = vector.broadcast %165 : vector<8x1xf32> to vector<8x32xf32>
    %167 = arith.subf %161, %166 : vector<8x32xf32>
    %168 = arith.mulf %167, %167 : vector<8x32xf32>
    %cst_119 = arith.constant dense<0.000000e+00> : vector<8xf32>
    %169 = vector.multi_reduction <add>, %168, %cst_119 [1] : vector<8x32xf32> to vector<8xf32>
    %170 = vector.shape_cast %169 : vector<8xf32> to vector<8x1xf32>
    %cst_120 = arith.constant 3.200000e+01 : f32
    %171 = vector.broadcast %cst_120 : f32 to vector<8x1xf32>
    %172 = arith.divf %170, %171 : vector<8x1xf32>
    %cst_121 = arith.constant 9.99999974E-6 : f32
    %173 = vector.broadcast %cst_121 : f32 to vector<8x1xf32>
    %174 = arith.addf %172, %173 : vector<8x1xf32>
    %175 = math.rsqrt %174 : vector<8x1xf32>
    %176 = vector.broadcast %175 : vector<8x1xf32> to vector<8x32xf32>
    %177 = arith.mulf %167, %176 : vector<8x32xf32>
    %178 = vector.broadcast %32 : vector<1x32xf32> to vector<8x32xf32>
    %179 = arith.mulf %177, %178 : vector<8x32xf32>
    %180 = vector.broadcast %34 : vector<1x32xf32> to vector<8x32xf32>
    %181 = arith.addf %179, %180 : vector<8x32xf32>
    %c0_122 = arith.constant 0 : index
    %c0_123 = arith.constant 0 : index
    %c0_124 = arith.constant 0 : index
    %182 = vector.load %arg20[%c0_122, %c0_123, %c0_124] : memref<2x8x32xf32, #tpu.memory_space<vmem>>, vector<1x8x32xf32>
    %183 = vector.shape_cast %182 : vector<1x8x32xf32> to vector<8x32xf32>
    %184 = vector.shape_cast %181 : vector<8x32xf32> to vector<1x8x32xf32>
    tpu.vector_store %arg20[%c0_122, %c0_123, %c0_124], %184 {strides = array<i32>} : memref<2x8x32xf32, #tpu.memory_space<vmem>>, vector<1x8x32xf32>,
    %c1_125 = arith.constant 1 : index
    %c0_126 = arith.constant 0 : index
    %c0_127 = arith.constant 0 : index
    %185 = vector.load %arg20[%c1_125, %c0_126, %c0_127] : memref<2x8x32xf32, #tpu.memory_space<vmem>>, vector<1x8x32xf32>
    %186 = vector.shape_cast %185 : vector<1x8x32xf32> to vector<8x32xf32>
    %187 = arith.truncf %186 : vector<8x32xf32> to vector<8x32xbf16>
    %cst_128 = arith.constant dense<0.000000e+00> : vector<8x32xf32>
    %188 = tpu.matmul %187, %4, %cst_128 {dimension_numbers = #tpu.dot_dimension_numbers<[1], [0], [0], [1], [0, 0, 1, 1], [], []>} : vector<8x32xbf16>, vector<32x32xbf16>, vector<8x32xf32> -> vector<8x32xf32>
    %189 = vector.broadcast %16 : vector<1x32xf32> to vector<8x32xf32>
    %190 = arith.addf %188, %189 : vector<8x32xf32>
    %cst_129 = arith.constant dense<0.000000e+00> : vector<8x32xf32>
    %191 = tpu.matmul %187, %6, %cst_129 {dimension_numbers = #tpu.dot_dimension_numbers<[1], [0], [0], [1], [0, 0, 1, 1], [], []>} : vector<8x32xbf16>, vector<32x32xbf16>, vector<8x32xf32> -> vector<8x32xf32>
    %192 = vector.broadcast %18 : vector<1x32xf32> to vector<8x32xf32>
    %193 = arith.addf %191, %192 : vector<8x32xf32>
    %cst_130 = arith.constant dense<0.000000e+00> : vector<8x32xf32>
    %194 = tpu.matmul %187, %8, %cst_130 {dimension_numbers = #tpu.dot_dimension_numbers<[1], [0], [0], [1], [0, 0, 1, 1], [], []>} : vector<8x32xbf16>, vector<32x32xbf16>, vector<8x32xf32> -> vector<8x32xf32>
    %195 = vector.broadcast %20 : vector<1x32xf32> to vector<8x32xf32>
    %196 = arith.addf %194, %195 : vector<8x32xf32>
    %197 = vector.extract_strided_slice %190 {offsets = [0, 0], sizes = [8, 8], strides = [1, 1]} : vector<8x32xf32> to vector<8x8xf32>
    %c0_131 = arith.constant 0 : index
    %c0_132 = arith.constant 0 : index
    %c0_133 = arith.constant 0 : index
    %198 = vector.load %arg21[%c0_131, %c0_132, %c0_133] : memref<4x8x8xf32, #tpu.memory_space<vmem>>, vector<1x8x8xf32>
    %199 = vector.shape_cast %198 : vector<1x8x8xf32> to vector<8x8xf32>
    %200 = vector.shape_cast %197 : vector<8x8xf32> to vector<1x8x8xf32>
    tpu.vector_store %arg21[%c0_131, %c0_132, %c0_133], %200 {strides = array<i32>} : memref<4x8x8xf32, #tpu.memory_space<vmem>>, vector<1x8x8xf32>,
    %201 = vector.extract_strided_slice %193 {offsets = [0, 0], sizes = [8, 8], strides = [1, 1]} : vector<8x32xf32> to vector<8x8xf32>
    %c0_134 = arith.constant 0 : index
    %c0_135 = arith.constant 0 : index
    %c0_136 = arith.constant 0 : index
    %202 = vector.load %arg22[%c0_134, %c0_135, %c0_136] : memref<4x8x8xf32, #tpu.memory_space<vmem>>, vector<1x8x8xf32>
    %203 = vector.shape_cast %202 : vector<1x8x8xf32> to vector<8x8xf32>
    %204 = vector.shape_cast %201 : vector<8x8xf32> to vector<1x8x8xf32>
    tpu.vector_store %arg22[%c0_134, %c0_135, %c0_136], %204 {strides = array<i32>} : memref<4x8x8xf32, #tpu.memory_space<vmem>>, vector<1x8x8xf32>,
    %205 = vector.extract_strided_slice %196 {offsets = [0, 0], sizes = [8, 8], strides = [1, 1]} : vector<8x32xf32> to vector<8x8xf32>
    %c0_137 = arith.constant 0 : index
    %c0_138 = arith.constant 0 : index
    %c0_139 = arith.constant 0 : index
    %206 = vector.load %arg23[%c0_137, %c0_138, %c0_139] : memref<4x8x8xf32, #tpu.memory_space<vmem>>, vector<1x8x8xf32>
    %207 = vector.shape_cast %206 : vector<1x8x8xf32> to vector<8x8xf32>
    %208 = vector.shape_cast %205 : vector<8x8xf32> to vector<1x8x8xf32>
    tpu.vector_store %arg23[%c0_137, %c0_138, %c0_139], %208 {strides = array<i32>} : memref<4x8x8xf32, #tpu.memory_space<vmem>>, vector<1x8x8xf32>,
    %209 = vector.extract_strided_slice %190 {offsets = [0, 8], sizes = [8, 8], strides = [1, 1]} : vector<8x32xf32> to vector<8x8xf32>
    %c1_140 = arith.constant 1 : index
    %c0_141 = arith.constant 0 : index
    %c0_142 = arith.constant 0 : index
    %210 = vector.load %arg21[%c1_140, %c0_141, %c0_142] : memref<4x8x8xf32, #tpu.memory_space<vmem>>, vector<1x8x8xf32>
    %211 = vector.shape_cast %210 : vector<1x8x8xf32> to vector<8x8xf32>
    %212 = vector.shape_cast %209 : vector<8x8xf32> to vector<1x8x8xf32>
    tpu.vector_store %arg21[%c1_140, %c0_141, %c0_142], %212 {strides = array<i32>} : memref<4x8x8xf32, #tpu.memory_space<vmem>>, vector<1x8x8xf32>,
    %213 = vector.extract_strided_slice %193 {offsets = [0, 8], sizes = [8, 8], strides = [1, 1]} : vector<8x32xf32> to vector<8x8xf32>
    %c1_143 = arith.constant 1 : index
    %c0_144 = arith.constant 0 : index
    %c0_145 = arith.constant 0 : index
    %214 = vector.load %arg22[%c1_143, %c0_144, %c0_145] : memref<4x8x8xf32, #tpu.memory_space<vmem>>, vector<1x8x8xf32>
    %215 = vector.shape_cast %214 : vector<1x8x8xf32> to vector<8x8xf32>
    %216 = vector.shape_cast %213 : vector<8x8xf32> to vector<1x8x8xf32>
    tpu.vector_store %arg22[%c1_143, %c0_144, %c0_145], %216 {strides = array<i32>} : memref<4x8x8xf32, #tpu.memory_space<vmem>>, vector<1x8x8xf32>,
    %217 = vector.extract_strided_slice %196 {offsets = [0, 8], sizes = [8, 8], strides = [1, 1]} : vector<8x32xf32> to vector<8x8xf32>
    %c1_146 = arith.constant 1 : index
    %c0_147 = arith.constant 0 : index
    %c0_148 = arith.constant 0 : index
    %218 = vector.load %arg23[%c1_146, %c0_147, %c0_148] : memref<4x8x8xf32, #tpu.memory_space<vmem>>, vector<1x8x8xf32>
    %219 = vector.shape_cast %218 : vector<1x8x8xf32> to vector<8x8xf32>
    %220 = vector.shape_cast %217 : vector<8x8xf32> to vector<1x8x8xf32>
    tpu.vector_store %arg23[%c1_146, %c0_147, %c0_148], %220 {strides = array<i32>} : memref<4x8x8xf32, #tpu.memory_space<vmem>>, vector<1x8x8xf32>,
    %221 = vector.extract_strided_slice %190 {offsets = [0, 16], sizes = [8, 8], strides = [1, 1]} : vector<8x32xf32> to vector<8x8xf32>
    %c2_149 = arith.constant 2 : index
    %c0_150 = arith.constant 0 : index
    %c0_151 = arith.constant 0 : index
    %222 = vector.load %arg21[%c2_149, %c0_150, %c0_151] : memref<4x8x8xf32, #tpu.memory_space<vmem>>, vector<1x8x8xf32>
    %223 = vector.shape_cast %222 : vector<1x8x8xf32> to vector<8x8xf32>
    %224 = vector.shape_cast %221 : vector<8x8xf32> to vector<1x8x8xf32>
    tpu.vector_store %arg21[%c2_149, %c0_150, %c0_151], %224 {strides = array<i32>} : memref<4x8x8xf32, #tpu.memory_space<vmem>>, vector<1x8x8xf32>,
    %225 = vector.extract_strided_slice %193 {offsets = [0, 16], sizes = [8, 8], strides = [1, 1]} : vector<8x32xf32> to vector<8x8xf32>
    %c2_152 = arith.constant 2 : index
    %c0_153 = arith.constant 0 : index
    %c0_154 = arith.constant 0 : index
    %226 = vector.load %arg22[%c2_152, %c0_153, %c0_154] : memref<4x8x8xf32, #tpu.memory_space<vmem>>, vector<1x8x8xf32>
    %227 = vector.shape_cast %226 : vector<1x8x8xf32> to vector<8x8xf32>
    %228 = vector.shape_cast %225 : vector<8x8xf32> to vector<1x8x8xf32>
    tpu.vector_store %arg22[%c2_152, %c0_153, %c0_154], %228 {strides = array<i32>} : memref<4x8x8xf32, #tpu.memory_space<vmem>>, vector<1x8x8xf32>,
    %229 = vector.extract_strided_slice %196 {offsets = [0, 16], sizes = [8, 8], strides = [1, 1]} : vector<8x32xf32> to vector<8x8xf32>
    %c2_155 = arith.constant 2 : index
    %c0_156 = arith.constant 0 : index
    %c0_157 = arith.constant 0 : index
    %230 = vector.load %arg23[%c2_155, %c0_156, %c0_157] : memref<4x8x8xf32, #tpu.memory_space<vmem>>, vector<1x8x8xf32>
    %231 = vector.shape_cast %230 : vector<1x8x8xf32> to vector<8x8xf32>
    %232 = vector.shape_cast %229 : vector<8x8xf32> to vector<1x8x8xf32>
    tpu.vector_store %arg23[%c2_155, %c0_156, %c0_157], %232 {strides = array<i32>} : memref<4x8x8xf32, #tpu.memory_space<vmem>>, vector<1x8x8xf32>,
    %233 = vector.extract_strided_slice %190 {offsets = [0, 24], sizes = [8, 8], strides = [1, 1]} : vector<8x32xf32> to vector<8x8xf32>
    %c3_158 = arith.constant 3 : index
    %c0_159 = arith.constant 0 : index
    %c0_160 = arith.constant 0 : index
    %234 = vector.load %arg21[%c3_158, %c0_159, %c0_160] : memref<4x8x8xf32, #tpu.memory_space<vmem>>, vector<1x8x8xf32>
    %235 = vector.shape_cast %234 : vector<1x8x8xf32> to vector<8x8xf32>
    %236 = vector.shape_cast %233 : vector<8x8xf32> to vector<1x8x8xf32>
    tpu.vector_store %arg21[%c3_158, %c0_159, %c0_160], %236 {strides = array<i32>} : memref<4x8x8xf32, #tpu.memory_space<vmem>>, vector<1x8x8xf32>,
    %237 = vector.extract_strided_slice %193 {offsets = [0, 24], sizes = [8, 8], strides = [1, 1]} : vector<8x32xf32> to vector<8x8xf32>
    %c3_161 = arith.constant 3 : index
    %c0_162 = arith.constant 0 : index
    %c0_163 = arith.constant 0 : index
    %238 = vector.load %arg22[%c3_161, %c0_162, %c0_163] : memref<4x8x8xf32, #tpu.memory_space<vmem>>, vector<1x8x8xf32>
    %239 = vector.shape_cast %238 : vector<1x8x8xf32> to vector<8x8xf32>
    %240 = vector.shape_cast %237 : vector<8x8xf32> to vector<1x8x8xf32>
    tpu.vector_store %arg22[%c3_161, %c0_162, %c0_163], %240 {strides = array<i32>} : memref<4x8x8xf32, #tpu.memory_space<vmem>>, vector<1x8x8xf32>,
    %241 = vector.extract_strided_slice %196 {offsets = [0, 24], sizes = [8, 8], strides = [1, 1]} : vector<8x32xf32> to vector<8x8xf32>
    %c3_164 = arith.constant 3 : index
    %c0_165 = arith.constant 0 : index
    %c0_166 = arith.constant 0 : index
    %242 = vector.load %arg23[%c3_164, %c0_165, %c0_166] : memref<4x8x8xf32, #tpu.memory_space<vmem>>, vector<1x8x8xf32>
    %243 = vector.shape_cast %242 : vector<1x8x8xf32> to vector<8x8xf32>
    %244 = vector.shape_cast %241 : vector<8x8xf32> to vector<1x8x8xf32>
    tpu.vector_store %arg23[%c3_164, %c0_165, %c0_166], %244 {strides = array<i32>} : memref<4x8x8xf32, #tpu.memory_space<vmem>>, vector<1x8x8xf32>,
    %c0_167 = arith.constant 0 : index
    %c0_168 = arith.constant 0 : index
    %c0_169 = arith.constant 0 : index
    %245 = vector.load %arg21[%c0_167, %c0_168, %c0_169] : memref<4x8x8xf32, #tpu.memory_space<vmem>>, vector<4x8x8xf32>
    %246 = arith.truncf %245 : vector<4x8x8xf32> to vector<4x8x8xbf16>
    %c0_170 = arith.constant 0 : index
    %c0_171 = arith.constant 0 : index
    %c0_172 = arith.constant 0 : index
    %247 = vector.load %arg22[%c0_170, %c0_171, %c0_172] : memref<4x8x8xf32, #tpu.memory_space<vmem>>, vector<4x8x8xf32>
    %248 = arith.truncf %247 : vector<4x8x8xf32> to vector<4x8x8xbf16>
    %c0_173 = arith.constant 0 : index
    %c0_174 = arith.constant 0 : index
    %c0_175 = arith.constant 0 : index
    %249 = vector.load %arg23[%c0_173, %c0_174, %c0_175] : memref<4x8x8xf32, #tpu.memory_space<vmem>>, vector<4x8x8xf32>
    %250 = arith.truncf %249 : vector<4x8x8xf32> to vector<4x8x8xbf16>
    "tpu.trace_start"() <{level = 10 : i32, message = "hqd,hkd->hqk"}> : () -> ()
    %cst_176 = arith.constant dense<0.000000e+00> : vector<4x8x8xf32>
    %251 = tpu.matmul %246, %248, %cst_176 {dimension_numbers = #tpu.dot_dimension_numbers<[2], [2], [1], [1], [0, 0, 0, 1, 1, 1], [0], [0]>} : vector<4x8x8xbf16>, vector<4x8x8xbf16>, vector<4x8x8xf32> -> vector<4x8x8xf32>
    "tpu.trace_stop"() : () -> ()
    %252 = vector.extract_strided_slice %40 {offsets = [1, 0, 0], sizes = [1, 1, 8], strides = [1, 1, 1]} : vector<2x1x8xf32> to vector<1x1x8xf32>
    %253 = vector.broadcast %252 : vector<1x1x8xf32> to vector<4x8x8xf32>
    %254 = arith.addf %251, %253 : vector<4x8x8xf32>
    %cst_177 = arith.constant dense<0xFF800000> : vector<4x8xf32>
    %255 = vector.multi_reduction <maximumf>, %254, %cst_177 [2] : vector<4x8x8xf32> to vector<4x8xf32>
    %256 = vector.shape_cast %255 : vector<4x8xf32> to vector<4x8x1xf32>
    %257 = vector.broadcast %256 : vector<4x8x1xf32> to vector<4x8x8xf32>
    %258 = arith.subf %254, %257 : vector<4x8x8xf32>
    %259 = math.exp %258 : vector<4x8x8xf32>
    %cst_178 = arith.constant dense<0.000000e+00> : vector<4x8xf32>
    %260 = vector.multi_reduction <add>, %259, %cst_178 [2] : vector<4x8x8xf32> to vector<4x8xf32>
    %261 = vector.shape_cast %260 : vector<4x8xf32> to vector<4x8x1xf32>
    %262 = tpu.reciprocal %261 {approx = true} : vector<4x8x1xf32> -> vector<4x8x1xf32>
    %263 = vector.broadcast %262 : vector<4x8x1xf32> to vector<4x8x8xf32>
    %264 = arith.mulf %259, %263 : vector<4x8x8xf32>
    %265 = arith.truncf %264 : vector<4x8x8xf32> to vector<4x8x8xbf16>
    "tpu.trace_start"() <{level = 10 : i32, message = "hqk,hkd->hqd"}> : () -> ()
    %cst_179 = arith.constant dense<0.000000e+00> : vector<4x8x8xf32>
    %266 = tpu.matmul %265, %250, %cst_179 {dimension_numbers = #tpu.dot_dimension_numbers<[2], [1], [1], [2], [0, 0, 0, 1, 1, 2], [0], [0]>} : vector<4x8x8xbf16>, vector<4x8x8xbf16>, vector<4x8x8xf32> -> vector<4x8x8xf32>
    "tpu.trace_stop"() : () -> ()
    %267 = arith.truncf %266 : vector<4x8x8xf32> to vector<4x8x8xbf16>
    "tpu.trace_start"() <{level = 10 : i32, message = "hsd,hdo->hso"}> : () -> ()
    %cst_180 = arith.constant dense<0.000000e+00> : vector<4x8x32xf32>
    %268 = tpu.matmul %267, %10, %cst_180 {dimension_numbers = #tpu.dot_dimension_numbers<[2], [1], [1], [2], [0, 0, 0, 1, 1, 2], [0], [0]>} : vector<4x8x8xbf16>, vector<4x8x32xbf16>, vector<4x8x32xf32> -> vector<4x8x32xf32>
    "tpu.trace_stop"() : () -> ()
    %cst_181 = arith.constant dense<0.000000e+00> : vector<8x32xf32>
    %269 = vector.multi_reduction <add>, %268, %cst_181 [0] : vector<4x8x32xf32> to vector<8x32xf32>
    %270 = vector.broadcast %22 : vector<1x32xf32> to vector<8x32xf32>
    %271 = arith.addf %269, %270 : vector<8x32xf32>
    %272 = arith.addf %186, %271 : vector<8x32xf32>
    %cst_182 = arith.constant dense<0.000000e+00> : vector<8xf32>
    %273 = vector.multi_reduction <add>, %272, %cst_182 [1] : vector<8x32xf32> to vector<8xf32>
    %274 = vector.shape_cast %273 : vector<8xf32> to vector<8x1xf32>
    %cst_183 = arith.constant 3.200000e+01 : f32
    %275 = vector.broadcast %cst_183 : f32 to vector<8x1xf32>
    %276 = arith.divf %274, %275 : vector<8x1xf32>
    %277 = vector.broadcast %276 : vector<8x1xf32> to vector<8x32xf32>
    %278 = arith.subf %272, %277 : vector<8x32xf32>
    %279 = arith.mulf %278, %278 : vector<8x32xf32>
    %cst_184 = arith.constant dense<0.000000e+00> : vector<8xf32>
    %280 = vector.multi_reduction <add>, %279, %cst_184 [1] : vector<8x32xf32> to vector<8xf32>
    %281 = vector.shape_cast %280 : vector<8xf32> to vector<8x1xf32>
    %cst_185 = arith.constant 3.200000e+01 : f32
    %282 = vector.broadcast %cst_185 : f32 to vector<8x1xf32>
    %283 = arith.divf %281, %282 : vector<8x1xf32>
    %cst_186 = arith.constant 9.99999974E-6 : f32
    %284 = vector.broadcast %cst_186 : f32 to vector<8x1xf32>
    %285 = arith.addf %283, %284 : vector<8x1xf32>
    %286 = math.rsqrt %285 : vector<8x1xf32>
    %287 = vector.broadcast %286 : vector<8x1xf32> to vector<8x32xf32>
    %288 = arith.mulf %278, %287 : vector<8x32xf32>
    %289 = vector.broadcast %28 : vector<1x32xf32> to vector<8x32xf32>
    %290 = arith.mulf %288, %289 : vector<8x32xf32>
    %291 = vector.broadcast %30 : vector<1x32xf32> to vector<8x32xf32>
    %292 = arith.addf %290, %291 : vector<8x32xf32>
    %293 = arith.truncf %292 : vector<8x32xf32> to vector<8x32xbf16>
    %cst_187 = arith.constant dense<0.000000e+00> : vector<8x64xf32>
    %294 = tpu.matmul %293, %12, %cst_187 {dimension_numbers = #tpu.dot_dimension_numbers<[1], [0], [0], [1], [0, 0, 1, 1], [], []>} : vector<8x32xbf16>, vector<32x64xbf16>, vector<8x64xf32> -> vector<8x64xf32>
    %295 = vector.broadcast %24 : vector<1x64xf32> to vector<8x64xf32>
    %296 = arith.addf %294, %295 : vector<8x64xf32>
    %cst_188 = arith.constant 0.000000e+00 : f32
    %297 = vector.broadcast %cst_188 : f32 to vector<8x64xf32>
    %298 = arith.maximumf %296, %297 : vector<8x64xf32>
    %299 = arith.truncf %298 : vector<8x64xf32> to vector<8x64xbf16>
    %cst_189 = arith.constant dense<0.000000e+00> : vector<8x32xf32>
    %300 = tpu.matmul %299, %14, %cst_189 {dimension_numbers = #tpu.dot_dimension_numbers<[1], [0], [0], [1], [0, 0, 1, 1], [], []>} : vector<8x64xbf16>, vector<64x32xbf16>, vector<8x32xf32> -> vector<8x32xf32>
    %301 = vector.broadcast %26 : vector<1x32xf32> to vector<8x32xf32>
    %302 = arith.addf %300, %301 : vector<8x32xf32>
    %cst_190 = arith.constant 0.000000e+00 : f32
    %303 = vector.broadcast %cst_190 : f32 to vector<8x32xf32>
    %304 = arith.maximumf %302, %303 : vector<8x32xf32>
    %305 = arith.addf %292, %304 : vector<8x32xf32>
    %cst_191 = arith.constant dense<0.000000e+00> : vector<8xf32>
    %306 = vector.multi_reduction <add>, %305, %cst_191 [1] : vector<8x32xf32> to vector<8xf32>
    %307 = vector.shape_cast %306 : vector<8xf32> to vector<8x1xf32>
    %cst_192 = arith.constant 3.200000e+01 : f32
    %308 = vector.broadcast %cst_192 : f32 to vector<8x1xf32>
    %309 = arith.divf %307, %308 : vector<8x1xf32>
    %310 = vector.broadcast %309 : vector<8x1xf32> to vector<8x32xf32>
    %311 = arith.subf %305, %310 : vector<8x32xf32>
    %312 = arith.mulf %311, %311 : vector<8x32xf32>
    %cst_193 = arith.constant dense<0.000000e+00> : vector<8xf32>
    %313 = vector.multi_reduction <add>, %312, %cst_193 [1] : vector<8x32xf32> to vector<8xf32>
    %314 = vector.shape_cast %313 : vector<8xf32> to vector<8x1xf32>
    %cst_194 = arith.constant 3.200000e+01 : f32
    %315 = vector.broadcast %cst_194 : f32 to vector<8x1xf32>
    %316 = arith.divf %314, %315 : vector<8x1xf32>
    %cst_195 = arith.constant 9.99999974E-6 : f32
    %317 = vector.broadcast %cst_195 : f32 to vector<8x1xf32>
    %318 = arith.addf %316, %317 : vector<8x1xf32>
    %319 = math.rsqrt %318 : vector<8x1xf32>
    %320 = vector.broadcast %319 : vector<8x1xf32> to vector<8x32xf32>
    %321 = arith.mulf %311, %320 : vector<8x32xf32>
    %322 = vector.broadcast %32 : vector<1x32xf32> to vector<8x32xf32>
    %323 = arith.mulf %321, %322 : vector<8x32xf32>
    %324 = vector.broadcast %34 : vector<1x32xf32> to vector<8x32xf32>
    %325 = arith.addf %323, %324 : vector<8x32xf32>
    %c1_196 = arith.constant 1 : index
    %c0_197 = arith.constant 0 : index
    %c0_198 = arith.constant 0 : index
    %326 = vector.load %arg20[%c1_196, %c0_197, %c0_198] : memref<2x8x32xf32, #tpu.memory_space<vmem>>, vector<1x8x32xf32>
    %327 = vector.shape_cast %326 : vector<1x8x32xf32> to vector<8x32xf32>
    %328 = vector.shape_cast %325 : vector<8x32xf32> to vector<1x8x32xf32>
    tpu.vector_store %arg20[%c1_196, %c0_197, %c0_198], %328 {strides = array<i32>} : memref<2x8x32xf32, #tpu.memory_space<vmem>>, vector<1x8x32xf32>,
    %c1_i32 = arith.constant 1 : i32
    %329 = arith.cmpi eq, %arg0, %c1_i32 : i32
    %330 = arith.extui %329 : i1 to i32
    %c0_i32_199 = arith.constant 0 : i32
    %331 = arith.cmpi ne, %330, %c0_i32_199 : i32
    scf.if %331 {
      %c0_200 = arith.constant 0 : index
      %c0_201 = arith.constant 0 : index
      %c0_202 = arith.constant 0 : index
      %332 = vector.load %arg20[%c0_200, %c0_201, %c0_202] : memref<2x8x32xf32, #tpu.memory_space<vmem>>, vector<2x8x32xf32>
      %c0_203 = arith.constant 0 : index
      %c0_204 = arith.constant 0 : index
      %c0_205 = arith.constant 0 : index
      %333 = vector.load %arg19[%c0_203, %c0_204, %c0_205] : memref<2x8x32xf32, #tpu.memory_space<vmem>>, vector<2x8x32xf32>
      tpu.vector_store %arg19[%c0_203, %c0_204, %c0_205], %332 {strides = array<i32>} : memref<2x8x32xf32, #tpu.memory_space<vmem>>, vector<2x8x32xf32>,
    } else {
    }
    return
  }
  func.func @transform_0(%arg0: i32) -> (i32, i32, i32) {
    %c0_i32 = arith.constant 0 : i32
    %c0_i32_0 = arith.constant 0 : i32
    %c0_i32_1 = arith.constant 0 : i32
    %c0_i32_2 = arith.constant 0 : i32
    return %c0_i32, %c0_i32_0, %c0_i32_1 : i32, i32, i32
  }
  func.func @transform_1(%arg0: i32) -> (i32, i32, i32) {
    %c0_i32 = arith.constant 0 : i32
    %c0_i32_0 = arith.constant 0 : i32
    %c0_i32_1 = arith.constant 0 : i32
    %c0_i32_2 = arith.constant 0 : i32
    return %c0_i32, %c0_i32_0, %c0_i32_1 : i32, i32, i32
  }
  func.func @transform_2(%arg0: i32) -> (i32, i32, i32) {
    %c0_i32 = arith.constant 0 : i32
    %c0_i32_0 = arith.constant 0 : i32
    %c0_i32_1 = arith.constant 0 : i32
    return %arg0, %c0_i32, %c0_i32_0 : i32, i32, i32
  }
  func.func @transform_3(%arg0: i32) -> (i32, i32, i32) {
    %c0_i32 = arith.constant 0 : i32
    %c0_i32_0 = arith.constant 0 : i32
    %c0_i32_1 = arith.constant 0 : i32
    return %arg0, %c0_i32, %c0_i32_0 : i32, i32, i32
  }
  func.func @transform_4(%arg0: i32) -> (i32, i32, i32) {
    %c0_i32 = arith.constant 0 : i32
    %c0_i32_0 = arith.constant 0 : i32
    %c0_i32_1 = arith.constant 0 : i32
    return %arg0, %c0_i32, %c0_i32_0 : i32, i32, i32
  }
  func.func @transform_5(%arg0: i32) -> (i32, i32, i32) {
    %c0_i32 = arith.constant 0 : i32
    %c0_i32_0 = arith.constant 0 : i32
    %c0_i32_1 = arith.constant 0 : i32
    return %arg0, %c0_i32, %c0_i32_0 : i32, i32, i32
  }
  func.func @transform_6(%arg0: i32) -> (i32, i32, i32) {
    %c0_i32 = arith.constant 0 : i32
    %c0_i32_0 = arith.constant 0 : i32
    %c0_i32_1 = arith.constant 0 : i32
    return %arg0, %c0_i32, %c0_i32_0 : i32, i32, i32
  }
  func.func @transform_7(%arg0: i32) -> (i32, i32, i32) {
    %c0_i32 = arith.constant 0 : i32
    %c0_i32_0 = arith.constant 0 : i32
    %c0_i32_1 = arith.constant 0 : i32
    return %arg0, %c0_i32, %c0_i32_0 : i32, i32, i32
  }
  func.func @transform_8(%arg0: i32) -> (i32, i32, i32, i32) {
    %c0_i32 = arith.constant 0 : i32
    %c0_i32_0 = arith.constant 0 : i32
    %c0_i32_1 = arith.constant 0 : i32
    %c0_i32_2 = arith.constant 0 : i32
    return %arg0, %c0_i32, %c0_i32_0, %c0_i32_1 : i32, i32, i32, i32
  }
  func.func @transform_9(%arg0: i32) -> (i32, i32, i32) {
    %c0_i32 = arith.constant 0 : i32
    %c0_i32_0 = arith.constant 0 : i32
    %c0_i32_1 = arith.constant 0 : i32
    return %arg0, %c0_i32, %c0_i32_0 : i32, i32, i32
  }
  func.func @transform_10(%arg0: i32) -> (i32, i32, i32) {
    %c0_i32 = arith.constant 0 : i32
    %c0_i32_0 = arith.constant 0 : i32
    %c0_i32_1 = arith.constant 0 : i32
    return %arg0, %c0_i32, %c0_i32_0 : i32, i32, i32
  }
  func.func @transform_11(%arg0: i32) -> (i32, i32, i32) {
    %c0_i32 = arith.constant 0 : i32
    %c0_i32_0 = arith.constant 0 : i32
    %c0_i32_1 = arith.constant 0 : i32
    return %arg0, %c0_i32, %c0_i32_0 : i32, i32, i32
  }
  func.func @transform_12(%arg0: i32) -> (i32, i32, i32) {
    %c0_i32 = arith.constant 0 : i32
    %c0_i32_0 = arith.constant 0 : i32
    %c0_i32_1 = arith.constant 0 : i32
    return %arg0, %c0_i32, %c0_i32_0 : i32, i32, i32
  }
  func.func @transform_13(%arg0: i32) -> (i32, i32, i32) {
    %c0_i32 = arith.constant 0 : i32
    %c0_i32_0 = arith.constant 0 : i32
    %c0_i32_1 = arith.constant 0 : i32
    return %arg0, %c0_i32, %c0_i32_0 : i32, i32, i32
  }
  func.func @transform_14(%arg0: i32) -> (i32, i32, i32) {
    %c0_i32 = arith.constant 0 : i32
    %c0_i32_0 = arith.constant 0 : i32
    %c0_i32_1 = arith.constant 0 : i32
    return %arg0, %c0_i32, %c0_i32_0 : i32, i32, i32
  }
  func.func @transform_15(%arg0: i32) -> (i32, i32, i32) {
    %c0_i32 = arith.constant 0 : i32
    %c0_i32_0 = arith.constant 0 : i32
    %c0_i32_1 = arith.constant 0 : i32
    return %arg0, %c0_i32, %c0_i32_0 : i32, i32, i32
  }
  func.func @transform_16(%arg0: i32) -> (i32, i32, i32) {
    %c0_i32 = arith.constant 0 : i32
    %c0_i32_0 = arith.constant 0 : i32
    %c0_i32_1 = arith.constant 0 : i32
    return %arg0, %c0_i32, %c0_i32_0 : i32, i32, i32
  }
  func.func @transform_17(%arg0: i32) -> (i32, i32, i32) {
    %c0_i32 = arith.constant 0 : i32
    %c0_i32_0 = arith.constant 0 : i32
    %c0_i32_1 = arith.constant 0 : i32
    return %arg0, %c0_i32, %c0_i32_0 : i32, i32, i32
  }
  func.func @transform_18(%arg0: i32) -> (i32, i32, i32) {
    %c0_i32 = arith.constant 0 : i32
    %c0_i32_0 = arith.constant 0 : i32
    %c0_i32_1 = arith.constant 0 : i32
    %c0_i32_2 = arith.constant 0 : i32
    return %c0_i32, %c0_i32_0, %c0_i32_1 : i32, i32, i32
  }
}

</mosaic_0001>

<llo_original>
// kernel: tpu_custom_call.1
$region0: #{tpu_custom_call.1}
  #allocation0 [shape = 'u32[]', space=smem, size = 0x4, offset = 0x4, fixed_abs, tag = 'smem constant byte address 0x4 - core index']
  #allocation1 [shape = 'u32[144,128]{1,0:T(1,128)}', space=vmem, size = 0x12000, scoped, tag = 'internal scratch']
  #allocation2 [shape = 'f32[2,8,32]{2,1,0:T(8,128)}', space=vmem, size = 0x2000, scoped, tag = 'scratch operand']
  #allocation3 [shape = 'f32[4,8,8]{2,1,0:T(8,128)}', space=vmem, size = 0x4000, scoped, tag = 'scratch operand']
  #allocation4 [shape = 'f32[4,8,8]{2,1,0:T(8,128)}', space=vmem, size = 0x4000, scoped, tag = 'scratch operand']
  #allocation5 [shape = 'f32[4,8,8]{2,1,0:T(8,128)}', space=vmem, size = 0x4000, scoped, tag = 'scratch operand']
  %s0 = inlined_call_operand.hbm [shape: f32[2,8,32], index: 0, kind: input, shape index: {}]
  %s1 = inlined_call_operand.hbm [shape: f32[2,1,8], index: 1, kind: input, shape index: {}]
  %s2 = inlined_call_operand.vmem [shape: bf16[2,32,32], index: 2, kind: input, shape index: {}]
  %s3 = inlined_call_operand.vmem [shape: f32[2,1,32], index: 3, kind: input, shape index: {}]
  %s4 = inlined_call_operand.vmem [shape: bf16[2,32,32], index: 4, kind: input, shape index: {}]
  %s5 = inlined_call_operand.vmem [shape: f32[2,1,32], index: 5, kind: input, shape index: {}]
  %s6 = inlined_call_operand.vmem [shape: bf16[2,32,32], index: 6, kind: input, shape index: {}]
  %s7 = inlined_call_operand.vmem [shape: f32[2,1,32], index: 7, kind: input, shape index: {}]
  %s8 = inlined_call_operand.hbm [shape: bf16[2,4,8,32], index: 8, kind: input, shape index: {}]
  %s9 = inlined_call_operand.vmem [shape: f32[2,1,32], index: 9, kind: input, shape index: {}]
  %s10 = inlined_call_operand.vmem [shape: f32[2,1,32], index: 10, kind: input, shape index: {}]
  %s11 = inlined_call_operand.vmem [shape: f32[2,1,32], index: 11, kind: input, shape index: {}]
  %s12 = inlined_call_operand.hbm [shape: bf16[2,32,64], index: 12, kind: input, shape index: {}]
  %s13 = inlined_call_operand.vmem [shape: f32[2,1,64], index: 13, kind: input, shape index: {}]
  %s14 = inlined_call_operand.vmem [shape: bf16[2,64,32], index: 14, kind: input, shape index: {}]
  %s15 = inlined_call_operand.vmem [shape: f32[2,1,32], index: 15, kind: input, shape index: {}]
  %s16 = inlined_call_operand.vmem [shape: f32[2,1,32], index: 16, kind: input, shape index: {}]
  %s17 = inlined_call_operand.vmem [shape: f32[2,1,32], index: 17, kind: input, shape index: {}]
  %s18 = inlined_call_operand.hbm [shape: f32[2,8,32], index: 18, kind: output, shape index: {}]
  %s19 = sld [smem:[#allocation0]]
  $region129: #{tpu_custom_call.1} parent=0
    _
  %s21 = ssub.s32 1, %s19
  %s22 = scalar_select 0, %s21, %s19
  $region1: #{tpu_custom_call.1} parent=0
    #allocation6 [shape = 'u8[8192]{0}', space=vmem, size = 0x2000, scoped, tag = 'input window, operand 0, single buffered']
    #allocation7 [shape = 's32[2]{0}', space=sflag, size = 0x8, scoped, tag = 'scoped memory for tpu_custom_call.1']
    #allocation8 [shape = 's32[2]{0}', space=sflag, size = 0x8, scoped, tag = 'scoped memory for tpu_custom_call.1']
    #allocation9 [shape = 'u8[1024]{0}', space=vmem, size = 0x400, scoped, tag = 'input window, operand 1, single buffered']
    #allocation10 [shape = 's32[1]{0}', space=sflag, size = 0x4, scoped, tag = 'scoped memory for tpu_custom_call.1']
    #allocation11 [shape = 'u8[16384]{0}', space=vmem, size = 0x4000, scoped, tag = 'input window, operand 8']
    #allocation12 [shape = 'u8[16384]{0}', space=vmem, size = 0x4000, scoped, tag = 'input window, operand 12']
    #allocation13 [shape = 'u8[8192]{0}', space=vmem, size = 0x2000, scoped, tag = 'output window, operand 0, single buffered']
    %23 = vsyncpa [#allocation7], 0
    %24 = vsyncpa [#allocation10], 0
    %25 = vsyncpa [#allocation8], 0
    loop: start=0, step=1, limit=4
    $region2: #{tpu_custom_call.1} parent=1 // loop_pre_header
      _
    $region3: #{tpu_custom_call.1} parent=1 // loop_header
      %s27 = sphi 0, %s31
      %p28 = scmp.ge.s32.totalorder %s27, 4
      %s35 = sphi 0, %s35
      %s37 = sphi 0, %s35
      %s38 = sphi 0, %s37
      %s52 = sphi 0, %s38
      %s56 = sphi 0, %s56
      %s58 = sphi 0, %s56
      %s59 = sphi 0, %s58
      %s73 = sphi 0, %s59
      %s79 = sphi 0, %s81
      %s82 = sphi 0, %s79
      %s83 = sphi 0, %s82
      %s99 = sphi 0, %s83
      %s105 = sphi 0, %s107
      %s108 = sphi 0, %s105
      %s109 = sphi 0, %s108
      %s125 = sphi 0, %s109
      %s131 = sphi 0, %s133
      %s134 = sphi 0, %s131
      %s135 = sphi 0, %s134
      %s151 = sphi 0, %s135
      %s157 = sphi 0, %s159
      %s160 = sphi 0, %s157
      %s161 = sphi 0, %s160
      %s177 = sphi 0, %s161
      %s183 = sphi 0, %s185
      %s186 = sphi 0, %s183
      %s187 = sphi 0, %s186
      %s203 = sphi 0, %s187
      %s209 = sphi 0, %s211
      %s212 = sphi 0, %s209
      %s213 = sphi 0, %s212
      %s229 = sphi 0, %s213
      %s235 = sphi 0, %s237
      %s238 = sphi 0, %s235
      %s239 = sphi 0, %s238
      %s255 = sphi 0, %s239
      %s261 = sphi 0, %s263
      %s264 = sphi 0, %s261
      %s265 = sphi 0, %s264
      %s281 = sphi 0, %s265
      %s287 = sphi 0, %s289
      %s290 = sphi 0, %s287
      %s291 = sphi 0, %s290
      %s307 = sphi 0, %s291
      %s313 = sphi 0, %s315
      %s316 = sphi 0, %s313
      %s317 = sphi 0, %s316
      %s333 = sphi 0, %s317
      %s339 = sphi 0, %s341
      %s342 = sphi 0, %s339
      %s343 = sphi 0, %s342
      %s359 = sphi 0, %s343
      %s365 = sphi 0, %s367
      %s368 = sphi 0, %s365
      %s369 = sphi 0, %s368
      %s385 = sphi 0, %s369
      %s391 = sphi 0, %s393
      %s394 = sphi 0, %s391
      %s395 = sphi 0, %s394
      %s411 = sphi 0, %s395
      %s417 = sphi 0, %s419
      %s420 = sphi 0, %s417
      %s421 = sphi 0, %s420
      %s437 = sphi 0, %s421
      %s443 = sphi 0, %s445
      %s446 = sphi 0, %s443
      %s447 = sphi 0, %s446
      %s463 = sphi 0, %s447
      %s469 = sphi 0, %s471
      %s472 = sphi 0, %s469
      %s473 = sphi 0, %s472
      %s489 = sphi 0, %s473
      %s493 = sphi 0, %s493
      %s495 = sphi 0, %s493
      %s496 = sphi 0, %s495
      %s510 = sphi 0, %s496
    $region4: #{tpu_custom_call.1} parent=1 // loop_header_branch
      %30 = sbr.rel (%p28) target = $region8
    $region5: #{tpu_custom_call.1} parent=1 // loop_body
      %s32 = ssub.s32 %s27, 1
      %s33 = ssub.s32 %s27, 2
      %s34 = sadd.s32 %s27, 1
      %s36 = sadd.s32 %s35, 1
      %p39 = scmp.eq.s32.totalorder %s27, 1
      %p40 = scmp.ne.s32.totalorder %s35, %s37
      %p41 = scmp.eq.s32.totalorder %s27, 0
      %p42 = por %p40, %p41
      %p43 = scmp.ne.s32.totalorder %s35, %s37
      %p44 = scmp.eq.s32.totalorder %s32, 1
      %p45 = por %p43, %p44
      %p46 = scmp.ne.s32.totalorder %s37, %s38
      %p47 = scmp.eq.s32.totalorder %s32, 0
      %p48 = por %p46, %p47
      %p49 = scmp.ne.s32.totalorder %s37, %s38
      %p50 = scmp.eq.s32.totalorder %s33, 1
      %p51 = por %p49, %p50
      %p53 = scmp.ne.s32.totalorder %s38, %s52
      %p54 = scmp.eq.s32.totalorder %s33, 0
      %p55 = por %p53, %p54
      %s57 = sadd.s32 %s56, 1
      %p60 = scmp.eq.s32.totalorder %s27, 1
      %p61 = scmp.ne.s32.totalorder %s56, %s58
      %p62 = scmp.eq.s32.totalorder %s27, 0
      %p63 = por %p61, %p62
      %p64 = scmp.ne.s32.totalorder %s56, %s58
      %p65 = scmp.eq.s32.totalorder %s32, 1
      %p66 = por %p64, %p65
      %p67 = scmp.ne.s32.totalorder %s58, %s59
      %p68 = scmp.eq.s32.totalorder %s32, 0
      %p69 = por %p67, %p68
      %p70 = scmp.ne.s32.totalorder %s58, %s59
      %p71 = scmp.eq.s32.totalorder %s33, 1
      %p72 = por %p70, %p71
      %p74 = scmp.ne.s32.totalorder %s59, %s73
      %p75 = scmp.eq.s32.totalorder %s33, 0
      %p76 = por %p74, %p75
      %s77 = ssub.s32 %s27, %s34
      %p78 = scmp.eq.s32.totalorder %s77, 0
      %s80 = sadd.s32 %s79, 1
      %s81 = scalar_select %p78, %s79, %s80
      %p84 = pneg %p78
      %p85 = scmp.eq.s32.totalorder %s27, 1
      %p86 = por %p84, %p85
      %p87 = scmp.ne.s32.totalorder %s79, %s82
      %p88 = scmp.eq.s32.totalorder %s27, 0
      %p89 = por %p87, %p88
      %p90 = scmp.ne.s32.totalorder %s79, %s82
      %p91 = scmp.eq.s32.totalorder %s32, 1
      %p92 = por %p90, %p91
      %p93 = scmp.ne.s32.totalorder %s82, %s83
      %p94 = scmp.eq.s32.totalorder %s32, 0
      %p95 = por %p93, %p94
      %p96 = scmp.ne.s32.totalorder %s82, %s83
      %p97 = scmp.eq.s32.totalorder %s33, 1
      %p98 = por %p96, %p97
      %p100 = scmp.ne.s32.totalorder %s83, %s99
      %p101 = scmp.eq.s32.totalorder %s33, 0
      %p102 = por %p100, %p101
      %s103 = ssub.s32 %s27, %s34
      %p104 = scmp.eq.s32.totalorder %s103, 0
      %s106 = sadd.s32 %s105, 1
      %s107 = scalar_select %p104, %s105, %s106
      %p110 = pneg %p104
      %p111 = scmp.eq.s32.totalorder %s27, 1
      %p112 = por %p110, %p111
      %p113 = scmp.ne.s32.totalorder %s105, %s108
      %p114 = scmp.eq.s32.totalorder %s27, 0
      %p115 = por %p113, %p114
      %p116 = scmp.ne.s32.totalorder %s105, %s108
      %p117 = scmp.eq.s32.totalorder %s32, 1
      %p118 = por %p116, %p117
      %p119 = scmp.ne.s32.totalorder %s108, %s109
      %p120 = scmp.eq.s32.totalorder %s32, 0
      %p121 = por %p119, %p120
      %p122 = scmp.ne.s32.totalorder %s108, %s109
      %p123 = scmp.eq.s32.totalorder %s33, 1
      %p124 = por %p122, %p123
      %p126 = scmp.ne.s32.totalorder %s109, %s125
      %p127 = scmp.eq.s32.totalorder %s33, 0
      %p128 = por %p126, %p127
      %s129 = ssub.s32 %s27, %s34
      %p130 = scmp.eq.s32.totalorder %s129, 0
      %s132 = sadd.s32 %s131, 1
      %s133 = scalar_select %p130, %s131, %s132
      %p136 = pneg %p130
      %p137 = scmp.eq.s32.totalorder %s27, 1
      %p138 = por %p136, %p137
      %p139 = scmp.ne.s32.totalorder %s131, %s134
      %p140 = scmp.eq.s32.totalorder %s27, 0
      %p141 = por %p139, %p140
      %p142 = scmp.ne.s32.totalorder %s131, %s134
      %p143 = scmp.eq.s32.totalorder %s32, 1
      %p144 = por %p142, %p143
      %p145 = scmp.ne.s32.totalorder %s134, %s135
      %p146 = scmp.eq.s32.totalorder %s32, 0
      %p147 = por %p145, %p146
      %p148 = scmp.ne.s32.totalorder %s134, %s135
      %p149 = scmp.eq.s32.totalorder %s33, 1
      %p150 = por %p148, %p149
      %p152 = scmp.ne.s32.totalorder %s135, %s151
      %p153 = scmp.eq.s32.totalorder %s33, 0
      %p154 = por %p152, %p153
      %s155 = ssub.s32 %s27, %s34
      %p156 = scmp.eq.s32.totalorder %s155, 0
      %s158 = sadd.s32 %s157, 1
      %s159 = scalar_select %p156, %s157, %s158
      %p162 = pneg %p156
      %p163 = scmp.eq.s32.totalorder %s27, 1
      %p164 = por %p162, %p163
      %p165 = scmp.ne.s32.totalorder %s157, %s160
      %p166 = scmp.eq.s32.totalorder %s27, 0
      %p167 = por %p165, %p166
      %p168 = scmp.ne.s32.totalorder %s157, %s160
      %p169 = scmp.eq.s32.totalorder %s32, 1
      %p170 = por %p168, %p169
      %p171 = scmp.ne.s32.totalorder %s160, %s161
      %p172 = scmp.eq.s32.totalorder %s32, 0
      %p173 = por %p171, %p172
      %p174 = scmp.ne.s32.totalorder %s160, %s161
      %p175 = scmp.eq.s32.totalorder %s33, 1
      %p176 = por %p174, %p175
      %p178 = scmp.ne.s32.totalorder %s161, %s177
      %p179 = scmp.eq.s32.totalorder %s33, 0
      %p180 = por %p178, %p179
      %s181 = ssub.s32 %s27, %s34
      %p182 = scmp.eq.s32.totalorder %s181, 0
      %s184 = sadd.s32 %s183, 1
      %s185 = scalar_select %p182, %s183, %s184
      %p188 = pneg %p182
      %p189 = scmp.eq.s32.totalorder %s27, 1
      %p190 = por %p188, %p189
      %p191 = scmp.ne.s32.totalorder %s183, %s186
      %p192 = scmp.eq.s32.totalorder %s27, 0
      %p193 = por %p191, %p192
      %p194 = scmp.ne.s32.totalorder %s183, %s186
      %p195 = scmp.eq.s32.totalorder %s32, 1
      %p196 = por %p194, %p195
      %p197 = scmp.ne.s32.totalorder %s186, %s187
      %p198 = scmp.eq.s32.totalorder %s32, 0
      %p199 = por %p197, %p198
      %p200 = scmp.ne.s32.totalorder %s186, %s187
      %p201 = scmp.eq.s32.totalorder %s33, 1
      %p202 = por %p200, %p201
      %p204 = scmp.ne.s32.totalorder %s187, %s203
      %p205 = scmp.eq.s32.totalorder %s33, 0
      %p206 = por %p204, %p205
      %s207 = ssub.s32 %s27, %s34
      %p208 = scmp.eq.s32.totalorder %s207, 0
      %s210 = sadd.s32 %s209, 1
      %s211 = scalar_select %p208, %s209, %s210
      %p214 = pneg %p208
      %p215 = scmp.eq.s32.totalorder %s27, 1
      %p216 = por %p214, %p215
      %p217 = scmp.ne.s32.totalorder %s209, %s212
      %p218 = scmp.eq.s32.totalorder %s27, 0
      %p219 = por %p217, %p218
      %p220 = scmp.ne.s32.totalorder %s209, %s212
      %p221 = scmp.eq.s32.totalorder %s32, 1
      %p222 = por %p220, %p221
      %p223 = scmp.ne.s32.totalorder %s212, %s213
      %p224 = scmp.eq.s32.totalorder %s32, 0
      %p225 = por %p223, %p224
      %p226 = scmp.ne.s32.totalorder %s212, %s213
      %p227 = scmp.eq.s32.totalorder %s33, 1
      %p228 = por %p226, %p227
      %p230 = scmp.ne.s32.totalorder %s213, %s229
      %p231 = scmp.eq.s32.totalorder %s33, 0
      %p232 = por %p230, %p231
      %s233 = ssub.s32 %s27, %s34
      %p234 = scmp.eq.s32.totalorder %s233, 0
      %s236 = sadd.s32 %s235, 1
      %s237 = scalar_select %p234, %s235, %s236
      %p240 = pneg %p234
      %p241 = scmp.eq.s32.totalorder %s27, 1
      %p242 = por %p240, %p241
      %p243 = scmp.ne.s32.totalorder %s235, %s238
      %p244 = scmp.eq.s32.totalorder %s27, 0
      %p245 = por %p243, %p244
      %p246 = scmp.ne.s32.totalorder %s235, %s238
      %p247 = scmp.eq.s32.totalorder %s32, 1
      %p248 = por %p246, %p247
      %p249 = scmp.ne.s32.totalorder %s238, %s239
      %p250 = scmp.eq.s32.totalorder %s32, 0
      %p251 = por %p249, %p250
      %p252 = scmp.ne.s32.totalorder %s238, %s239
      %p253 = scmp.eq.s32.totalorder %s33, 1
      %p254 = por %p252, %p253
      %p256 = scmp.ne.s32.totalorder %s239, %s255
      %p257 = scmp.eq.s32.totalorder %s33, 0
      %p258 = por %p256, %p257
      %s259 = ssub.s32 %s27, %s34
      %p260 = scmp.eq.s32.totalorder %s259, 0
      %s262 = sadd.s32 %s261, 1
      %s263 = scalar_select %p260, %s261, %s262
      %p266 = pneg %p260
      %p267 = scmp.eq.s32.totalorder %s27, 1
      %p268 = por %p266, %p267
      %p269 = scmp.ne.s32.totalorder %s261, %s264
      %p270 = scmp.eq.s32.totalorder %s27, 0
      %p271 = por %p269, %p270
      %p272 = scmp.ne.s32.totalorder %s261, %s264
      %p273 = scmp.eq.s32.totalorder %s32, 1
      %p274 = por %p272, %p273
      %p275 = scmp.ne.s32.totalorder %s264, %s265
      %p276 = scmp.eq.s32.totalorder %s32, 0
      %p277 = por %p275, %p276
      %p278 = scmp.ne.s32.totalorder %s264, %s265
      %p279 = scmp.eq.s32.totalorder %s33, 1
      %p280 = por %p278, %p279
      %p282 = scmp.ne.s32.totalorder %s265, %s281
      %p283 = scmp.eq.s32.totalorder %s33, 0
      %p284 = por %p282, %p283
      %s285 = ssub.s32 %s27, %s34
      %p286 = scmp.eq.s32.totalorder %s285, 0
      %s288 = sadd.s32 %s287, 1
      %s289 = scalar_select %p286, %s287, %s288
      %p292 = pneg %p286
      %p293 = scmp.eq.s32.totalorder %s27, 1
      %p294 = por %p292, %p293
      %p295 = scmp.ne.s32.totalorder %s287, %s290
      %p296 = scmp.eq.s32.totalorder %s27, 0
      %p297 = por %p295, %p296
      %p298 = scmp.ne.s32.totalorder %s287, %s290
      %p299 = scmp.eq.s32.totalorder %s32, 1
      %p300 = por %p298, %p299
      %p301 = scmp.ne.s32.totalorder %s290, %s291
      %p302 = scmp.eq.s32.totalorder %s32, 0
      %p303 = por %p301, %p302
      %p304 = scmp.ne.s32.totalorder %s290, %s291
      %p305 = scmp.eq.s32.totalorder %s33, 1
      %p306 = por %p304, %p305
      %p308 = scmp.ne.s32.totalorder %s291, %s307
      %p309 = scmp.eq.s32.totalorder %s33, 0
      %p310 = por %p308, %p309
      %s311 = ssub.s32 %s27, %s34
      %p312 = scmp.eq.s32.totalorder %s311, 0
      %s314 = sadd.s32 %s313, 1
      %s315 = scalar_select %p312, %s313, %s314
      %p318 = pneg %p312
      %p319 = scmp.eq.s32.totalorder %s27, 1
      %p320 = por %p318, %p319
      %p321 = scmp.ne.s32.totalorder %s313, %s316
      %p322 = scmp.eq.s32.totalorder %s27, 0
      %p323 = por %p321, %p322
      %p324 = scmp.ne.s32.totalorder %s313, %s316
      %p325 = scmp.eq.s32.totalorder %s32, 1
      %p326 = por %p324, %p325
      %p327 = scmp.ne.s32.totalorder %s316, %s317
      %p328 = scmp.eq.s32.totalorder %s32, 0
      %p329 = por %p327, %p328
      %p330 = scmp.ne.s32.totalorder %s316, %s317
      %p331 = scmp.eq.s32.totalorder %s33, 1
      %p332 = por %p330, %p331
      %p334 = scmp.ne.s32.totalorder %s317, %s333
      %p335 = scmp.eq.s32.totalorder %s33, 0
      %p336 = por %p334, %p335
      %s337 = ssub.s32 %s27, %s34
      %p338 = scmp.eq.s32.totalorder %s337, 0
      %s340 = sadd.s32 %s339, 1
      %s341 = scalar_select %p338, %s339, %s340
      %p344 = pneg %p338
      %p345 = scmp.eq.s32.totalorder %s27, 1
      %p346 = por %p344, %p345
      %p347 = scmp.ne.s32.totalorder %s339, %s342
      %p348 = scmp.eq.s32.totalorder %s27, 0
      %p349 = por %p347, %p348
      %p350 = scmp.ne.s32.totalorder %s339, %s342
      %p351 = scmp.eq.s32.totalorder %s32, 1
      %p352 = por %p350, %p351
      %p353 = scmp.ne.s32.totalorder %s342, %s343
      %p354 = scmp.eq.s32.totalorder %s32, 0
      %p355 = por %p353, %p354
      %p356 = scmp.ne.s32.totalorder %s342, %s343
      %p357 = scmp.eq.s32.totalorder %s33, 1
      %p358 = por %p356, %p357
      %p360 = scmp.ne.s32.totalorder %s343, %s359
      %p361 = scmp.eq.s32.totalorder %s33, 0
      %p362 = por %p360, %p361
      %s363 = ssub.s32 %s27, %s34
      %p364 = scmp.eq.s32.totalorder %s363, 0
      %s366 = sadd.s32 %s365, 1
      %s367 = scalar_select %p364, %s365, %s366
      %p370 = pneg %p364
      %p371 = scmp.eq.s32.totalorder %s27, 1
      %p372 = por %p370, %p371
      %p373 = scmp.ne.s32.totalorder %s365, %s368
      %p374 = scmp.eq.s32.totalorder %s27, 0
      %p375 = por %p373, %p374
      %p376 = scmp.ne.s32.totalorder %s365, %s368
      %p377 = scmp.eq.s32.totalorder %s32, 1
      %p378 = por %p376, %p377
      %p379 = scmp.ne.s32.totalorder %s368, %s369
      %p380 = scmp.eq.s32.totalorder %s32, 0
      %p381 = por %p379, %p380
      %p382 = scmp.ne.s32.totalorder %s368, %s369
      %p383 = scmp.eq.s32.totalorder %s33, 1
      %p384 = por %p382, %p383
      %p386 = scmp.ne.s32.totalorder %s369, %s385
      %p387 = scmp.eq.s32.totalorder %s33, 0
      %p388 = por %p386, %p387
      %s389 = ssub.s32 %s27, %s34
      %p390 = scmp.eq.s32.totalorder %s389, 0
      %s392 = sadd.s32 %s391, 1
      %s393 = scalar_select %p390, %s391, %s392
      %p396 = pneg %p390
      %p397 = scmp.eq.s32.totalorder %s27, 1
      %p398 = por %p396, %p397
      %p399 = scmp.ne.s32.totalorder %s391, %s394
      %p400 = scmp.eq.s32.totalorder %s27, 0
      %p401 = por %p399, %p400
      %p402 = scmp.ne.s32.totalorder %s391, %s394
      %p403 = scmp.eq.s32.totalorder %s32, 1
      %p404 = por %p402, %p403
      %p405 = scmp.ne.s32.totalorder %s394, %s395
      %p406 = scmp.eq.s32.totalorder %s32, 0
      %p407 = por %p405, %p406
      %p408 = scmp.ne.s32.totalorder %s394, %s395
      %p409 = scmp.eq.s32.totalorder %s33, 1
      %p410 = por %p408, %p409
      %p412 = scmp.ne.s32.totalorder %s395, %s411
      %p413 = scmp.eq.s32.totalorder %s33, 0
      %p414 = por %p412, %p413
      %s415 = ssub.s32 %s27, %s34
      %p416 = scmp.eq.s32.totalorder %s415, 0
      %s418 = sadd.s32 %s417, 1
      %s419 = scalar_select %p416, %s417, %s418
      %p422 = pneg %p416
      %p423 = scmp.eq.s32.totalorder %s27, 1
      %p424 = por %p422, %p423
      %p425 = scmp.ne.s32.totalorder %s417, %s420
      %p426 = scmp.eq.s32.totalorder %s27, 0
      %p427 = por %p425, %p426
      %p428 = scmp.ne.s32.totalorder %s417, %s420
      %p429 = scmp.eq.s32.totalorder %s32, 1
      %p430 = por %p428, %p429
      %p431 = scmp.ne.s32.totalorder %s420, %s421
      %p432 = scmp.eq.s32.totalorder %s32, 0
      %p433 = por %p431, %p432
      %p434 = scmp.ne.s32.totalorder %s420, %s421
      %p435 = scmp.eq.s32.totalorder %s33, 1
      %p436 = por %p434, %p435
      %p438 = scmp.ne.s32.totalorder %s421, %s437
      %p439 = scmp.eq.s32.totalorder %s33, 0
      %p440 = por %p438, %p439
      %s441 = ssub.s32 %s27, %s34
      %p442 = scmp.eq.s32.totalorder %s441, 0
      %s444 = sadd.s32 %s443, 1
      %s445 = scalar_select %p442, %s443, %s444
      %p448 = pneg %p442
      %p449 = scmp.eq.s32.totalorder %s27, 1
      %p450 = por %p448, %p449
      %p451 = scmp.ne.s32.totalorder %s443, %s446
      %p452 = scmp.eq.s32.totalorder %s27, 0
      %p453 = por %p451, %p452
      %p454 = scmp.ne.s32.totalorder %s443, %s446
      %p455 = scmp.eq.s32.totalorder %s32, 1
      %p456 = por %p454, %p455
      %p457 = scmp.ne.s32.totalorder %s446, %s447
      %p458 = scmp.eq.s32.totalorder %s32, 0
      %p459 = por %p457, %p458
      %p460 = scmp.ne.s32.totalorder %s446, %s447
      %p461 = scmp.eq.s32.totalorder %s33, 1
      %p462 = por %p460, %p461
      %p464 = scmp.ne.s32.totalorder %s447, %s463
      %p465 = scmp.eq.s32.totalorder %s33, 0
      %p466 = por %p464, %p465
      %s467 = ssub.s32 %s27, %s34
      %p468 = scmp.eq.s32.totalorder %s467, 0
      %s470 = sadd.s32 %s469, 1
      %s471 = scalar_select %p468, %s469, %s470
      %p474 = pneg %p468
      %p475 = scmp.eq.s32.totalorder %s27, 1
      %p476 = por %p474, %p475
      %p477 = scmp.ne.s32.totalorder %s469, %s472
      %p478 = scmp.eq.s32.totalorder %s27, 0
      %p479 = por %p477, %p478
      %p480 = scmp.ne.s32.totalorder %s469, %s472
      %p481 = scmp.eq.s32.totalorder %s32, 1
      %p482 = por %p480, %p481
      %p483 = scmp.ne.s32.totalorder %s472, %s473
      %p484 = scmp.eq.s32.totalorder %s32, 0
      %p485 = por %p483, %p484
      %p486 = scmp.ne.s32.totalorder %s472, %s473
      %p487 = scmp.eq.s32.totalorder %s33, 1
      %p488 = por %p486, %p487
      %p490 = scmp.ne.s32.totalorder %s473, %s489
      %p491 = scmp.eq.s32.totalorder %s33, 0
      %p492 = por %p490, %p491
      %s494 = sadd.s32 %s493, 1
      %p497 = scmp.eq.s32.totalorder %s27, 1
      %p498 = scmp.ne.s32.totalorder %s493, %s495
      %p499 = scmp.eq.s32.totalorder %s27, 0
      %p500 = por %p498, %p499
      %p501 = scmp.ne.s32.totalorder %s493, %s495
      %p502 = scmp.eq.s32.totalorder %s32, 1
      %p503 = por %p501, %p502
      %p504 = scmp.ne.s32.totalorder %s495, %s496
      %p505 = scmp.eq.s32.totalorder %s32, 0
      %p506 = por %p504, %p505
      %p507 = scmp.ne.s32.totalorder %s495, %s496
      %p508 = scmp.eq.s32.totalorder %s33, 1
      %p509 = por %p507, %p508
      %p511 = scmp.ne.s32.totalorder %s496, %s510
      %p512 = scmp.eq.s32.totalorder %s33, 0
      %p513 = por %p511, %p512
      %p514 = scmp.le.s32.totalorder 1, %s27
      %p515 = scmp.lt.s32.totalorder %s27, 3
      %p516 = pnand %p514, %p515
      %p517 = pneg %p516
      // Predicated region
      $region9: #{tpu_custom_call.1} parent=5 // pred_check
        _
      $region10: #{tpu_custom_call.1} parent=5 // pred_check_branch
        %519 = sbr.rel (%p516) target = $region12
      $region11: #{tpu_custom_call.1} parent=5 // pred_region
        %s520 = ssub.s32 %s27, 1
        // Predicated region
        $region13: #{tpu_custom_call.1} parent=11 // pred_check
          %p521 = pneg %p48
        $region14: #{tpu_custom_call.1} parent=11 // pred_check_branch
          %523 = sbr.rel (%p521) target = $region16
        $region15: #{tpu_custom_call.1} parent=11 // pred_region
          %s525 = ssub.s32 256, 256
          %526 = vsyncadd [#allocation7], %s525
          %s527 = sshll.u32 [#allocation6], 4
          %s528 = int_to_ptr.vmem [resolvable:$true] %s527
          %533 = dma.hbm_to_vmem [thread:$0]  %s0, 256, %s528, [#allocation7], 128, 128, 8
        $region16: #{tpu_custom_call.1} parent=11 // pred_fallthru
          _
        // Predicated region
        $region17: #{tpu_custom_call.1} parent=11 // pred_check
          %p534 = pneg %p69
        $region18: #{tpu_custom_call.1} parent=11 // pred_check_branch
          %536 = sbr.rel (%p534) target = $region20
        $region19: #{tpu_custom_call.1} parent=11 // pred_region
          %s538 = ssub.s32 32, 32
          %539 = vsyncadd [#allocation10], %s538
          %s540 = sshll.u32 [#allocation9], 4
          %s541 = int_to_ptr.vmem [resolvable:$true] %s540
          %546 = dma.hbm_to_vmem [thread:$0]  %s1, 32, %s541, [#allocation10], 16, 16, 1
        $region20: #{tpu_custom_call.1} parent=11 // pred_fallthru
          _
      $region12: #{tpu_custom_call.1} parent=5 // pred_fallthru
        _
      %p547 = scmp.lt.s32.totalorder %s27, 2
      // Predicated region
      $region21: #{tpu_custom_call.1} parent=5 // pred_check
        %p548 = pneg %p547
      $region22: #{tpu_custom_call.1} parent=5 // pred_check_branch
        %550 = sbr.rel (%p548) target = $region24
      $region23: #{tpu_custom_call.1} parent=5 // pred_region
        // Predicated region
        $region25: #{tpu_custom_call.1} parent=23 // pred_check
          %p551 = pneg %p89
        $region26: #{tpu_custom_call.1} parent=23 // pred_check_branch
          %553 = sbr.rel (%p551) target = $region28
        $region27: #{tpu_custom_call.1} parent=23 // pred_region
          %p554 = scmp.lt.s32.totalorder %s27, 1
          %s555 = scalar_select %p554, %s27, 1
          %s556 = smul.addr %s555, 4
          %s557 = smul.addr %s556, 4
          %s558 = scalar_lea.vmem %s2, %s557
        $region28: #{tpu_custom_call.1} parent=23 // pred_fallthru
          _
        // Predicated region
        $region29: #{tpu_custom_call.1} parent=23 // pred_check
          %p559 = pneg %p115
        $region30: #{tpu_custom_call.1} parent=23 // pred_check_branch
          %561 = sbr.rel (%p559) target = $region32
        $region31: #{tpu_custom_call.1} parent=23 // pred_region
          %p562 = scmp.lt.s32.totalorder %s27, 1
          %s563 = scalar_select %p562, %s27, 1
          %s564 = scalar_lea.vmem %s3, %s563
        $region32: #{tpu_custom_call.1} parent=23 // pred_fallthru
          _
        // Predicated region
        $region33: #{tpu_custom_call.1} parent=23 // pred_check
          %p565 = pneg %p141
        $region34: #{tpu_custom_call.1} parent=23 // pred_check_branch
          %567 = sbr.rel (%p565) target = $region36
        $region35: #{tpu_custom_call.1} parent=23 // pred_region
          %p568 = scmp.lt.s32.totalorder %s27, 1
          %s569 = scalar_select %p568, %s27, 1
          %s570 = smul.addr %s569, 4
          %s571 = smul.addr %s570, 4
          %s572 = scalar_lea.vmem %s4, %s571
        $region36: #{tpu_custom_call.1} parent=23 // pred_fallthru
          _
        // Predicated region
        $region37: #{tpu_custom_call.1} parent=23 // pred_check
          %p573 = pneg %p167
        $region38: #{tpu_custom_call.1} parent=23 // pred_check_branch
          %575 = sbr.rel (%p573) target = $region40
        $region39: #{tpu_custom_call.1} parent=23 // pred_region
          %p576 = scmp.lt.s32.totalorder %s27, 1
          %s577 = scalar_select %p576, %s27, 1
          %s578 = scalar_lea.vmem %s5, %s577
        $region40: #{tpu_custom_call.1} parent=23 // pred_fallthru
          _
        // Predicated region
        $region41: #{tpu_custom_call.1} parent=23 // pred_check
          %p579 = pneg %p193
        $region42: #{tpu_custom_call.1} parent=23 // pred_check_branch
          %581 = sbr.rel (%p579) target = $region44
        $region43: #{tpu_custom_call.1} parent=23 // pred_region
          %p582 = scmp.lt.s32.totalorder %s27, 1
          %s583 = scalar_select %p582, %s27, 1
          %s584 = smul.addr %s583, 4
          %s585 = smul.addr %s584, 4
          %s586 = scalar_lea.vmem %s6, %s585
        $region44: #{tpu_custom_call.1} parent=23 // pred_fallthru
          _
        // Predicated region
        $region45: #{tpu_custom_call.1} parent=23 // pred_check
          %p587 = pneg %p219
        $region46: #{tpu_custom_call.1} parent=23 // pred_check_branch
          %589 = sbr.rel (%p587) target = $region48
        $region47: #{tpu_custom_call.1} parent=23 // pred_region
          %p590 = scmp.lt.s32.totalorder %s27, 1
          %s591 = scalar_select %p590, %s27, 1
          %s592 = scalar_lea.vmem %s7, %s591
        $region48: #{tpu_custom_call.1} parent=23 // pred_fallthru
          _
        // Predicated region
        $region49: #{tpu_custom_call.1} parent=23 // pred_check
          %p593 = pneg %p245
        $region50: #{tpu_custom_call.1} parent=23 // pred_check_branch
          %595 = sbr.rel (%p593) target = $region52
        $region51: #{tpu_custom_call.1} parent=23 // pred_region
          %s596 = sand.u32 %s27, 1
          %s597 = scalar_lea.sflag [#allocation7], %s596
          %s598 = sand.u32 %s235, 1
          %s599 = smul.addr %s598, 16
          %s600 = scalar_lea.vmem [#allocation11], %s599
          %s602 = ssub.s32 256, 256
          %603 = vsyncadd %s597, %s602
          %s604 = smul.addr %s27, 4
          %s605 = smul.addr %s604, 64
          %s606 = scalar_lea.hbm %s8, %s605
          %s607 = sshll.u32 %s600, 4
          %s608 = int_to_ptr.vmem [resolvable:$true] %s607
          %613 = dma.hbm_to_vmem [thread:$0]  %s606, 256, %s608, %s597, 64, 64, 4
        $region52: #{tpu_custom_call.1} parent=23 // pred_fallthru
          _
        // Predicated region
        $region53: #{tpu_custom_call.1} parent=23 // pred_check
          %p614 = pneg %p271
        $region54: #{tpu_custom_call.1} parent=23 // pred_check_branch
          %616 = sbr.rel (%p614) target = $region56
        $region55: #{tpu_custom_call.1} parent=23 // pred_region
          %p617 = scmp.lt.s32.totalorder %s27, 1
          %s618 = scalar_select %p617, %s27, 1
          %s619 = scalar_lea.vmem %s9, %s618
        $region56: #{tpu_custom_call.1} parent=23 // pred_fallthru
          _
        // Predicated region
        $region57: #{tpu_custom_call.1} parent=23 // pred_check
          %p620 = pneg %p297
        $region58: #{tpu_custom_call.1} parent=23 // pred_check_branch
          %622 = sbr.rel (%p620) target = $region60
        $region59: #{tpu_custom_call.1} parent=23 // pred_region
          %p623 = scmp.lt.s32.totalorder %s27, 1
          %s624 = scalar_select %p623, %s27, 1
          %s625 = scalar_lea.vmem %s10, %s624
        $region60: #{tpu_custom_call.1} parent=23 // pred_fallthru
          _
        // Predicated region
        $region61: #{tpu_custom_call.1} parent=23 // pred_check
          %p626 = pneg %p323
        $region62: #{tpu_custom_call.1} parent=23 // pred_check_branch
          %628 = sbr.rel (%p626) target = $region64
        $region63: #{tpu_custom_call.1} parent=23 // pred_region
          %p629 = scmp.lt.s32.totalorder %s27, 1
          %s630 = scalar_select %p629, %s27, 1
          %s631 = scalar_lea.vmem %s11, %s630
        $region64: #{tpu_custom_call.1} parent=23 // pred_fallthru
          _
        // Predicated region
        $region65: #{tpu_custom_call.1} parent=23 // pred_check
          %p632 = pneg %p349
        $region66: #{tpu_custom_call.1} parent=23 // pred_check_branch
          %634 = sbr.rel (%p632) target = $region68
        $region67: #{tpu_custom_call.1} parent=23 // pred_region
          %s635 = sand.u32 %s27, 1
          %s636 = scalar_lea.sflag [#allocation7], %s635
          %s637 = sand.u32 %s339, 1
          %s638 = smul.addr %s637, 16
          %s639 = scalar_lea.vmem [#allocation12], %s638
          %s641 = ssub.s32 256, 256
          %642 = vsyncadd %s636, %s641
          %s643 = smul.addr %s27, 4
          %s644 = smul.addr %s643, 64
          %s645 = scalar_lea.hbm %s12, %s644
          %s646 = sshll.u32 %s639, 4
          %s647 = int_to_ptr.vmem [resolvable:$true] %s646
          %652 = dma.hbm_to_vmem [thread:$0]  %s645, 256, %s647, %s636, 64, 64, 4
        $region68: #{tpu_custom_call.1} parent=23 // pred_fallthru
          _
        // Predicated region
        $region69: #{tpu_custom_call.1} parent=23 // pred_check
          %p653 = pneg %p375
        $region70: #{tpu_custom_call.1} parent=23 // pred_check_branch
          %655 = sbr.rel (%p653) target = $region72
        $region71: #{tpu_custom_call.1} parent=23 // pred_region
          %p656 = scmp.lt.s32.totalorder %s27, 1
          %s657 = scalar_select %p656, %s27, 1
          %s658 = scalar_lea.vmem %s13, %s657
        $region72: #{tpu_custom_call.1} parent=23 // pred_fallthru
          _
        // Predicated region
        $region73: #{tpu_custom_call.1} parent=23 // pred_check
          %p659 = pneg %p401
        $region74: #{tpu_custom_call.1} parent=23 // pred_check_branch
          %661 = sbr.rel (%p659) target = $region76
        $region75: #{tpu_custom_call.1} parent=23 // pred_region
          %p662 = scmp.lt.s32.totalorder %s27, 1
          %s663 = scalar_select %p662, %s27, 1
          %s664 = smul.addr %s663, 8
          %s665 = smul.addr %s664, 4
          %s666 = scalar_lea.vmem %s14, %s665
        $region76: #{tpu_custom_call.1} parent=23 // pred_fallthru
          _
        // Predicated region
        $region77: #{tpu_custom_call.1} parent=23 // pred_check
          %p667 = pneg %p427
        $region78: #{tpu_custom_call.1} parent=23 // pred_check_branch
          %669 = sbr.rel (%p667) target = $region80
        $region79: #{tpu_custom_call.1} parent=23 // pred_region
          %p670 = scmp.lt.s32.totalorder %s27, 1
          %s671 = scalar_select %p670, %s27, 1
          %s672 = scalar_lea.vmem %s15, %s671
        $region80: #{tpu_custom_call.1} parent=23 // pred_fallthru
          _
        // Predicated region
        $region81: #{tpu_custom_call.1} parent=23 // pred_check
          %p673 = pneg %p453
        $region82: #{tpu_custom_call.1} parent=23 // pred_check_branch
          %675 = sbr.rel (%p673) target = $region84
        $region83: #{tpu_custom_call.1} parent=23 // pred_region
          %p676 = scmp.lt.s32.totalorder %s27, 1
          %s677 = scalar_select %p676, %s27, 1
          %s678 = scalar_lea.vmem %s16, %s677
        $region84: #{tpu_custom_call.1} parent=23 // pred_fallthru
          _
        // Predicated region
        $region85: #{tpu_custom_call.1} parent=23 // pred_check
          %p679 = pneg %p479
        $region86: #{tpu_custom_call.1} parent=23 // pred_check_branch
          %681 = sbr.rel (%p679) target = $region88
        $region87: #{tpu_custom_call.1} parent=23 // pred_region
          %p682 = scmp.lt.s32.totalorder %s27, 1
          %s683 = scalar_select %p682, %s27, 1
          %s684 = scalar_lea.vmem %s17, %s683
        $region88: #{tpu_custom_call.1} parent=23 // pred_fallthru
          _
      $region24: #{tpu_custom_call.1} parent=5 // pred_fallthru
        _
      %p685 = scmp.le.s32.totalorder 1, %s27
      %p686 = scmp.lt.s32.totalorder %s27, 3
      %p687 = pnand %p685, %p686
      %p688 = pneg %p687
      // Predicated region
      $region89: #{tpu_custom_call.1} parent=5 // pred_check
        _
      $region90: #{tpu_custom_call.1} parent=5 // pred_check_branch
        %690 = sbr.rel (%p687) target = $region92
      $region91: #{tpu_custom_call.1} parent=5 // pred_region
        %s691 = ssub.s32 %s27, 1
        // Predicated region
        $region93: #{tpu_custom_call.1} parent=91 // pred_check
          %p692 = pneg %p48
        $region94: #{tpu_custom_call.1} parent=91 // pred_check_branch
          %694 = sbr.rel (%p692) target = $region96
        $region95: #{tpu_custom_call.1} parent=91 // pred_region
          %695 = dma.done [#allocation7], 256
        $region96: #{tpu_custom_call.1} parent=91 // pred_fallthru
          _
        // Predicated region
        $region97: #{tpu_custom_call.1} parent=91 // pred_check
          %p696 = pneg %p69
        $region98: #{tpu_custom_call.1} parent=91 // pred_check_branch
          %698 = sbr.rel (%p696) target = $region100
        $region99: #{tpu_custom_call.1} parent=91 // pred_region
          %699 = dma.done [#allocation10], 32
        $region100: #{tpu_custom_call.1} parent=91 // pred_fallthru
          _
        %s700 = sand.u32 %s32, 1
        %s701 = scalar_lea.sflag [#allocation7], %s700
        %s702 = sand.u32 %s238, 1
        %s703 = smul.addr %s702, 16
        %s704 = scalar_lea.vmem [#allocation11], %s703
        // Predicated region
        $region101: #{tpu_custom_call.1} parent=91 // pred_check
          %p705 = pneg %p251
        $region102: #{tpu_custom_call.1} parent=91 // pred_check_branch
          %707 = sbr.rel (%p705) target = $region104
        $region103: #{tpu_custom_call.1} parent=91 // pred_region
          %708 = dma.done %s701, 256
        $region104: #{tpu_custom_call.1} parent=91 // pred_fallthru
          _
        %s709 = sand.u32 %s32, 1
        %s710 = scalar_lea.sflag [#allocation7], %s709
        %s711 = sand.u32 %s342, 1
        %s712 = smul.addr %s711, 16
        %s713 = scalar_lea.vmem [#allocation12], %s712
        // Predicated region
        $region105: #{tpu_custom_call.1} parent=91 // pred_check
          %p714 = pneg %p355
        $region106: #{tpu_custom_call.1} parent=91 // pred_check_branch
          %716 = sbr.rel (%p714) target = $region108
        $region107: #{tpu_custom_call.1} parent=91 // pred_region
          %717 = dma.done %s710, 256
        $region108: #{tpu_custom_call.1} parent=91 // pred_fallthru
          _
        %p718 = pneg %p48
        %p719 = pneg %p45
        %p720 = pneg %p69
        %p721 = pneg %p66
        %p722 = scmp.lt.s32.totalorder %s32, 1
        %s723 = scalar_select %p722, %s32, 1
        %s724 = smul.addr %s723, 4
        %s725 = smul.addr %s724, 4
        %s726 = scalar_lea.vmem %s2, %s725
        %p727 = pneg %p95
        %p728 = pneg %p92
        %p729 = scmp.lt.s32.totalorder %s32, 1
        %s730 = scalar_select %p729, %s32, 1
        %s731 = scalar_lea.vmem %s3, %s730
        %p732 = pneg %p121
        %p733 = pneg %p118
        %p734 = scmp.lt.s32.totalorder %s32, 1
        %s735 = scalar_select %p734, %s32, 1
        %s736 = smul.addr %s735, 4
        %s737 = smul.addr %s736, 4
        %s738 = scalar_lea.vmem %s4, %s737
        %p739 = pneg %p147
        %p740 = pneg %p144
        %p741 = scmp.lt.s32.totalorder %s32, 1
        %s742 = scalar_select %p741, %s32, 1
        %s743 = scalar_lea.vmem %s5, %s742
        %p744 = pneg %p173
        %p745 = pneg %p170
        %p746 = scmp.lt.s32.totalorder %s32, 1
        %s747 = scalar_select %p746, %s32, 1
        %s748 = smul.addr %s747, 4
        %s749 = smul.addr %s748, 4
        %s750 = scalar_lea.vmem %s6, %s749
        %p751 = pneg %p199
        %p752 = pneg %p196
        %p753 = scmp.lt.s32.totalorder %s32, 1
        %s754 = scalar_select %p753, %s32, 1
        %s755 = scalar_lea.vmem %s7, %s754
        %p756 = pneg %p225
        %p757 = pneg %p222
        %s758 = sand.u32 %s32, 1
        %s759 = scalar_lea.sflag [#allocation7], %s758
        %s760 = sand.u32 %s238, 1
        %s761 = smul.addr %s760, 16
        %s762 = scalar_lea.vmem [#allocation11], %s761
        %p763 = pneg %p251
        %p764 = pneg %p248
        %p765 = scmp.lt.s32.totalorder %s32, 1
        %s766 = scalar_select %p765, %s32, 1
        %s767 = scalar_lea.vmem %s9, %s766
        %p768 = pneg %p277
        %p769 = pneg %p274
        %p770 = scmp.lt.s32.totalorder %s32, 1
        %s771 = scalar_select %p770, %s32, 1
        %s772 = scalar_lea.vmem %s10, %s771
        %p773 = pneg %p303
        %p774 = pneg %p300
        %p775 = scmp.lt.s32.totalorder %s32, 1
        %s776 = scalar_select %p775, %s32, 1
        %s777 = scalar_lea.vmem %s11, %s776
        %p778 = pneg %p329
        %p779 = pneg %p326
        %s780 = sand.u32 %s32, 1
        %s781 = scalar_lea.sflag [#allocation7], %s780
        %s782 = sand.u32 %s342, 1
        %s783 = smul.addr %s782, 16
        %s784 = scalar_lea.vmem [#allocation12], %s783
        %p785 = pneg %p355
        %p786 = pneg %p352
        %p787 = scmp.lt.s32.totalorder %s32, 1
        %s788 = scalar_select %p787, %s32, 1
        %s789 = scalar_lea.vmem %s13, %s788
        %p790 = pneg %p381
        %p791 = pneg %p378
        %p792 = scmp.lt.s32.totalorder %s32, 1
        %s793 = scalar_select %p792, %s32, 1
        %s794 = smul.addr %s793, 8
        %s795 = smul.addr %s794, 4
        %s796 = scalar_lea.vmem %s14, %s795
        %p797 = pneg %p407
        %p798 = pneg %p404
        %p799 = scmp.lt.s32.totalorder %s32, 1
        %s800 = scalar_select %p799, %s32, 1
        %s801 = scalar_lea.vmem %s15, %s800
        %p802 = pneg %p433
        %p803 = pneg %p430
        %p804 = scmp.lt.s32.totalorder %s32, 1
        %s805 = scalar_select %p804, %s32, 1
        %s806 = scalar_lea.vmem %s16, %s805
        %p807 = pneg %p459
        %p808 = pneg %p456
        %p809 = scmp.lt.s32.totalorder %s32, 1
        %s810 = scalar_select %p809, %s32, 1
        %s811 = scalar_lea.vmem %s17, %s810
        %p812 = pneg %p485
        %p813 = pneg %p482
        %p814 = pneg %p506
        %p815 = pneg %p503
        %p816 = scmp.lt.s32.totalorder %s32, 1
        %s817 = scalar_select %p816, %s32, 1
        %s818 = smul.addr %s817, 4
        %s819 = smul.addr %s818, 4
        %s820 = scalar_lea.vmem %s2, %s819
        %p821 = scmp.lt.s32.totalorder %s32, 1
        %s822 = scalar_select %p821, %s32, 1
        %s823 = scalar_lea.vmem %s3, %s822
        %p824 = scmp.lt.s32.totalorder %s32, 1
        %s825 = scalar_select %p824, %s32, 1
        %s826 = smul.addr %s825, 4
        %s827 = smul.addr %s826, 4
        %s828 = scalar_lea.vmem %s4, %s827
        %p829 = scmp.lt.s32.totalorder %s32, 1
        %s830 = scalar_select %p829, %s32, 1
        %s831 = scalar_lea.vmem %s5, %s830
        %p832 = scmp.lt.s32.totalorder %s32, 1
        %s833 = scalar_select %p832, %s32, 1
        %s834 = smul.addr %s833, 4
        %s835 = smul.addr %s834, 4
        %s836 = scalar_lea.vmem %s6, %s835
        %p837 = scmp.lt.s32.totalorder %s32, 1
        %s838 = scalar_select %p837, %s32, 1
        %s839 = scalar_lea.vmem %s7, %s838
        %p840 = scmp.lt.s32.totalorder %s32, 1
        %s841 = scalar_select %p840, %s32, 1
        %s842 = scalar_lea.vmem %s9, %s841
        %p843 = scmp.lt.s32.totalorder %s32, 1
        %s844 = scalar_select %p843, %s32, 1
        %s845 = scalar_lea.vmem %s10, %s844
        %p846 = scmp.lt.s32.totalorder %s32, 1
        %s847 = scalar_select %p846, %s32, 1
        %s848 = scalar_lea.vmem %s11, %s847
        %p849 = scmp.lt.s32.totalorder %s32, 1
        %s850 = scalar_select %p849, %s32, 1
        %s851 = scalar_lea.vmem %s13, %s850
        %p852 = scmp.lt.s32.totalorder %s32, 1
        %s853 = scalar_select %p852, %s32, 1
        %s854 = smul.addr %s853, 8
        %s855 = smul.addr %s854, 4
        %s856 = scalar_lea.vmem %s14, %s855
        %p857 = scmp.lt.s32.totalorder %s32, 1
        %s858 = scalar_select %p857, %s32, 1
        %s859 = scalar_lea.vmem %s15, %s858
        %p860 = scmp.lt.s32.totalorder %s32, 1
        %s861 = scalar_select %p860, %s32, 1
        %s862 = scalar_lea.vmem %s16, %s861
        %p863 = scmp.lt.s32.totalorder %s32, 1
        %s864 = scalar_select %p863, %s32, 1
        %s865 = scalar_lea.vmem %s17, %s864
        %p867 = scmp.eq.s32.totalorder %s32, 0
        // Predicated region
        $region109: #{tpu_custom_call.1} parent=91 // pred_check
          %p868 = pneg %p867
        $region110: #{tpu_custom_call.1} parent=91 // pred_check_branch
          %870 = sbr.rel (%p868) target = $region112
        $region111: #{tpu_custom_call.1} parent=91 // pred_region
          %v871 = vld [vmem:[#allocation6] sm:$0xff]
          %v872 = vld [vmem:[#allocation6 + $0x8] sm:$0xff]
          %vm873 = vcmask 261120
          %874 = vst.msk [vmem:[#allocation2] sm:$0xff] %vm873, %v871
          %875 = vst.msk [vmem:[#allocation2 + $0x8] sm:$0xff] %vm873, %v872
        $region112: #{tpu_custom_call.1} parent=91 // pred_fallthru
          _
        %v876 = vld [vmem:[%s820] sm:$0xf]
        %v877 = vld [vmem:[%s820 + $0x4] sm:$0xf]
        %v878 = vld [vmem:[%s820 + $0x8] sm:$0xf]
        %v879 = vld [vmem:[%s820 + $0xc] sm:$0xf]
        %v880 = vld [vmem:[%s828] sm:$0xf]
        %v881 = vld [vmem:[%s828 + $0x4] sm:$0xf]
        %v882 = vld [vmem:[%s828 + $0x8] sm:$0xf]
        %v883 = vld [vmem:[%s828 + $0xc] sm:$0xf]
        %v884 = vld [vmem:[%s836] sm:$0xf]
        %v885 = vld [vmem:[%s836 + $0x4] sm:$0xf]
        %v886 = vld [vmem:[%s836 + $0x8] sm:$0xf]
        %v887 = vld [vmem:[%s836 + $0xc] sm:$0xf]
        %v888 = vld [vmem:[%s704] sm:$0xf]
        %v889 = vld [vmem:[%s704 + $0x4] sm:$0xf]
        %v890 = vld [vmem:[%s704 + $0x8] sm:$0xf]
        %v891 = vld [vmem:[%s704 + $0xc] sm:$0xf]
        %v892 = vld [vmem:[%s713] sm:$0xf]
        %v893 = vld [vmem:[%s713 + $0x4] sm:$0xf]
        %v894 = vld [vmem:[%s713 + $0x8] sm:$0xf]
        %v895 = vld [vmem:[%s713 + $0xc] sm:$0xf]
        %v896 = vld [vmem:[%s856] sm:$0xf]
        %v897 = vld [vmem:[%s856 + $0x4] sm:$0xf]
        %v898 = vld [vmem:[%s856 + $0x8] sm:$0xf]
        %v899 = vld [vmem:[%s856 + $0xc] sm:$0xf]
        %v900 = vld [vmem:[%s856 + $0x10] sm:$0xf]
        %v901 = vld [vmem:[%s856 + $0x14] sm:$0xf]
        %v902 = vld [vmem:[%s856 + $0x18] sm:$0xf]
        %v903 = vld [vmem:[%s856 + $0x1c] sm:$0xf]
        %v904 = vld [vmem:[%s823] sm:$0x1]
        %v905 = vld [vmem:[%s831] sm:$0x1]
        %v906 = vld [vmem:[%s839] sm:$0x1]
        %v907 = vld [vmem:[%s842] sm:$0x1]
        %v908 = vld [vmem:[%s851] sm:$0x1]
        %v909 = vld [vmem:[%s859] sm:$0x1]
        %v910 = vld [vmem:[%s845] sm:$0x1]
        %v911 = vld [vmem:[%s848] sm:$0x1]
        %v912 = vld [vmem:[%s862] sm:$0x1]
        %v913 = vld [vmem:[%s865] sm:$0x1]
        %v914 = vld [vmem:[#allocation9] sm:$0x1]
        %v915 = vld [vmem:[#allocation9 + $0x1] sm:$0x1]
        %vm916 = vcmp.eq.f32.partialorder %v914, 0.0
        %vm917 = vcmp.eq.f32.partialorder %v915, 0.0
        %v918 = vsel %vm916, -1e+09, 0.0
        %v919 = vsel %vm917, -1e+09, 0.0
        %v920 = vld [vmem:[#allocation2] sm:$0xff]
        %v921 = vpack.c.bf16 %v920, %v920
        %v923 = vlaneseq
        %v924 = vshrl.u32 %v923, 7
        %v925 = vsub.s32 0, %v924
        %v926 = vrot.slane %v904, %v925
        %v932 = vunpack.c.l.b16 %v876
        %v933 = vunpack.c.l.b16 %v877
        %v934 = vunpack.c.l.b16 %v878
        %v935 = vunpack.c.l.b16 %v879
        %v936 = vpack.c.b16 %v933, %v932
        %v937 = vpack.c.b16 %v935, %v934
        %vm940 = vcmask 261120
        %v942 = vsel %vm940, %v921, 0
        %944 = vmatprep.subr.bf16.mxu0 0
        %945 = vmatpush1.bf16.msra.mxu0 0
        %946 = vmatprep.subr.bf16.mxu0 0
        %947 = vmatpush1.bf16.msra.mxu0 0
        %948 = vmatprep.subr.bf16.mxu0 0
        %949 = vmatpush1.bf16.msra.mxu0 0
        %950 = vmatprep.subr.bf16.mxu0 0
        %951 = vmatpush1.bf16.msra.mxu0 0
        %952 = vmatprep.subr.bf16.mxu0 0
        %953 = vmatpush1.bf16.msra.mxu0 0
        %954 = vmatprep.subr.bf16.mxu0 0
        %955 = vmatpush1.bf16.msra.mxu0 0
        %956 = vmatprep.subr.bf16.mxu0 0
        %957 = vmatpush1.bf16.msra.mxu0 %v937
        %958 = vmatprep.subr.bf16.mxu0 0
        %959 = vmatpush1.bf16.msra.mxu0 %v936
        %960 = vmatprep.subr.bf16.mxu0 0
        %961 = vmatpush2.bf16.msra.mxu0 0
        %962 = vmatprep.subr.bf16.mxu0 0
        %963 = vmatpush2.bf16.msra.mxu0 0
        %964 = vmatprep.subr.bf16.mxu0 0
        %965 = vmatpush2.bf16.msra.mxu0 0
        %966 = vmatprep.subr.bf16.mxu0 0
        %967 = vmatpush2.bf16.msra.mxu0 0
        %968 = vmatprep.subr.bf16.mxu0 0
        %969 = vmatpush2.bf16.msra.mxu0 0
        %970 = vmatprep.subr.bf16.mxu0 0
        %971 = vmatpush2.bf16.msra.mxu0 0
        %972 = vmatprep.subr.bf16.mxu0 0
        %973 = vmatpush2.bf16.msra.mxu0 0
        %974 = vmatprep.subr.bf16.mxu0 0
        %975 = vmatpush2.bf16.msra.mxu0 0
        %976 = vmatprep.mubr.bf16.mxu0 0
        %977 = vmatmul.mubr.bf16.gmra.mxu0 %v942
        %v978 = vpop.f32.mrf.mxu0
        %v979 = vadd.f32 %v926, %v978
        %v980 = vpop.f32.mrf.mxu0
        %v981 = vpop.f32.mrf.mxu0
        %v982 = vpop.f32.mrf.mxu0
        %983 = vdwg.mxu0
        %v985 = vlaneseq
        %v986 = vshrl.u32 %v985, 7
        %v987 = vsub.s32 0, %v986
        %v988 = vrot.slane %v905, %v987
        %v994 = vunpack.c.l.b16 %v880
        %v995 = vunpack.c.l.b16 %v881
        %v996 = vunpack.c.l.b16 %v882
        %v997 = vunpack.c.l.b16 %v883
        %v998 = vpack.c.b16 %v995, %v994
        %v999 = vpack.c.b16 %v997, %v996
        %1002 = vmatprep.subr.bf16.mxu0 0
        %1003 = vmatpush1.bf16.msra.mxu0 0
        %1004 = vmatprep.subr.bf16.mxu0 0
        %1005 = vmatpush1.bf16.msra.mxu0 0
        %1006 = vmatprep.subr.bf16.mxu0 0
        %1007 = vmatpush1.bf16.msra.mxu0 0
        %1008 = vmatprep.subr.bf16.mxu0 0
        %1009 = vmatpush1.bf16.msra.mxu0 0
        %1010 = vmatprep.subr.bf16.mxu0 0
        %1011 = vmatpush1.bf16.msra.mxu0 0
        %1012 = vmatprep.subr.bf16.mxu0 0
        %1013 = vmatpush1.bf16.msra.mxu0 0
        %1014 = vmatprep.subr.bf16.mxu0 0
        %1015 = vmatpush1.bf16.msra.mxu0 %v999
        %1016 = vmatprep.subr.bf16.mxu0 0
        %1017 = vmatpush1.bf16.msra.mxu0 %v998
        %1018 = vmatprep.subr.bf16.mxu0 0
        %1019 = vmatpush2.bf16.msra.mxu0 0
        %1020 = vmatprep.subr.bf16.mxu0 0
        %1021 = vmatpush2.bf16.msra.mxu0 0
        %1022 = vmatprep.subr.bf16.mxu0 0
        %1023 = vmatpush2.bf16.msra.mxu0 0
        %1024 = vmatprep.subr.bf16.mxu0 0
        %1025 = vmatpush2.bf16.msra.mxu0 0
        %1026 = vmatprep.subr.bf16.mxu0 0
        %1027 = vmatpush2.bf16.msra.mxu0 0
        %1028 = vmatprep.subr.bf16.mxu0 0
        %1029 = vmatpush2.bf16.msra.mxu0 0
        %1030 = vmatprep.subr.bf16.mxu0 0
        %1031 = vmatpush2.bf16.msra.mxu0 0
        %1032 = vmatprep.subr.bf16.mxu0 0
        %1033 = vmatpush2.bf16.msra.mxu0 0
        %1034 = vmatprep.mubr.bf16.mxu0 0
        %1035 = vmatmul.mubr.bf16.gmra.mxu0 %v942
        %v1036 = vpop.f32.mrf.mxu0
        %v1037 = vadd.f32 %v988, %v1036
        %v1038 = vpop.f32.mrf.mxu0
        %v1039 = vpop.f32.mrf.mxu0
        %v1040 = vpop.f32.mrf.mxu0
        %1041 = vdwg.mxu0
        %v1043 = vlaneseq
        %v1044 = vshrl.u32 %v1043, 7
        %v1045 = vsub.s32 0, %v1044
        %v1046 = vrot.slane %v906, %v1045
        %v1052 = vunpack.c.l.b16 %v884
        %v1053 = vunpack.c.l.b16 %v885
        %v1054 = vunpack.c.l.b16 %v886
        %v1055 = vunpack.c.l.b16 %v887
        %v1056 = vpack.c.b16 %v1053, %v1052
        %v1057 = vpack.c.b16 %v1055, %v1054
        %1060 = vmatprep.subr.bf16.mxu0 0
        %1061 = vmatpush1.bf16.msra.mxu0 0
        %1062 = vmatprep.subr.bf16.mxu0 0
        %1063 = vmatpush1.bf16.msra.mxu0 0
        %1064 = vmatprep.subr.bf16.mxu0 0
        %1065 = vmatpush1.bf16.msra.mxu0 0
        %1066 = vmatprep.subr.bf16.mxu0 0
        %1067 = vmatpush1.bf16.msra.mxu0 0
        %1068 = vmatprep.subr.bf16.mxu0 0
        %1069 = vmatpush1.bf16.msra.mxu0 0
        %1070 = vmatprep.subr.bf16.mxu0 0
        %1071 = vmatpush1.bf16.msra.mxu0 0
        %1072 = vmatprep.subr.bf16.mxu0 0
        %1073 = vmatpush1.bf16.msra.mxu0 %v1057
        %1074 = vmatprep.subr.bf16.mxu0 0
        %1075 = vmatpush1.bf16.msra.mxu0 %v1056
        %1076 = vmatprep.subr.bf16.mxu0 0
        %1077 = vmatpush2.bf16.msra.mxu0 0
        %1078 = vmatprep.subr.bf16.mxu0 0
        %1079 = vmatpush2.bf16.msra.mxu0 0
        %1080 = vmatprep.subr.bf16.mxu0 0
        %1081 = vmatpush2.bf16.msra.mxu0 0
        %1082 = vmatprep.subr.bf16.mxu0 0
        %1083 = vmatpush2.bf16.msra.mxu0 0
        %1084 = vmatprep.subr.bf16.mxu0 0
        %1085 = vmatpush2.bf16.msra.mxu0 0
        %1086 = vmatprep.subr.bf16.mxu0 0
        %1087 = vmatpush2.bf16.msra.mxu0 0
        %1088 = vmatprep.subr.bf16.mxu0 0
        %1089 = vmatpush2.bf16.msra.mxu0 0
        %1090 = vmatprep.subr.bf16.mxu0 0
        %1091 = vmatpush2.bf16.msra.mxu0 0
        %1092 = vmatprep.mubr.bf16.mxu0 0
        %1093 = vmatmul.mubr.bf16.gmra.mxu0 %v942
        %v1094 = vpop.f32.mrf.mxu0
        %v1095 = vadd.f32 %v1046, %v1094
        %v1096 = vpop.f32.mrf.mxu0
        %v1097 = vpop.f32.mrf.mxu0
        %v1098 = vpop.f32.mrf.mxu0
        %1099 = vdwg.mxu0
        %vm1100 = vcmask 64512
        %1101 = vst.msk [vmem:[#allocation3] sm:$0xff] %vm1100, %v979
        %1102 = vst.msk [vmem:[#allocation4] sm:$0xff] %vm1100, %v1037
        %1103 = vst.msk [vmem:[#allocation5] sm:$0xff] %vm1100, %v1095
        %1105 = vrot.lane.b32.xlu0 %v979, 120
        %v1106 = vpop.permute.xlu0 %1105
        %s1108 = scalar_lea.vmem [#allocation3], 8
        %1109 = vst.msk [vmem:[%s1108] sm:$0xff] %vm1100, %v1106
        %1111 = vrot.lane.b32.xlu0 %v1037, 120
        %v1112 = vpop.permute.xlu0 %1111
        %s1114 = scalar_lea.vmem [#allocation4], 8
        %1115 = vst.msk [vmem:[%s1114] sm:$0xff] %vm1100, %v1112
        %1117 = vrot.lane.b32.xlu0 %v1095, 120
        %v1118 = vpop.permute.xlu0 %1117
        %s1120 = scalar_lea.vmem [#allocation5], 8
        %1121 = vst.msk [vmem:[%s1120] sm:$0xff] %vm1100, %v1118
        %1122 = vrot.lane.b32.xlu0 %v979, 112
        %v1123 = vpop.permute.xlu0 %1122
        %s1125 = scalar_lea.vmem [#allocation3], 16
        %1126 = vst.msk [vmem:[%s1125] sm:$0xff] %vm1100, %v1123
        %1127 = vrot.lane.b32.xlu0 %v1037, 112
        %v1128 = vpop.permute.xlu0 %1127
        %s1130 = scalar_lea.vmem [#allocation4], 16
        %1131 = vst.msk [vmem:[%s1130] sm:$0xff] %vm1100, %v1128
        %1132 = vrot.lane.b32.xlu0 %v1095, 112
        %v1133 = vpop.permute.xlu0 %1132
        %s1135 = scalar_lea.vmem [#allocation5], 16
        %1136 = vst.msk [vmem:[%s1135] sm:$0xff] %vm1100, %v1133
        %1137 = vrot.lane.b32.xlu0 %v979, 104
        %v1138 = vpop.permute.xlu0 %1137
        %s1140 = scalar_lea.vmem [#allocation3], 24
        %1141 = vst.msk [vmem:[%s1140] sm:$0xff] %vm1100, %v1138
        %1142 = vrot.lane.b32.xlu0 %v1037, 104
        %v1143 = vpop.permute.xlu0 %1142
        %s1145 = scalar_lea.vmem [#allocation4], 24
        %1146 = vst.msk [vmem:[%s1145] sm:$0xff] %vm1100, %v1143
        %1147 = vrot.lane.b32.xlu0 %v1095, 104
        %v1148 = vpop.permute.xlu0 %1147
        %s1150 = scalar_lea.vmem [#allocation5], 24
        %1151 = vst.msk [vmem:[%s1150] sm:$0xff] %vm1100, %v1148
        %v1152 = vld [vmem:[#allocation3] sm:$0xff]
        %v1153 = vld [vmem:[#allocation3 + $0x8] sm:$0xff]
        %v1154 = vld [vmem:[#allocation3 + $0x10] sm:$0xff]
        %v1155 = vld [vmem:[#allocation3 + $0x18] sm:$0xff]
        %v1156 = vpack.c.bf16 %v1152, %v1152
        %v1157 = vpack.c.bf16 %v1153, %v1153
        %v1158 = vpack.c.bf16 %v1154, %v1154
        %v1159 = vpack.c.bf16 %v1155, %v1155
        %v1160 = vld [vmem:[#allocation4] sm:$0xff]
        %v1161 = vld [vmem:[#allocation4 + $0x8] sm:$0xff]
        %v1162 = vld [vmem:[#allocation4 + $0x10] sm:$0xff]
        %v1163 = vld [vmem:[#allocation4 + $0x18] sm:$0xff]
        %v1164 = vpack.c.bf16 %v1160, %v1160
        %v1165 = vpack.c.bf16 %v1161, %v1161
        %v1166 = vpack.c.bf16 %v1162, %v1162
        %v1167 = vpack.c.bf16 %v1163, %v1163
        %v1168 = vld [vmem:[#allocation5] sm:$0xff]
        %v1169 = vld [vmem:[#allocation5 + $0x8] sm:$0xff]
        %v1170 = vld [vmem:[#allocation5 + $0x10] sm:$0xff]
        %v1171 = vld [vmem:[#allocation5 + $0x18] sm:$0xff]
        %v1172 = vpack.c.bf16 %v1168, %v1168
        %v1173 = vpack.c.bf16 %v1169, %v1169
        %v1174 = vpack.c.bf16 %v1170, %v1170
        %v1175 = vpack.c.bf16 %v1171, %v1171
        %v1177 = vlaneseq
        %v1178 = vshrl.u32 %v1177, 7
        %v1179 = vsub.s32 0, %v1178
        %v1180 = vrot.slane %v918, %v1179
        %v1183 = vsel %vm1100, %v1156, 0
        %v1186 = vsel %vm1100, %v1164, 0
        %1188 = vmatprep.subr.bf16.mxu0 0
        %1189 = vmatpush1.bf16.xpose.msra.mxu0 0
        %1190 = vmatprep.subr.bf16.mxu0 0
        %1191 = vmatpush1.bf16.xpose.msra.mxu0 0
        %1192 = vmatprep.subr.bf16.mxu0 0
        %1193 = vmatpush1.bf16.xpose.msra.mxu0 0
        %1194 = vmatprep.subr.bf16.mxu0 0
        %1195 = vmatpush1.bf16.xpose.msra.mxu0 0
        %1196 = vmatprep.subr.bf16.mxu0 0
        %1197 = vmatpush1.bf16.xpose.msra.mxu0 0
        %1198 = vmatprep.subr.bf16.mxu0 0
        %1199 = vmatpush1.bf16.xpose.msra.mxu0 0
        %1200 = vmatprep.subr.bf16.mxu0 0
        %1201 = vmatpush1.bf16.xpose.msra.mxu0 0
        %1202 = vmatprep.subr.bf16.mxu0 0
        %1203 = vmatpush1.bf16.xpose.msra.mxu0 %v1186
        %1204 = vmatprep.subr.bf16.mxu0 0
        %1205 = vmatpush2.bf16.xpose.msra.mxu0 0
        %1206 = vmatprep.subr.bf16.mxu0 0
        %1207 = vmatpush2.bf16.xpose.msra.mxu0 0
        %1208 = vmatprep.subr.bf16.mxu0 0
        %1209 = vmatpush2.bf16.xpose.msra.mxu0 0
        %1210 = vmatprep.subr.bf16.mxu0 0
        %1211 = vmatpush2.bf16.xpose.msra.mxu0 0
        %1212 = vmatprep.subr.bf16.mxu0 0
        %1213 = vmatpush2.bf16.xpose.msra.mxu0 0
        %1214 = vmatprep.subr.bf16.mxu0 0
        %1215 = vmatpush2.bf16.xpose.msra.mxu0 0
        %1216 = vmatprep.subr.bf16.mxu0 0
        %1217 = vmatpush2.bf16.xpose.msra.mxu0 0
        %1218 = vmatprep.subr.bf16.mxu0 0
        %1219 = vmatpush2.bf16.xpose.msra.mxu0 0
        %1220 = vmatprep.mubr.bf16.mxu0 0
        %1221 = vmatmul.mubr.bf16.gmra.mxu0 %v1183
        %v1222 = vpop.f32.mrf.mxu0
        %v1223 = vadd.f32 %v1180, %v1222
        %v1224 = vpop.f32.mrf.mxu0
        %v1225 = vpop.f32.mrf.mxu0
        %v1226 = vpop.f32.mrf.mxu0
        %1227 = vdwg.mxu0
        %v1229 = vsel %vm1100, %v1157, 0
        %v1232 = vsel %vm1100, %v1165, 0
        %1234 = vmatprep.subr.bf16.mxu0 0
        %1235 = vmatpush1.bf16.xpose.msra.mxu0 0
        %1236 = vmatprep.subr.bf16.mxu0 0
        %1237 = vmatpush1.bf16.xpose.msra.mxu0 0
        %1238 = vmatprep.subr.bf16.mxu0 0
        %1239 = vmatpush1.bf16.xpose.msra.mxu0 0
        %1240 = vmatprep.subr.bf16.mxu0 0
        %1241 = vmatpush1.bf16.xpose.msra.mxu0 0
        %1242 = vmatprep.subr.bf16.mxu0 0
        %1243 = vmatpush1.bf16.xpose.msra.mxu0 0
        %1244 = vmatprep.subr.bf16.mxu0 0
        %1245 = vmatpush1.bf16.xpose.msra.mxu0 0
        %1246 = vmatprep.subr.bf16.mxu0 0
        %1247 = vmatpush1.bf16.xpose.msra.mxu0 0
        %1248 = vmatprep.subr.bf16.mxu0 0
        %1249 = vmatpush1.bf16.xpose.msra.mxu0 %v1232
        %1250 = vmatprep.subr.bf16.mxu0 0
        %1251 = vmatpush2.bf16.xpose.msra.mxu0 0
        %1252 = vmatprep.subr.bf16.mxu0 0
        %1253 = vmatpush2.bf16.xpose.msra.mxu0 0
        %1254 = vmatprep.subr.bf16.mxu0 0
        %1255 = vmatpush2.bf16.xpose.msra.mxu0 0
        %1256 = vmatprep.subr.bf16.mxu0 0
        %1257 = vmatpush2.bf16.xpose.msra.mxu0 0
        %1258 = vmatprep.subr.bf16.mxu0 0
        %1259 = vmatpush2.bf16.xpose.msra.mxu0 0
        %1260 = vmatprep.subr.bf16.mxu0 0
        %1261 = vmatpush2.bf16.xpose.msra.mxu0 0
        %1262 = vmatprep.subr.bf16.mxu0 0
        %1263 = vmatpush2.bf16.xpose.msra.mxu0 0
        %1264 = vmatprep.subr.bf16.mxu0 0
        %1265 = vmatpush2.bf16.xpose.msra.mxu0 0
        %1266 = vmatprep.mubr.bf16.mxu0 0
        %1267 = vmatmul.mubr.bf16.gmra.mxu0 %v1229
        %v1268 = vpop.f32.mrf.mxu0
        %v1269 = vadd.f32 %v1180, %v1268
        %v1270 = vpop.f32.mrf.mxu0
        %v1271 = vpop.f32.mrf.mxu0
        %v1272 = vpop.f32.mrf.mxu0
        %1273 = vdwg.mxu0
        %v1275 = vsel %vm1100, %v1158, 0
        %v1278 = vsel %vm1100, %v1166, 0
        %1280 = vmatprep.subr.bf16.mxu0 0
        %1281 = vmatpush1.bf16.xpose.msra.mxu0 0
        %1282 = vmatprep.subr.bf16.mxu0 0
        %1283 = vmatpush1.bf16.xpose.msra.mxu0 0
        %1284 = vmatprep.subr.bf16.mxu0 0
        %1285 = vmatpush1.bf16.xpose.msra.mxu0 0
        %1286 = vmatprep.subr.bf16.mxu0 0
        %1287 = vmatpush1.bf16.xpose.msra.mxu0 0
        %1288 = vmatprep.subr.bf16.mxu0 0
        %1289 = vmatpush1.bf16.xpose.msra.mxu0 0
        %1290 = vmatprep.subr.bf16.mxu0 0
        %1291 = vmatpush1.bf16.xpose.msra.mxu0 0
        %1292 = vmatprep.subr.bf16.mxu0 0
        %1293 = vmatpush1.bf16.xpose.msra.mxu0 0
        %1294 = vmatprep.subr.bf16.mxu0 0
        %1295 = vmatpush1.bf16.xpose.msra.mxu0 %v1278
        %1296 = vmatprep.subr.bf16.mxu0 0
        %1297 = vmatpush2.bf16.xpose.msra.mxu0 0
        %1298 = vmatprep.subr.bf16.mxu0 0
        %1299 = vmatpush2.bf16.xpose.msra.mxu0 0
        %1300 = vmatprep.subr.bf16.mxu0 0
        %1301 = vmatpush2.bf16.xpose.msra.mxu0 0
        %1302 = vmatprep.subr.bf16.mxu0 0
        %1303 = vmatpush2.bf16.xpose.msra.mxu0 0
        %1304 = vmatprep.subr.bf16.mxu0 0
        %1305 = vmatpush2.bf16.xpose.msra.mxu0 0
        %1306 = vmatprep.subr.bf16.mxu0 0
        %1307 = vmatpush2.bf16.xpose.msra.mxu0 0
        %1308 = vmatprep.subr.bf16.mxu0 0
        %1309 = vmatpush2.bf16.xpose.msra.mxu0 0
        %1310 = vmatprep.subr.bf16.mxu0 0
        %1311 = vmatpush2.bf16.xpose.msra.mxu0 0
        %1312 = vmatprep.mubr.bf16.mxu0 0
        %1313 = vmatmul.mubr.bf16.gmra.mxu0 %v1275
        %v1314 = vpop.f32.mrf.mxu0
        %v1315 = vadd.f32 %v1180, %v1314
        %v1316 = vpop.f32.mrf.mxu0
        %v1317 = vpop.f32.mrf.mxu0
        %v1318 = vpop.f32.mrf.mxu0
        %1319 = vdwg.mxu0
        %v1321 = vsel %vm1100, %v1159, 0
        %v1324 = vsel %vm1100, %v1167, 0
        %1326 = vmatprep.subr.bf16.mxu0 0
        %1327 = vmatpush1.bf16.xpose.msra.mxu0 0
        %1328 = vmatprep.subr.bf16.mxu0 0
        %1329 = vmatpush1.bf16.xpose.msra.mxu0 0
        %1330 = vmatprep.subr.bf16.mxu0 0
        %1331 = vmatpush1.bf16.xpose.msra.mxu0 0
        %1332 = vmatprep.subr.bf16.mxu0 0
        %1333 = vmatpush1.bf16.xpose.msra.mxu0 0
        %1334 = vmatprep.subr.bf16.mxu0 0
        %1335 = vmatpush1.bf16.xpose.msra.mxu0 0
        %1336 = vmatprep.subr.bf16.mxu0 0
        %1337 = vmatpush1.bf16.xpose.msra.mxu0 0
        %1338 = vmatprep.subr.bf16.mxu0 0
        %1339 = vmatpush1.bf16.xpose.msra.mxu0 0
        %1340 = vmatprep.subr.bf16.mxu0 0
        %1341 = vmatpush1.bf16.xpose.msra.mxu0 %v1324
        %1342 = vmatprep.subr.bf16.mxu0 0
        %1343 = vmatpush2.bf16.xpose.msra.mxu0 0
        %1344 = vmatprep.subr.bf16.mxu0 0
        %1345 = vmatpush2.bf16.xpose.msra.mxu0 0
        %1346 = vmatprep.subr.bf16.mxu0 0
        %1347 = vmatpush2.bf16.xpose.msra.mxu0 0
        %1348 = vmatprep.subr.bf16.mxu0 0
        %1349 = vmatpush2.bf16.xpose.msra.mxu0 0
        %1350 = vmatprep.subr.bf16.mxu0 0
        %1351 = vmatpush2.bf16.xpose.msra.mxu0 0
        %1352 = vmatprep.subr.bf16.mxu0 0
        %1353 = vmatpush2.bf16.xpose.msra.mxu0 0
        %1354 = vmatprep.subr.bf16.mxu0 0
        %1355 = vmatpush2.bf16.xpose.msra.mxu0 0
        %1356 = vmatprep.subr.bf16.mxu0 0
        %1357 = vmatpush2.bf16.xpose.msra.mxu0 0
        %1358 = vmatprep.mubr.bf16.mxu0 0
        %1359 = vmatmul.mubr.bf16.gmra.mxu0 %v1321
        %v1360 = vpop.f32.mrf.mxu0
        %v1361 = vadd.f32 %v1180, %v1360
        %v1362 = vpop.f32.mrf.mxu0
        %v1363 = vpop.f32.mrf.mxu0
        %v1364 = vpop.f32.mrf.mxu0
        %1365 = vdwg.mxu0
        %v1366 = vsel %vm1100, %v1223, -inf
        %1367 = vmax.xlane.f32.xlu0 %v1366
        %v1368 = vpop.xlane.xlu0 %1367
        %v1369 = vsel %vm1100, %v1269, -inf
        %1370 = vmax.xlane.f32.xlu0 %v1369
        %v1371 = vpop.xlane.xlu0 %1370
        %v1372 = vsel %vm1100, %v1315, -inf
        %1373 = vmax.xlane.f32.xlu0 %v1372
        %v1374 = vpop.xlane.xlu0 %1373
        %v1375 = vsel %vm1100, %v1361, -inf
        %1376 = vmax.xlane.f32.xlu0 %v1375
        %v1377 = vpop.xlane.xlu0 %1376
        %v1378 = vsub.f32 %v1223, %v1368
        %v1379 = vsub.f32 %v1269, %v1371
        %v1380 = vsub.f32 %v1315, %v1374
        %v1381 = vsub.f32 %v1361, %v1377
        %v1382 = vmul.f32 %v1378, 1.442695
        %v1383 = vpow.pop %v1382
        %v1384 = vmul.f32 %v1379, 1.442695
        %v1385 = vpow.pop %v1384
        %v1386 = vmul.f32 %v1380, 1.442695
        %v1387 = vpow.pop %v1386
        %v1388 = vmul.f32 %v1381, 1.442695
        %v1389 = vpow.pop %v1388
        %v1390 = vsel %vm1100, %v1383, 0.0
        %1391 = vadd.xlane.f32.xlu0 %v1390
        %v1392 = vpop.xlane.xlu0 %1391
        %v1393 = vsel %vm1100, %v1385, 0.0
        %1394 = vadd.xlane.f32.xlu0 %v1393
        %v1395 = vpop.xlane.xlu0 %1394
        %v1396 = vsel %vm1100, %v1387, 0.0
        %1397 = vadd.xlane.f32.xlu0 %v1396
        %v1398 = vpop.xlane.xlu0 %1397
        %v1399 = vsel %vm1100, %v1389, 0.0
        %1400 = vadd.xlane.f32.xlu0 %v1399
        %v1401 = vpop.xlane.xlu0 %1400
        %v1402 = vrcp.pop %v1392
        %v1403 = vrcp.pop %v1395
        %v1404 = vrcp.pop %v1398
        %v1405 = vrcp.pop %v1401
        %v1406 = vmul.f32 %v1383, %v1402
        %v1407 = vmul.f32 %v1385, %v1403
        %v1408 = vmul.f32 %v1387, %v1404
        %v1409 = vmul.f32 %v1389, %v1405
        %v1410 = vpack.c.bf16 %v1406, %v1406
        %v1411 = vpack.c.bf16 %v1407, %v1407
        %v1412 = vpack.c.bf16 %v1408, %v1408
        %v1413 = vpack.c.bf16 %v1409, %v1409
        %v1415 = vsel %vm1100, %v1410, 0
        %vm1417 = vcmask 1043456
        %v1419 = vsel %vm1417, %v1172, 0
        %1421 = vmatprep.subr.bf16.mxu0 0
        %1422 = vmatpush1.bf16.msra.mxu0 0
        %1423 = vmatprep.subr.bf16.mxu0 0
        %1424 = vmatpush1.bf16.msra.mxu0 0
        %1425 = vmatprep.subr.bf16.mxu0 0
        %1426 = vmatpush1.bf16.msra.mxu0 0
        %1427 = vmatprep.subr.bf16.mxu0 0
        %1428 = vmatpush1.bf16.msra.mxu0 0
        %1429 = vmatprep.subr.bf16.mxu0 0
        %1430 = vmatpush1.bf16.msra.mxu0 0
        %1431 = vmatprep.subr.bf16.mxu0 0
        %1432 = vmatpush1.bf16.msra.mxu0 0
        %1433 = vmatprep.subr.bf16.mxu0 0
        %1434 = vmatpush1.bf16.msra.mxu0 0
        %1435 = vmatprep.subr.bf16.mxu0 0
        %1436 = vmatpush1.bf16.msra.mxu0 %v1419
        %1437 = vmatprep.subr.bf16.mxu0 0
        %1438 = vmatpush2.bf16.msra.mxu0 0
        %1439 = vmatprep.subr.bf16.mxu0 0
        %1440 = vmatpush2.bf16.msra.mxu0 0
        %1441 = vmatprep.subr.bf16.mxu0 0
        %1442 = vmatpush2.bf16.msra.mxu0 0
        %1443 = vmatprep.subr.bf16.mxu0 0
        %1444 = vmatpush2.bf16.msra.mxu0 0
        %1445 = vmatprep.subr.bf16.mxu0 0
        %1446 = vmatpush2.bf16.msra.mxu0 0
        %1447 = vmatprep.subr.bf16.mxu0 0
        %1448 = vmatpush2.bf16.msra.mxu0 0
        %1449 = vmatprep.subr.bf16.mxu0 0
        %1450 = vmatpush2.bf16.msra.mxu0 0
        %1451 = vmatprep.subr.bf16.mxu0 0
        %1452 = vmatpush2.bf16.msra.mxu0 0
        %1453 = vmatprep.mubr.bf16.mxu0 0
        %1454 = vmatmul.mubr.bf16.gmra.mxu0 %v1415
        %v1455 = vpop.f32.mrf.mxu0
        %v1456 = vadd.f32 0.0, %v1455
        %v1457 = vpop.f32.mrf.mxu0
        %v1458 = vpop.f32.mrf.mxu0
        %v1459 = vpop.f32.mrf.mxu0
        %1460 = vdwg.mxu0
        %v1462 = vsel %vm1100, %v1411, 0
        %v1465 = vsel %vm1417, %v1173, 0
        %1467 = vmatprep.subr.bf16.mxu0 0
        %1468 = vmatpush1.bf16.msra.mxu0 0
        %1469 = vmatprep.subr.bf16.mxu0 0
        %1470 = vmatpush1.bf16.msra.mxu0 0
        %1471 = vmatprep.subr.bf16.mxu0 0
        %1472 = vmatpush1.bf16.msra.mxu0 0
        %1473 = vmatprep.subr.bf16.mxu0 0
        %1474 = vmatpush1.bf16.msra.mxu0 0
        %1475 = vmatprep.subr.bf16.mxu0 0
        %1476 = vmatpush1.bf16.msra.mxu0 0
        %1477 = vmatprep.subr.bf16.mxu0 0
        %1478 = vmatpush1.bf16.msra.mxu0 0
        %1479 = vmatprep.subr.bf16.mxu0 0
        %1480 = vmatpush1.bf16.msra.mxu0 0
        %1481 = vmatprep.subr.bf16.mxu0 0
        %1482 = vmatpush1.bf16.msra.mxu0 %v1465
        %1483 = vmatprep.subr.bf16.mxu0 0
        %1484 = vmatpush2.bf16.msra.mxu0 0
        %1485 = vmatprep.subr.bf16.mxu0 0
        %1486 = vmatpush2.bf16.msra.mxu0 0
        %1487 = vmatprep.subr.bf16.mxu0 0
        %1488 = vmatpush2.bf16.msra.mxu0 0
        %1489 = vmatprep.subr.bf16.mxu0 0
        %1490 = vmatpush2.bf16.msra.mxu0 0
        %1491 = vmatprep.subr.bf16.mxu0 0
        %1492 = vmatpush2.bf16.msra.mxu0 0
        %1493 = vmatprep.subr.bf16.mxu0 0
        %1494 = vmatpush2.bf16.msra.mxu0 0
        %1495 = vmatprep.subr.bf16.mxu0 0
        %1496 = vmatpush2.bf16.msra.mxu0 0
        %1497 = vmatprep.subr.bf16.mxu0 0
        %1498 = vmatpush2.bf16.msra.mxu0 0
        %1499 = vmatprep.mubr.bf16.mxu0 0
        %1500 = vmatmul.mubr.bf16.gmra.mxu0 %v1462
        %v1501 = vpop.f32.mrf.mxu0
        %v1502 = vadd.f32 0.0, %v1501
        %v1503 = vpop.f32.mrf.mxu0
        %v1504 = vpop.f32.mrf.mxu0
        %v1505 = vpop.f32.mrf.mxu0
        %1506 = vdwg.mxu0
        %v1508 = vsel %vm1100, %v1412, 0
        %v1511 = vsel %vm1417, %v1174, 0
        %1513 = vmatprep.subr.bf16.mxu0 0
        %1514 = vmatpush1.bf16.msra.mxu0 0
        %1515 = vmatprep.subr.bf16.mxu0 0
        %1516 = vmatpush1.bf16.msra.mxu0 0
        %1517 = vmatprep.subr.bf16.mxu0 0
        %1518 = vmatpush1.bf16.msra.mxu0 0
        %1519 = vmatprep.subr.bf16.mxu0 0
        %1520 = vmatpush1.bf16.msra.mxu0 0
        %1521 = vmatprep.subr.bf16.mxu0 0
        %1522 = vmatpush1.bf16.msra.mxu0 0
        %1523 = vmatprep.subr.bf16.mxu0 0
        %1524 = vmatpush1.bf16.msra.mxu0 0
        %1525 = vmatprep.subr.bf16.mxu0 0
        %1526 = vmatpush1.bf16.msra.mxu0 0
        %1527 = vmatprep.subr.bf16.mxu0 0
        %1528 = vmatpush1.bf16.msra.mxu0 %v1511
        %1529 = vmatprep.subr.bf16.mxu0 0
        %1530 = vmatpush2.bf16.msra.mxu0 0
        %1531 = vmatprep.subr.bf16.mxu0 0
        %1532 = vmatpush2.bf16.msra.mxu0 0
        %1533 = vmatprep.subr.bf16.mxu0 0
        %1534 = vmatpush2.bf16.msra.mxu0 0
        %1535 = vmatprep.subr.bf16.mxu0 0
        %1536 = vmatpush2.bf16.msra.mxu0 0
        %1537 = vmatprep.subr.bf16.mxu0 0
        %1538 = vmatpush2.bf16.msra.mxu0 0
        %1539 = vmatprep.subr.bf16.mxu0 0
        %1540 = vmatpush2.bf16.msra.mxu0 0
        %1541 = vmatprep.subr.bf16.mxu0 0
        %1542 = vmatpush2.bf16.msra.mxu0 0
        %1543 = vmatprep.subr.bf16.mxu0 0
        %1544 = vmatpush2.bf16.msra.mxu0 0
        %1545 = vmatprep.mubr.bf16.mxu0 0
        %1546 = vmatmul.mubr.bf16.gmra.mxu0 %v1508
        %v1547 = vpop.f32.mrf.mxu0
        %v1548 = vadd.f32 0.0, %v1547
        %v1549 = vpop.f32.mrf.mxu0
        %v1550 = vpop.f32.mrf.mxu0
        %v1551 = vpop.f32.mrf.mxu0
        %1552 = vdwg.mxu0
        %v1554 = vsel %vm1100, %v1413, 0
        %v1557 = vsel %vm1417, %v1175, 0
        %1559 = vmatprep.subr.bf16.mxu0 0
        %1560 = vmatpush1.bf16.msra.mxu0 0
        %1561 = vmatprep.subr.bf16.mxu0 0
        %1562 = vmatpush1.bf16.msra.mxu0 0
        %1563 = vmatprep.subr.bf16.mxu0 0
        %1564 = vmatpush1.bf16.msra.mxu0 0
        %1565 = vmatprep.subr.bf16.mxu0 0
        %1566 = vmatpush1.bf16.msra.mxu0 0
        %1567 = vmatprep.subr.bf16.mxu0 0
        %1568 = vmatpush1.bf16.msra.mxu0 0
        %1569 = vmatprep.subr.bf16.mxu0 0
        %1570 = vmatpush1.bf16.msra.mxu0 0
        %1571 = vmatprep.subr.bf16.mxu0 0
        %1572 = vmatpush1.bf16.msra.mxu0 0
        %1573 = vmatprep.subr.bf16.mxu0 0
        %1574 = vmatpush1.bf16.msra.mxu0 %v1557
        %1575 = vmatprep.subr.bf16.mxu0 0
        %1576 = vmatpush2.bf16.msra.mxu0 0
        %1577 = vmatprep.subr.bf16.mxu0 0
        %1578 = vmatpush2.bf16.msra.mxu0 0
        %1579 = vmatprep.subr.bf16.mxu0 0
        %1580 = vmatpush2.bf16.msra.mxu0 0
        %1581 = vmatprep.subr.bf16.mxu0 0
        %1582 = vmatpush2.bf16.msra.mxu0 0
        %1583 = vmatprep.subr.bf16.mxu0 0
        %1584 = vmatpush2.bf16.msra.mxu0 0
        %1585 = vmatprep.subr.bf16.mxu0 0
        %1586 = vmatpush2.bf16.msra.mxu0 0
        %1587 = vmatprep.subr.bf16.mxu0 0
        %1588 = vmatpush2.bf16.msra.mxu0 0
        %1589 = vmatprep.subr.bf16.mxu0 0
        %1590 = vmatpush2.bf16.msra.mxu0 0
        %1591 = vmatprep.mubr.bf16.mxu0 0
        %1592 = vmatmul.mubr.bf16.gmra.mxu0 %v1554
        %v1593 = vpop.f32.mrf.mxu0
        %v1594 = vadd.f32 0.0, %v1593
        %v1595 = vpop.f32.mrf.mxu0
        %v1596 = vpop.f32.mrf.mxu0
        %v1597 = vpop.f32.mrf.mxu0
        %1598 = vdwg.mxu0
        %v1599 = vpack.c.bf16 %v1456, %v1456
        %v1600 = vpack.c.bf16 %v1502, %v1502
        %v1601 = vpack.c.bf16 %v1548, %v1548
        %v1602 = vpack.c.bf16 %v1594, %v1594
        %v1604 = vsel %vm1100, %v1599, 0
        %v1607 = vsel %vm1417, %v888, 0
        %1609 = vmatprep.subr.bf16.mxu0 0
        %1610 = vmatpush1.bf16.msra.mxu0 0
        %1611 = vmatprep.subr.bf16.mxu0 0
        %1612 = vmatpush1.bf16.msra.mxu0 0
        %1613 = vmatprep.subr.bf16.mxu0 0
        %1614 = vmatpush1.bf16.msra.mxu0 0
        %1615 = vmatprep.subr.bf16.mxu0 0
        %1616 = vmatpush1.bf16.msra.mxu0 0
        %1617 = vmatprep.subr.bf16.mxu0 0
        %1618 = vmatpush1.bf16.msra.mxu0 0
        %1619 = vmatprep.subr.bf16.mxu0 0
        %1620 = vmatpush1.bf16.msra.mxu0 0
        %1621 = vmatprep.subr.bf16.mxu0 0
        %1622 = vmatpush1.bf16.msra.mxu0 0
        %1623 = vmatprep.subr.bf16.mxu0 0
        %1624 = vmatpush1.bf16.msra.mxu0 %v1607
        %1625 = vmatprep.subr.bf16.mxu0 0
        %1626 = vmatpush2.bf16.msra.mxu0 0
        %1627 = vmatprep.subr.bf16.mxu0 0
        %1628 = vmatpush2.bf16.msra.mxu0 0
        %1629 = vmatprep.subr.bf16.mxu0 0
        %1630 = vmatpush2.bf16.msra.mxu0 0
        %1631 = vmatprep.subr.bf16.mxu0 0
        %1632 = vmatpush2.bf16.msra.mxu0 0
        %1633 = vmatprep.subr.bf16.mxu0 0
        %1634 = vmatpush2.bf16.msra.mxu0 0
        %1635 = vmatprep.subr.bf16.mxu0 0
        %1636 = vmatpush2.bf16.msra.mxu0 0
        %1637 = vmatprep.subr.bf16.mxu0 0
        %1638 = vmatpush2.bf16.msra.mxu0 0
        %1639 = vmatprep.subr.bf16.mxu0 0
        %1640 = vmatpush2.bf16.msra.mxu0 0
        %1641 = vmatprep.mubr.bf16.mxu0 0
        %1642 = vmatmul.mubr.bf16.gmra.mxu0 %v1604
        %v1643 = vpop.f32.mrf.mxu0
        %v1644 = vadd.f32 0.0, %v1643
        %v1645 = vpop.f32.mrf.mxu0
        %v1646 = vpop.f32.mrf.mxu0
        %v1647 = vpop.f32.mrf.mxu0
        %1648 = vdwg.mxu0
        %v1650 = vsel %vm1100, %v1600, 0
        %v1653 = vsel %vm1417, %v889, 0
        %1655 = vmatprep.subr.bf16.mxu0 0
        %1656 = vmatpush1.bf16.msra.mxu0 0
        %1657 = vmatprep.subr.bf16.mxu0 0
        %1658 = vmatpush1.bf16.msra.mxu0 0
        %1659 = vmatprep.subr.bf16.mxu0 0
        %1660 = vmatpush1.bf16.msra.mxu0 0
        %1661 = vmatprep.subr.bf16.mxu0 0
        %1662 = vmatpush1.bf16.msra.mxu0 0
        %1663 = vmatprep.subr.bf16.mxu0 0
        %1664 = vmatpush1.bf16.msra.mxu0 0
        %1665 = vmatprep.subr.bf16.mxu0 0
        %1666 = vmatpush1.bf16.msra.mxu0 0
        %1667 = vmatprep.subr.bf16.mxu0 0
        %1668 = vmatpush1.bf16.msra.mxu0 0
        %1669 = vmatprep.subr.bf16.mxu0 0
        %1670 = vmatpush1.bf16.msra.mxu0 %v1653
        %1671 = vmatprep.subr.bf16.mxu0 0
        %1672 = vmatpush2.bf16.msra.mxu0 0
        %1673 = vmatprep.subr.bf16.mxu0 0
        %1674 = vmatpush2.bf16.msra.mxu0 0
        %1675 = vmatprep.subr.bf16.mxu0 0
        %1676 = vmatpush2.bf16.msra.mxu0 0
        %1677 = vmatprep.subr.bf16.mxu0 0
        %1678 = vmatpush2.bf16.msra.mxu0 0
        %1679 = vmatprep.subr.bf16.mxu0 0
        %1680 = vmatpush2.bf16.msra.mxu0 0
        %1681 = vmatprep.subr.bf16.mxu0 0
        %1682 = vmatpush2.bf16.msra.mxu0 0
        %1683 = vmatprep.subr.bf16.mxu0 0
        %1684 = vmatpush2.bf16.msra.mxu0 0
        %1685 = vmatprep.subr.bf16.mxu0 0
        %1686 = vmatpush2.bf16.msra.mxu0 0
        %1687 = vmatprep.mubr.bf16.mxu0 0
        %1688 = vmatmul.mubr.bf16.gmra.mxu0 %v1650
        %v1689 = vpop.f32.mrf.mxu0
        %v1690 = vadd.f32 0.0, %v1689
        %v1691 = vpop.f32.mrf.mxu0
        %v1692 = vpop.f32.mrf.mxu0
        %v1693 = vpop.f32.mrf.mxu0
        %1694 = vdwg.mxu0
        %v1696 = vsel %vm1100, %v1601, 0
        %v1699 = vsel %vm1417, %v890, 0
        %1701 = vmatprep.subr.bf16.mxu0 0
        %1702 = vmatpush1.bf16.msra.mxu0 0
        %1703 = vmatprep.subr.bf16.mxu0 0
        %1704 = vmatpush1.bf16.msra.mxu0 0
        %1705 = vmatprep.subr.bf16.mxu0 0
        %1706 = vmatpush1.bf16.msra.mxu0 0
        %1707 = vmatprep.subr.bf16.mxu0 0
        %1708 = vmatpush1.bf16.msra.mxu0 0
        %1709 = vmatprep.subr.bf16.mxu0 0
        %1710 = vmatpush1.bf16.msra.mxu0 0
        %1711 = vmatprep.subr.bf16.mxu0 0
        %1712 = vmatpush1.bf16.msra.mxu0 0
        %1713 = vmatprep.subr.bf16.mxu0 0
        %1714 = vmatpush1.bf16.msra.mxu0 0
        %1715 = vmatprep.subr.bf16.mxu0 0
        %1716 = vmatpush1.bf16.msra.mxu0 %v1699
        %1717 = vmatprep.subr.bf16.mxu0 0
        %1718 = vmatpush2.bf16.msra.mxu0 0
        %1719 = vmatprep.subr.bf16.mxu0 0
        %1720 = vmatpush2.bf16.msra.mxu0 0
        %1721 = vmatprep.subr.bf16.mxu0 0
        %1722 = vmatpush2.bf16.msra.mxu0 0
        %1723 = vmatprep.subr.bf16.mxu0 0
        %1724 = vmatpush2.bf16.msra.mxu0 0
        %1725 = vmatprep.subr.bf16.mxu0 0
        %1726 = vmatpush2.bf16.msra.mxu0 0
        %1727 = vmatprep.subr.bf16.mxu0 0
        %1728 = vmatpush2.bf16.msra.mxu0 0
        %1729 = vmatprep.subr.bf16.mxu0 0
        %1730 = vmatpush2.bf16.msra.mxu0 0
        %1731 = vmatprep.subr.bf16.mxu0 0
        %1732 = vmatpush2.bf16.msra.mxu0 0
        %1733 = vmatprep.mubr.bf16.mxu0 0
        %1734 = vmatmul.mubr.bf16.gmra.mxu0 %v1696
        %v1735 = vpop.f32.mrf.mxu0
        %v1736 = vadd.f32 0.0, %v1735
        %v1737 = vpop.f32.mrf.mxu0
        %v1738 = vpop.f32.mrf.mxu0
        %v1739 = vpop.f32.mrf.mxu0
        %1740 = vdwg.mxu0
        %v1742 = vsel %vm1100, %v1602, 0
        %v1745 = vsel %vm1417, %v891, 0
        %1747 = vmatprep.subr.bf16.mxu0 0
        %1748 = vmatpush1.bf16.msra.mxu0 0
        %1749 = vmatprep.subr.bf16.mxu0 0
        %1750 = vmatpush1.bf16.msra.mxu0 0
        %1751 = vmatprep.subr.bf16.mxu0 0
        %1752 = vmatpush1.bf16.msra.mxu0 0
        %1753 = vmatprep.subr.bf16.mxu0 0
        %1754 = vmatpush1.bf16.msra.mxu0 0
        %1755 = vmatprep.subr.bf16.mxu0 0
        %1756 = vmatpush1.bf16.msra.mxu0 0
        %1757 = vmatprep.subr.bf16.mxu0 0
        %1758 = vmatpush1.bf16.msra.mxu0 0
        %1759 = vmatprep.subr.bf16.mxu0 0
        %1760 = vmatpush1.bf16.msra.mxu0 0
        %1761 = vmatprep.subr.bf16.mxu0 0
        %1762 = vmatpush1.bf16.msra.mxu0 %v1745
        %1763 = vmatprep.subr.bf16.mxu0 0
        %1764 = vmatpush2.bf16.msra.mxu0 0
        %1765 = vmatprep.subr.bf16.mxu0 0
        %1766 = vmatpush2.bf16.msra.mxu0 0
        %1767 = vmatprep.subr.bf16.mxu0 0
        %1768 = vmatpush2.bf16.msra.mxu0 0
        %1769 = vmatprep.subr.bf16.mxu0 0
        %1770 = vmatpush2.bf16.msra.mxu0 0
        %1771 = vmatprep.subr.bf16.mxu0 0
        %1772 = vmatpush2.bf16.msra.mxu0 0
        %1773 = vmatprep.subr.bf16.mxu0 0
        %1774 = vmatpush2.bf16.msra.mxu0 0
        %1775 = vmatprep.subr.bf16.mxu0 0
        %1776 = vmatpush2.bf16.msra.mxu0 0
        %1777 = vmatprep.subr.bf16.mxu0 0
        %1778 = vmatpush2.bf16.msra.mxu0 0
        %1779 = vmatprep.mubr.bf16.mxu0 0
        %1780 = vmatmul.mubr.bf16.gmra.mxu0 %v1742
        %v1781 = vpop.f32.mrf.mxu0
        %v1782 = vadd.f32 0.0, %v1781
        %v1783 = vpop.f32.mrf.mxu0
        %v1784 = vpop.f32.mrf.mxu0
        %v1785 = vpop.f32.mrf.mxu0
        %1786 = vdwg.mxu0
        %v1787 = vsel %vm940, %v1644, 0.0
        %v1788 = vsel %vm940, %v1690, 0.0
        %v1789 = vadd.f32 %v1787, %v1788
        %v1790 = vsel %vm940, %v1736, 0.0
        %v1791 = vadd.f32 %v1789, %v1790
        %v1792 = vsel %vm940, %v1782, 0.0
        %v1793 = vadd.f32 %v1791, %v1792
        %v1795 = vlaneseq
        %v1796 = vshrl.u32 %v1795, 7
        %v1797 = vsub.s32 0, %v1796
        %v1798 = vrot.slane %v907, %v1797
        %v1800 = vadd.f32 %v1793, %v1798
        %v1801 = vadd.f32 %v920, %v1800
        %v1802 = vsel %vm940, %v1801, 0.0
        %1803 = vadd.xlane.f32.xlu0 %v1802
        %v1804 = vpop.xlane.xlu0 %1803
        %v1805 = vrcp.pop 32.0
        %v1806 = vmul.f32 %v1804, %v1805
        %v1807 = vsub.f32 %v1801, %v1806
        %v1808 = vmul.f32 %v1807, %v1807
        %v1809 = vsel %vm940, %v1808, 0.0
        %1810 = vadd.xlane.f32.xlu0 %v1809
        %v1811 = vpop.xlane.xlu0 %1810
        %v1812 = vmul.f32 %v1811, %v1805
        %v1813 = vadd.f32 %v1812, 1e-05
        %v1814 = vrsqrt.pop %v1813
        %v1815 = vmul.f32 %v1807, %v1814
        %v1817 = vlaneseq
        %v1818 = vshrl.u32 %v1817, 7
        %v1819 = vsub.s32 0, %v1818
        %v1820 = vrot.slane %v910, %v1819
        %v1822 = vmul.f32 %v1815, %v1820
        %v1824 = vlaneseq
        %v1825 = vshrl.u32 %v1824, 7
        %v1826 = vsub.s32 0, %v1825
        %v1827 = vrot.slane %v911, %v1826
        %v1829 = vadd.f32 %v1822, %v1827
        %v1830 = vpack.c.bf16 %v1829, %v1829
        %v1832 = vlaneseq
        %v1833 = vshrl.u32 %v1832, 7
        %v1834 = vsub.s32 0, %v1833
        %v1835 = vrot.slane %v908, %v1834
        %v1841 = vunpack.c.l.b16 %v892
        %v1842 = vunpack.c.l.b16 %v893
        %v1843 = vunpack.c.l.b16 %v894
        %v1844 = vunpack.c.l.b16 %v895
        %v1845 = vpack.c.b16 %v1842, %v1841
        %v1846 = vpack.c.b16 %v1844, %v1843
        %v1850 = vsel %vm940, %v1830, 0
        %1852 = vmatprep.subr.bf16.mxu0 0
        %1853 = vmatpush1.bf16.msra.mxu0 0
        %1854 = vmatprep.subr.bf16.mxu0 0
        %1855 = vmatpush1.bf16.msra.mxu0 0
        %1856 = vmatprep.subr.bf16.mxu0 0
        %1857 = vmatpush1.bf16.msra.mxu0 0
        %1858 = vmatprep.subr.bf16.mxu0 0
        %1859 = vmatpush1.bf16.msra.mxu0 0
        %1860 = vmatprep.subr.bf16.mxu0 0
        %1861 = vmatpush1.bf16.msra.mxu0 0
        %1862 = vmatprep.subr.bf16.mxu0 0
        %1863 = vmatpush1.bf16.msra.mxu0 0
        %1864 = vmatprep.subr.bf16.mxu0 0
        %1865 = vmatpush1.bf16.msra.mxu0 %v1846
        %1866 = vmatprep.subr.bf16.mxu0 0
        %1867 = vmatpush1.bf16.msra.mxu0 %v1845
        %1868 = vmatprep.subr.bf16.mxu0 0
        %1869 = vmatpush2.bf16.msra.mxu0 0
        %1870 = vmatprep.subr.bf16.mxu0 0
        %1871 = vmatpush2.bf16.msra.mxu0 0
        %1872 = vmatprep.subr.bf16.mxu0 0
        %1873 = vmatpush2.bf16.msra.mxu0 0
        %1874 = vmatprep.subr.bf16.mxu0 0
        %1875 = vmatpush2.bf16.msra.mxu0 0
        %1876 = vmatprep.subr.bf16.mxu0 0
        %1877 = vmatpush2.bf16.msra.mxu0 0
        %1878 = vmatprep.subr.bf16.mxu0 0
        %1879 = vmatpush2.bf16.msra.mxu0 0
        %1880 = vmatprep.subr.bf16.mxu0 0
        %1881 = vmatpush2.bf16.msra.mxu0 0
        %1882 = vmatprep.subr.bf16.mxu0 0
        %1883 = vmatpush2.bf16.msra.mxu0 0
        %1884 = vmatprep.mubr.bf16.mxu0 0
        %1885 = vmatmul.mubr.bf16.gmra.mxu0 %v1850
        %v1886 = vpop.f32.mrf.mxu0
        %v1887 = vadd.f32 %v1835, %v1886
        %v1888 = vpop.f32.mrf.mxu0
        %v1889 = vpop.f32.mrf.mxu0
        %v1890 = vpop.f32.mrf.mxu0
        %1891 = vdwg.mxu0
        %v1892 = vmax.f32 %v1887, 0.0
        %v1893 = vpack.c.bf16 %v1892, %v1892
        %v1895 = vlaneseq
        %v1896 = vshrl.u32 %v1895, 7
        %v1897 = vsub.s32 0, %v1896
        %v1898 = vrot.slane %v909, %v1897
        %v1908 = vunpack.c.l.b16 %v896
        %v1909 = vunpack.c.l.b16 %v897
        %v1910 = vunpack.c.l.b16 %v898
        %v1911 = vunpack.c.l.b16 %v899
        %v1912 = vunpack.c.l.b16 %v900
        %v1913 = vunpack.c.l.b16 %v901
        %v1914 = vunpack.c.l.b16 %v902
        %v1915 = vunpack.c.l.b16 %v903
        %v1916 = vpack.c.b16 %v1909, %v1908
        %v1917 = vpack.c.b16 %v1911, %v1910
        %v1918 = vpack.c.b16 %v1913, %v1912
        %v1919 = vpack.c.b16 %v1915, %v1914
        %vm1924 = vcmask 523264
        %v1926 = vsel %vm1924, %v1893, 0
        %1928 = vmatprep.subr.bf16.mxu0 0
        %1929 = vmatpush1.bf16.msra.mxu0 0
        %1930 = vmatprep.subr.bf16.mxu0 0
        %1931 = vmatpush1.bf16.msra.mxu0 0
        %1932 = vmatprep.subr.bf16.mxu0 0
        %1933 = vmatpush1.bf16.msra.mxu0 0
        %1934 = vmatprep.subr.bf16.mxu0 0
        %1935 = vmatpush1.bf16.msra.mxu0 0
        %1936 = vmatprep.subr.bf16.mxu0 0
        %1937 = vmatpush1.bf16.msra.mxu0 %v1919
        %1938 = vmatprep.subr.bf16.mxu0 0
        %1939 = vmatpush1.bf16.msra.mxu0 %v1918
        %1940 = vmatprep.subr.bf16.mxu0 0
        %1941 = vmatpush1.bf16.msra.mxu0 %v1917
        %1942 = vmatprep.subr.bf16.mxu0 0
        %1943 = vmatpush1.bf16.msra.mxu0 %v1916
        %1944 = vmatprep.subr.bf16.mxu0 0
        %1945 = vmatpush2.bf16.msra.mxu0 0
        %1946 = vmatprep.subr.bf16.mxu0 0
        %1947 = vmatpush2.bf16.msra.mxu0 0
        %1948 = vmatprep.subr.bf16.mxu0 0
        %1949 = vmatpush2.bf16.msra.mxu0 0
        %1950 = vmatprep.subr.bf16.mxu0 0
        %1951 = vmatpush2.bf16.msra.mxu0 0
        %1952 = vmatprep.subr.bf16.mxu0 0
        %1953 = vmatpush2.bf16.msra.mxu0 0
        %1954 = vmatprep.subr.bf16.mxu0 0
        %1955 = vmatpush2.bf16.msra.mxu0 0
        %1956 = vmatprep.subr.bf16.mxu0 0
        %1957 = vmatpush2.bf16.msra.mxu0 0
        %1958 = vmatprep.subr.bf16.mxu0 0
        %1959 = vmatpush2.bf16.msra.mxu0 0
        %1960 = vmatprep.mubr.bf16.mxu0 0
        %1961 = vmatmul.mubr.bf16.gmra.mxu0 %v1926
        %v1962 = vpop.f32.mrf.mxu0
        %v1963 = vadd.f32 %v1898, %v1962
        %v1964 = vpop.f32.mrf.mxu0
        %v1965 = vpop.f32.mrf.mxu0
        %v1966 = vpop.f32.mrf.mxu0
        %1967 = vdwg.mxu0
        %v1968 = vmax.f32 %v1963, 0.0
        %v1969 = vadd.f32 %v1829, %v1968
        %v1970 = vsel %vm940, %v1969, 0.0
        %1971 = vadd.xlane.f32.xlu0 %v1970
        %v1972 = vpop.xlane.xlu0 %1971
        %v1973 = vmul.f32 %v1972, %v1805
        %v1974 = vsub.f32 %v1969, %v1973
        %v1975 = vmul.f32 %v1974, %v1974
        %v1976 = vsel %vm940, %v1975, 0.0
        %1977 = vadd.xlane.f32.xlu0 %v1976
        %v1978 = vpop.xlane.xlu0 %1977
        %v1979 = vmul.f32 %v1978, %v1805
        %v1980 = vadd.f32 %v1979, 1e-05
        %v1981 = vrsqrt.pop %v1980
        %v1982 = vmul.f32 %v1974, %v1981
        %v1984 = vlaneseq
        %v1985 = vshrl.u32 %v1984, 7
        %v1986 = vsub.s32 0, %v1985
        %v1987 = vrot.slane %v912, %v1986
        %v1989 = vmul.f32 %v1982, %v1987
        %v1991 = vlaneseq
        %v1992 = vshrl.u32 %v1991, 7
        %v1993 = vsub.s32 0, %v1992
        %v1994 = vrot.slane %v913, %v1993
        %v1996 = vadd.f32 %v1989, %v1994
        %1997 = vst.msk [vmem:[#allocation2] sm:$0xff] %vm940, %v1996
        %s1998 = scalar_lea.vmem [#allocation2], 8
        %v1999 = vld [vmem:[%s1998] sm:$0xff]
        %v2000 = vpack.c.bf16 %v1999, %v1999
        %v2002 = vsel %vm940, %v2000, 0
        %2004 = vmatprep.subr.bf16.mxu0 0
        %2005 = vmatpush1.bf16.msra.mxu0 0
        %2006 = vmatprep.subr.bf16.mxu0 0
        %2007 = vmatpush1.bf16.msra.mxu0 0
        %2008 = vmatprep.subr.bf16.mxu0 0
        %2009 = vmatpush1.bf16.msra.mxu0 0
        %2010 = vmatprep.subr.bf16.mxu0 0
        %2011 = vmatpush1.bf16.msra.mxu0 0
        %2012 = vmatprep.subr.bf16.mxu0 0
        %2013 = vmatpush1.bf16.msra.mxu0 0
        %2014 = vmatprep.subr.bf16.mxu0 0
        %2015 = vmatpush1.bf16.msra.mxu0 0
        %2016 = vmatprep.subr.bf16.mxu0 0
        %2017 = vmatpush1.bf16.msra.mxu0 %v937
        %2018 = vmatprep.subr.bf16.mxu0 0
        %2019 = vmatpush1.bf16.msra.mxu0 %v936
        %2020 = vmatprep.subr.bf16.mxu0 0
        %2021 = vmatpush2.bf16.msra.mxu0 0
        %2022 = vmatprep.subr.bf16.mxu0 0
        %2023 = vmatpush2.bf16.msra.mxu0 0
        %2024 = vmatprep.subr.bf16.mxu0 0
        %2025 = vmatpush2.bf16.msra.mxu0 0
        %2026 = vmatprep.subr.bf16.mxu0 0
        %2027 = vmatpush2.bf16.msra.mxu0 0
        %2028 = vmatprep.subr.bf16.mxu0 0
        %2029 = vmatpush2.bf16.msra.mxu0 0
        %2030 = vmatprep.subr.bf16.mxu0 0
        %2031 = vmatpush2.bf16.msra.mxu0 0
        %2032 = vmatprep.subr.bf16.mxu0 0
        %2033 = vmatpush2.bf16.msra.mxu0 0
        %2034 = vmatprep.subr.bf16.mxu0 0
        %2035 = vmatpush2.bf16.msra.mxu0 0
        %2036 = vmatprep.mubr.bf16.mxu0 0
        %2037 = vmatmul.mubr.bf16.gmra.mxu0 %v2002
        %v2038 = vpop.f32.mrf.mxu0
        %v2039 = vadd.f32 %v926, %v2038
        %v2040 = vpop.f32.mrf.mxu0
        %v2041 = vpop.f32.mrf.mxu0
        %v2042 = vpop.f32.mrf.mxu0
        %2043 = vdwg.mxu0
        %2044 = vmatprep.subr.bf16.mxu0 0
        %2045 = vmatpush1.bf16.msra.mxu0 0
        %2046 = vmatprep.subr.bf16.mxu0 0
        %2047 = vmatpush1.bf16.msra.mxu0 0
        %2048 = vmatprep.subr.bf16.mxu0 0
        %2049 = vmatpush1.bf16.msra.mxu0 0
        %2050 = vmatprep.subr.bf16.mxu0 0
        %2051 = vmatpush1.bf16.msra.mxu0 0
        %2052 = vmatprep.subr.bf16.mxu0 0
        %2053 = vmatpush1.bf16.msra.mxu0 0
        %2054 = vmatprep.subr.bf16.mxu0 0
        %2055 = vmatpush1.bf16.msra.mxu0 0
        %2056 = vmatprep.subr.bf16.mxu0 0
        %2057 = vmatpush1.bf16.msra.mxu0 %v999
        %2058 = vmatprep.subr.bf16.mxu0 0
        %2059 = vmatpush1.bf16.msra.mxu0 %v998
        %2060 = vmatprep.subr.bf16.mxu0 0
        %2061 = vmatpush2.bf16.msra.mxu0 0
        %2062 = vmatprep.subr.bf16.mxu0 0
        %2063 = vmatpush2.bf16.msra.mxu0 0
        %2064 = vmatprep.subr.bf16.mxu0 0
        %2065 = vmatpush2.bf16.msra.mxu0 0
        %2066 = vmatprep.subr.bf16.mxu0 0
        %2067 = vmatpush2.bf16.msra.mxu0 0
        %2068 = vmatprep.subr.bf16.mxu0 0
        %2069 = vmatpush2.bf16.msra.mxu0 0
        %2070 = vmatprep.subr.bf16.mxu0 0
        %2071 = vmatpush2.bf16.msra.mxu0 0
        %2072 = vmatprep.subr.bf16.mxu0 0
        %2073 = vmatpush2.bf16.msra.mxu0 0
        %2074 = vmatprep.subr.bf16.mxu0 0
        %2075 = vmatpush2.bf16.msra.mxu0 0
        %2076 = vmatprep.mubr.bf16.mxu0 0
        %2077 = vmatmul.mubr.bf16.gmra.mxu0 %v2002
        %v2078 = vpop.f32.mrf.mxu0
        %v2079 = vadd.f32 %v988, %v2078
        %v2080 = vpop.f32.mrf.mxu0
        %v2081 = vpop.f32.mrf.mxu0
        %v2082 = vpop.f32.mrf.mxu0
        %2083 = vdwg.mxu0
        %2084 = vmatprep.subr.bf16.mxu0 0
        %2085 = vmatpush1.bf16.msra.mxu0 0
        %2086 = vmatprep.subr.bf16.mxu0 0
        %2087 = vmatpush1.bf16.msra.mxu0 0
        %2088 = vmatprep.subr.bf16.mxu0 0
        %2089 = vmatpush1.bf16.msra.mxu0 0
        %2090 = vmatprep.subr.bf16.mxu0 0
        %2091 = vmatpush1.bf16.msra.mxu0 0
        %2092 = vmatprep.subr.bf16.mxu0 0
        %2093 = vmatpush1.bf16.msra.mxu0 0
        %2094 = vmatprep.subr.bf16.mxu0 0
        %2095 = vmatpush1.bf16.msra.mxu0 0
        %2096 = vmatprep.subr.bf16.mxu0 0
        %2097 = vmatpush1.bf16.msra.mxu0 %v1057
        %2098 = vmatprep.subr.bf16.mxu0 0
        %2099 = vmatpush1.bf16.msra.mxu0 %v1056
        %2100 = vmatprep.subr.bf16.mxu0 0
        %2101 = vmatpush2.bf16.msra.mxu0 0
        %2102 = vmatprep.subr.bf16.mxu0 0
        %2103 = vmatpush2.bf16.msra.mxu0 0
        %2104 = vmatprep.subr.bf16.mxu0 0
        %2105 = vmatpush2.bf16.msra.mxu0 0
        %2106 = vmatprep.subr.bf16.mxu0 0
        %2107 = vmatpush2.bf16.msra.mxu0 0
        %2108 = vmatprep.subr.bf16.mxu0 0
        %2109 = vmatpush2.bf16.msra.mxu0 0
        %2110 = vmatprep.subr.bf16.mxu0 0
        %2111 = vmatpush2.bf16.msra.mxu0 0
        %2112 = vmatprep.subr.bf16.mxu0 0
        %2113 = vmatpush2.bf16.msra.mxu0 0
        %2114 = vmatprep.subr.bf16.mxu0 0
        %2115 = vmatpush2.bf16.msra.mxu0 0
        %2116 = vmatprep.mubr.bf16.mxu0 0
        %2117 = vmatmul.mubr.bf16.gmra.mxu0 %v2002
        %v2118 = vpop.f32.mrf.mxu0
        %v2119 = vadd.f32 %v1046, %v2118
        %v2120 = vpop.f32.mrf.mxu0
        %v2121 = vpop.f32.mrf.mxu0
        %v2122 = vpop.f32.mrf.mxu0
        %2123 = vdwg.mxu0
        %2124 = vst.msk [vmem:[#allocation3] sm:$0xff] %vm1100, %v2039
        %2125 = vst.msk [vmem:[#allocation4] sm:$0xff] %vm1100, %v2079
        %2126 = vst.msk [vmem:[#allocation5] sm:$0xff] %vm1100, %v2119
        %2128 = vrot.lane.b32.xlu0 %v2039, 120
        %v2129 = vpop.permute.xlu0 %2128
        %2131 = vst.msk [vmem:[%s1108] sm:$0xff] %vm1100, %v2129
        %2133 = vrot.lane.b32.xlu0 %v2079, 120
        %v2134 = vpop.permute.xlu0 %2133
        %2136 = vst.msk [vmem:[%s1114] sm:$0xff] %vm1100, %v2134
        %2138 = vrot.lane.b32.xlu0 %v2119, 120
        %v2139 = vpop.permute.xlu0 %2138
        %2141 = vst.msk [vmem:[%s1120] sm:$0xff] %vm1100, %v2139
        %2142 = vrot.lane.b32.xlu0 %v2039, 112
        %v2143 = vpop.permute.xlu0 %2142
        %2145 = vst.msk [vmem:[%s1125] sm:$0xff] %vm1100, %v2143
        %2146 = vrot.lane.b32.xlu0 %v2079, 112
        %v2147 = vpop.permute.xlu0 %2146
        %2149 = vst.msk [vmem:[%s1130] sm:$0xff] %vm1100, %v2147
        %2150 = vrot.lane.b32.xlu0 %v2119, 112
        %v2151 = vpop.permute.xlu0 %2150
        %2153 = vst.msk [vmem:[%s1135] sm:$0xff] %vm1100, %v2151
        %2154 = vrot.lane.b32.xlu0 %v2039, 104
        %v2155 = vpop.permute.xlu0 %2154
        %2157 = vst.msk [vmem:[%s1140] sm:$0xff] %vm1100, %v2155
        %2158 = vrot.lane.b32.xlu0 %v2079, 104
        %v2159 = vpop.permute.xlu0 %2158
        %2161 = vst.msk [vmem:[%s1145] sm:$0xff] %vm1100, %v2159
        %2162 = vrot.lane.b32.xlu0 %v2119, 104
        %v2163 = vpop.permute.xlu0 %2162
        %2165 = vst.msk [vmem:[%s1150] sm:$0xff] %vm1100, %v2163
        %v2166 = vld [vmem:[#allocation3] sm:$0xff]
        %v2167 = vld [vmem:[#allocation3 + $0x8] sm:$0xff]
        %v2168 = vld [vmem:[#allocation3 + $0x10] sm:$0xff]
        %v2169 = vld [vmem:[#allocation3 + $0x18] sm:$0xff]
        %v2170 = vpack.c.bf16 %v2166, %v2166
        %v2171 = vpack.c.bf16 %v2167, %v2167
        %v2172 = vpack.c.bf16 %v2168, %v2168
        %v2173 = vpack.c.bf16 %v2169, %v2169
        %v2174 = vld [vmem:[#allocation4] sm:$0xff]
        %v2175 = vld [vmem:[#allocation4 + $0x8] sm:$0xff]
        %v2176 = vld [vmem:[#allocation4 + $0x10] sm:$0xff]
        %v2177 = vld [vmem:[#allocation4 + $0x18] sm:$0xff]
        %v2178 = vpack.c.bf16 %v2174, %v2174
        %v2179 = vpack.c.bf16 %v2175, %v2175
        %v2180 = vpack.c.bf16 %v2176, %v2176
        %v2181 = vpack.c.bf16 %v2177, %v2177
        %v2182 = vld [vmem:[#allocation5] sm:$0xff]
        %v2183 = vld [vmem:[#allocation5 + $0x8] sm:$0xff]
        %v2184 = vld [vmem:[#allocation5 + $0x10] sm:$0xff]
        %v2185 = vld [vmem:[#allocation5 + $0x18] sm:$0xff]
        %v2186 = vpack.c.bf16 %v2182, %v2182
        %v2187 = vpack.c.bf16 %v2183, %v2183
        %v2188 = vpack.c.bf16 %v2184, %v2184
        %v2189 = vpack.c.bf16 %v2185, %v2185
        %v2191 = vlaneseq
        %v2192 = vshrl.u32 %v2191, 7
        %v2193 = vsub.s32 0, %v2192
        %v2194 = vrot.slane %v919, %v2193
        %v2197 = vsel %vm1100, %v2170, 0
        %v2200 = vsel %vm1100, %v2178, 0
        %2202 = vmatprep.subr.bf16.mxu0 0
        %2203 = vmatpush1.bf16.xpose.msra.mxu0 0
        %2204 = vmatprep.subr.bf16.mxu0 0
        %2205 = vmatpush1.bf16.xpose.msra.mxu0 0
        %2206 = vmatprep.subr.bf16.mxu0 0
        %2207 = vmatpush1.bf16.xpose.msra.mxu0 0
        %2208 = vmatprep.subr.bf16.mxu0 0
        %2209 = vmatpush1.bf16.xpose.msra.mxu0 0
        %2210 = vmatprep.subr.bf16.mxu0 0
        %2211 = vmatpush1.bf16.xpose.msra.mxu0 0
        %2212 = vmatprep.subr.bf16.mxu0 0
        %2213 = vmatpush1.bf16.xpose.msra.mxu0 0
        %2214 = vmatprep.subr.bf16.mxu0 0
        %2215 = vmatpush1.bf16.xpose.msra.mxu0 0
        %2216 = vmatprep.subr.bf16.mxu0 0
        %2217 = vmatpush1.bf16.xpose.msra.mxu0 %v2200
        %2218 = vmatprep.subr.bf16.mxu0 0
        %2219 = vmatpush2.bf16.xpose.msra.mxu0 0
        %2220 = vmatprep.subr.bf16.mxu0 0
        %2221 = vmatpush2.bf16.xpose.msra.mxu0 0
        %2222 = vmatprep.subr.bf16.mxu0 0
        %2223 = vmatpush2.bf16.xpose.msra.mxu0 0
        %2224 = vmatprep.subr.bf16.mxu0 0
        %2225 = vmatpush2.bf16.xpose.msra.mxu0 0
        %2226 = vmatprep.subr.bf16.mxu0 0
        %2227 = vmatpush2.bf16.xpose.msra.mxu0 0
        %2228 = vmatprep.subr.bf16.mxu0 0
        %2229 = vmatpush2.bf16.xpose.msra.mxu0 0
        %2230 = vmatprep.subr.bf16.mxu0 0
        %2231 = vmatpush2.bf16.xpose.msra.mxu0 0
        %2232 = vmatprep.subr.bf16.mxu0 0
        %2233 = vmatpush2.bf16.xpose.msra.mxu0 0
        %2234 = vmatprep.mubr.bf16.mxu0 0
        %2235 = vmatmul.mubr.bf16.gmra.mxu0 %v2197
        %v2236 = vpop.f32.mrf.mxu0
        %v2237 = vadd.f32 %v2194, %v2236
        %v2238 = vpop.f32.mrf.mxu0
        %v2239 = vpop.f32.mrf.mxu0
        %v2240 = vpop.f32.mrf.mxu0
        %2241 = vdwg.mxu0
        %v2243 = vsel %vm1100, %v2171, 0
        %v2246 = vsel %vm1100, %v2179, 0
        %2248 = vmatprep.subr.bf16.mxu0 0
        %2249 = vmatpush1.bf16.xpose.msra.mxu0 0
        %2250 = vmatprep.subr.bf16.mxu0 0
        %2251 = vmatpush1.bf16.xpose.msra.mxu0 0
        %2252 = vmatprep.subr.bf16.mxu0 0
        %2253 = vmatpush1.bf16.xpose.msra.mxu0 0
        %2254 = vmatprep.subr.bf16.mxu0 0
        %2255 = vmatpush1.bf16.xpose.msra.mxu0 0
        %2256 = vmatprep.subr.bf16.mxu0 0
        %2257 = vmatpush1.bf16.xpose.msra.mxu0 0
        %2258 = vmatprep.subr.bf16.mxu0 0
        %2259 = vmatpush1.bf16.xpose.msra.mxu0 0
        %2260 = vmatprep.subr.bf16.mxu0 0
        %2261 = vmatpush1.bf16.xpose.msra.mxu0 0
        %2262 = vmatprep.subr.bf16.mxu0 0
        %2263 = vmatpush1.bf16.xpose.msra.mxu0 %v2246
        %2264 = vmatprep.subr.bf16.mxu0 0
        %2265 = vmatpush2.bf16.xpose.msra.mxu0 0
        %2266 = vmatprep.subr.bf16.mxu0 0
        %2267 = vmatpush2.bf16.xpose.msra.mxu0 0
        %2268 = vmatprep.subr.bf16.mxu0 0
        %2269 = vmatpush2.bf16.xpose.msra.mxu0 0
        %2270 = vmatprep.subr.bf16.mxu0 0
        %2271 = vmatpush2.bf16.xpose.msra.mxu0 0
        %2272 = vmatprep.subr.bf16.mxu0 0
        %2273 = vmatpush2.bf16.xpose.msra.mxu0 0
        %2274 = vmatprep.subr.bf16.mxu0 0
        %2275 = vmatpush2.bf16.xpose.msra.mxu0 0
        %2276 = vmatprep.subr.bf16.mxu0 0
        %2277 = vmatpush2.bf16.xpose.msra.mxu0 0
        %2278 = vmatprep.subr.bf16.mxu0 0
        %2279 = vmatpush2.bf16.xpose.msra.mxu0 0
        %2280 = vmatprep.mubr.bf16.mxu0 0
        %2281 = vmatmul.mubr.bf16.gmra.mxu0 %v2243
        %v2282 = vpop.f32.mrf.mxu0
        %v2283 = vadd.f32 %v2194, %v2282
        %v2284 = vpop.f32.mrf.mxu0
        %v2285 = vpop.f32.mrf.mxu0
        %v2286 = vpop.f32.mrf.mxu0
        %2287 = vdwg.mxu0
        %v2289 = vsel %vm1100, %v2172, 0
        %v2292 = vsel %vm1100, %v2180, 0
        %2294 = vmatprep.subr.bf16.mxu0 0
        %2295 = vmatpush1.bf16.xpose.msra.mxu0 0
        %2296 = vmatprep.subr.bf16.mxu0 0
        %2297 = vmatpush1.bf16.xpose.msra.mxu0 0
        %2298 = vmatprep.subr.bf16.mxu0 0
        %2299 = vmatpush1.bf16.xpose.msra.mxu0 0
        %2300 = vmatprep.subr.bf16.mxu0 0
        %2301 = vmatpush1.bf16.xpose.msra.mxu0 0
        %2302 = vmatprep.subr.bf16.mxu0 0
        %2303 = vmatpush1.bf16.xpose.msra.mxu0 0
        %2304 = vmatprep.subr.bf16.mxu0 0
        %2305 = vmatpush1.bf16.xpose.msra.mxu0 0
        %2306 = vmatprep.subr.bf16.mxu0 0
        %2307 = vmatpush1.bf16.xpose.msra.mxu0 0
        %2308 = vmatprep.subr.bf16.mxu0 0
        %2309 = vmatpush1.bf16.xpose.msra.mxu0 %v2292
        %2310 = vmatprep.subr.bf16.mxu0 0
        %2311 = vmatpush2.bf16.xpose.msra.mxu0 0
        %2312 = vmatprep.subr.bf16.mxu0 0
        %2313 = vmatpush2.bf16.xpose.msra.mxu0 0
        %2314 = vmatprep.subr.bf16.mxu0 0
        %2315 = vmatpush2.bf16.xpose.msra.mxu0 0
        %2316 = vmatprep.subr.bf16.mxu0 0
        %2317 = vmatpush2.bf16.xpose.msra.mxu0 0
        %2318 = vmatprep.subr.bf16.mxu0 0
        %2319 = vmatpush2.bf16.xpose.msra.mxu0 0
        %2320 = vmatprep.subr.bf16.mxu0 0
        %2321 = vmatpush2.bf16.xpose.msra.mxu0 0
        %2322 = vmatprep.subr.bf16.mxu0 0
        %2323 = vmatpush2.bf16.xpose.msra.mxu0 0
        %2324 = vmatprep.subr.bf16.mxu0 0
        %2325 = vmatpush2.bf16.xpose.msra.mxu0 0
        %2326 = vmatprep.mubr.bf16.mxu0 0
        %2327 = vmatmul.mubr.bf16.gmra.mxu0 %v2289
        %v2328 = vpop.f32.mrf.mxu0
        %v2329 = vadd.f32 %v2194, %v2328
        %v2330 = vpop.f32.mrf.mxu0
        %v2331 = vpop.f32.mrf.mxu0
        %v2332 = vpop.f32.mrf.mxu0
        %2333 = vdwg.mxu0
        %v2335 = vsel %vm1100, %v2173, 0
        %v2338 = vsel %vm1100, %v2181, 0
        %2340 = vmatprep.subr.bf16.mxu0 0
        %2341 = vmatpush1.bf16.xpose.msra.mxu0 0
        %2342 = vmatprep.subr.bf16.mxu0 0
        %2343 = vmatpush1.bf16.xpose.msra.mxu0 0
        %2344 = vmatprep.subr.bf16.mxu0 0
        %2345 = vmatpush1.bf16.xpose.msra.mxu0 0
        %2346 = vmatprep.subr.bf16.mxu0 0
        %2347 = vmatpush1.bf16.xpose.msra.mxu0 0
        %2348 = vmatprep.subr.bf16.mxu0 0
        %2349 = vmatpush1.bf16.xpose.msra.mxu0 0
        %2350 = vmatprep.subr.bf16.mxu0 0
        %2351 = vmatpush1.bf16.xpose.msra.mxu0 0
        %2352 = vmatprep.subr.bf16.mxu0 0
        %2353 = vmatpush1.bf16.xpose.msra.mxu0 0
        %2354 = vmatprep.subr.bf16.mxu0 0
        %2355 = vmatpush1.bf16.xpose.msra.mxu0 %v2338
        %2356 = vmatprep.subr.bf16.mxu0 0
        %2357 = vmatpush2.bf16.xpose.msra.mxu0 0
        %2358 = vmatprep.subr.bf16.mxu0 0
        %2359 = vmatpush2.bf16.xpose.msra.mxu0 0
        %2360 = vmatprep.subr.bf16.mxu0 0
        %2361 = vmatpush2.bf16.xpose.msra.mxu0 0
        %2362 = vmatprep.subr.bf16.mxu0 0
        %2363 = vmatpush2.bf16.xpose.msra.mxu0 0
        %2364 = vmatprep.subr.bf16.mxu0 0
        %2365 = vmatpush2.bf16.xpose.msra.mxu0 0
        %2366 = vmatprep.subr.bf16.mxu0 0
        %2367 = vmatpush2.bf16.xpose.msra.mxu0 0
        %2368 = vmatprep.subr.bf16.mxu0 0
        %2369 = vmatpush2.bf16.xpose.msra.mxu0 0
        %2370 = vmatprep.subr.bf16.mxu0 0
        %2371 = vmatpush2.bf16.xpose.msra.mxu0 0
        %2372 = vmatprep.mubr.bf16.mxu0 0
        %2373 = vmatmul.mubr.bf16.gmra.mxu0 %v2335
        %v2374 = vpop.f32.mrf.mxu0
        %v2375 = vadd.f32 %v2194, %v2374
        %v2376 = vpop.f32.mrf.mxu0
        %v2377 = vpop.f32.mrf.mxu0
        %v2378 = vpop.f32.mrf.mxu0
        %2379 = vdwg.mxu0
        %v2380 = vsel %vm1100, %v2237, -inf
        %2381 = vmax.xlane.f32.xlu0 %v2380
        %v2382 = vpop.xlane.xlu0 %2381
        %v2383 = vsel %vm1100, %v2283, -inf
        %2384 = vmax.xlane.f32.xlu0 %v2383
        %v2385 = vpop.xlane.xlu0 %2384
        %v2386 = vsel %vm1100, %v2329, -inf
        %2387 = vmax.xlane.f32.xlu0 %v2386
        %v2388 = vpop.xlane.xlu0 %2387
        %v2389 = vsel %vm1100, %v2375, -inf
        %2390 = vmax.xlane.f32.xlu0 %v2389
        %v2391 = vpop.xlane.xlu0 %2390
        %v2392 = vsub.f32 %v2237, %v2382
        %v2393 = vsub.f32 %v2283, %v2385
        %v2394 = vsub.f32 %v2329, %v2388
        %v2395 = vsub.f32 %v2375, %v2391
        %v2396 = vmul.f32 %v2392, 1.442695
        %v2397 = vpow.pop %v2396
        %v2398 = vmul.f32 %v2393, 1.442695
        %v2399 = vpow.pop %v2398
        %v2400 = vmul.f32 %v2394, 1.442695
        %v2401 = vpow.pop %v2400
        %v2402 = vmul.f32 %v2395, 1.442695
        %v2403 = vpow.pop %v2402
        %v2404 = vsel %vm1100, %v2397, 0.0
        %2405 = vadd.xlane.f32.xlu0 %v2404
        %v2406 = vpop.xlane.xlu0 %2405
        %v2407 = vsel %vm1100, %v2399, 0.0
        %2408 = vadd.xlane.f32.xlu0 %v2407
        %v2409 = vpop.xlane.xlu0 %2408
        %v2410 = vsel %vm1100, %v2401, 0.0
        %2411 = vadd.xlane.f32.xlu0 %v2410
        %v2412 = vpop.xlane.xlu0 %2411
        %v2413 = vsel %vm1100, %v2403, 0.0
        %2414 = vadd.xlane.f32.xlu0 %v2413
        %v2415 = vpop.xlane.xlu0 %2414
        %v2416 = vrcp.pop %v2406
        %v2417 = vrcp.pop %v2409
        %v2418 = vrcp.pop %v2412
        %v2419 = vrcp.pop %v2415
        %v2420 = vmul.f32 %v2397, %v2416
        %v2421 = vmul.f32 %v2399, %v2417
        %v2422 = vmul.f32 %v2401, %v2418
        %v2423 = vmul.f32 %v2403, %v2419
        %v2424 = vpack.c.bf16 %v2420, %v2420
        %v2425 = vpack.c.bf16 %v2421, %v2421
        %v2426 = vpack.c.bf16 %v2422, %v2422
        %v2427 = vpack.c.bf16 %v2423, %v2423
        %v2429 = vsel %vm1100, %v2424, 0
        %v2432 = vsel %vm1417, %v2186, 0
        %2434 = vmatprep.subr.bf16.mxu0 0
        %2435 = vmatpush1.bf16.msra.mxu0 0
        %2436 = vmatprep.subr.bf16.mxu0 0
        %2437 = vmatpush1.bf16.msra.mxu0 0
        %2438 = vmatprep.subr.bf16.mxu0 0
        %2439 = vmatpush1.bf16.msra.mxu0 0
        %2440 = vmatprep.subr.bf16.mxu0 0
        %2441 = vmatpush1.bf16.msra.mxu0 0
        %2442 = vmatprep.subr.bf16.mxu0 0
        %2443 = vmatpush1.bf16.msra.mxu0 0
        %2444 = vmatprep.subr.bf16.mxu0 0
        %2445 = vmatpush1.bf16.msra.mxu0 0
        %2446 = vmatprep.subr.bf16.mxu0 0
        %2447 = vmatpush1.bf16.msra.mxu0 0
        %2448 = vmatprep.subr.bf16.mxu0 0
        %2449 = vmatpush1.bf16.msra.mxu0 %v2432
        %2450 = vmatprep.subr.bf16.mxu0 0
        %2451 = vmatpush2.bf16.msra.mxu0 0
        %2452 = vmatprep.subr.bf16.mxu0 0
        %2453 = vmatpush2.bf16.msra.mxu0 0
        %2454 = vmatprep.subr.bf16.mxu0 0
        %2455 = vmatpush2.bf16.msra.mxu0 0
        %2456 = vmatprep.subr.bf16.mxu0 0
        %2457 = vmatpush2.bf16.msra.mxu0 0
        %2458 = vmatprep.subr.bf16.mxu0 0
        %2459 = vmatpush2.bf16.msra.mxu0 0
        %2460 = vmatprep.subr.bf16.mxu0 0
        %2461 = vmatpush2.bf16.msra.mxu0 0
        %2462 = vmatprep.subr.bf16.mxu0 0
        %2463 = vmatpush2.bf16.msra.mxu0 0
        %2464 = vmatprep.subr.bf16.mxu0 0
        %2465 = vmatpush2.bf16.msra.mxu0 0
        %2466 = vmatprep.mubr.bf16.mxu0 0
        %2467 = vmatmul.mubr.bf16.gmra.mxu0 %v2429
        %v2468 = vpop.f32.mrf.mxu0
        %v2469 = vadd.f32 0.0, %v2468
        %v2470 = vpop.f32.mrf.mxu0
        %v2471 = vpop.f32.mrf.mxu0
        %v2472 = vpop.f32.mrf.mxu0
        %2473 = vdwg.mxu0
        %v2475 = vsel %vm1100, %v2425, 0
        %v2478 = vsel %vm1417, %v2187, 0
        %2480 = vmatprep.subr.bf16.mxu0 0
        %2481 = vmatpush1.bf16.msra.mxu0 0
        %2482 = vmatprep.subr.bf16.mxu0 0
        %2483 = vmatpush1.bf16.msra.mxu0 0
        %2484 = vmatprep.subr.bf16.mxu0 0
        %2485 = vmatpush1.bf16.msra.mxu0 0
        %2486 = vmatprep.subr.bf16.mxu0 0
        %2487 = vmatpush1.bf16.msra.mxu0 0
        %2488 = vmatprep.subr.bf16.mxu0 0
        %2489 = vmatpush1.bf16.msra.mxu0 0
        %2490 = vmatprep.subr.bf16.mxu0 0
        %2491 = vmatpush1.bf16.msra.mxu0 0
        %2492 = vmatprep.subr.bf16.mxu0 0
        %2493 = vmatpush1.bf16.msra.mxu0 0
        %2494 = vmatprep.subr.bf16.mxu0 0
        %2495 = vmatpush1.bf16.msra.mxu0 %v2478
        %2496 = vmatprep.subr.bf16.mxu0 0
        %2497 = vmatpush2.bf16.msra.mxu0 0
        %2498 = vmatprep.subr.bf16.mxu0 0
        %2499 = vmatpush2.bf16.msra.mxu0 0
        %2500 = vmatprep.subr.bf16.mxu0 0
        %2501 = vmatpush2.bf16.msra.mxu0 0
        %2502 = vmatprep.subr.bf16.mxu0 0
        %2503 = vmatpush2.bf16.msra.mxu0 0
        %2504 = vmatprep.subr.bf16.mxu0 0
        %2505 = vmatpush2.bf16.msra.mxu0 0
        %2506 = vmatprep.subr.bf16.mxu0 0
        %2507 = vmatpush2.bf16.msra.mxu0 0
        %2508 = vmatprep.subr.bf16.mxu0 0
        %2509 = vmatpush2.bf16.msra.mxu0 0
        %2510 = vmatprep.subr.bf16.mxu0 0
        %2511 = vmatpush2.bf16.msra.mxu0 0
        %2512 = vmatprep.mubr.bf16.mxu0 0
        %2513 = vmatmul.mubr.bf16.gmra.mxu0 %v2475
        %v2514 = vpop.f32.mrf.mxu0
        %v2515 = vadd.f32 0.0, %v2514
        %v2516 = vpop.f32.mrf.mxu0
        %v2517 = vpop.f32.mrf.mxu0
        %v2518 = vpop.f32.mrf.mxu0
        %2519 = vdwg.mxu0
        %v2521 = vsel %vm1100, %v2426, 0
        %v2524 = vsel %vm1417, %v2188, 0
        %2526 = vmatprep.subr.bf16.mxu0 0
        %2527 = vmatpush1.bf16.msra.mxu0 0
        %2528 = vmatprep.subr.bf16.mxu0 0
        %2529 = vmatpush1.bf16.msra.mxu0 0
        %2530 = vmatprep.subr.bf16.mxu0 0
        %2531 = vmatpush1.bf16.msra.mxu0 0
        %2532 = vmatprep.subr.bf16.mxu0 0
        %2533 = vmatpush1.bf16.msra.mxu0 0
        %2534 = vmatprep.subr.bf16.mxu0 0
        %2535 = vmatpush1.bf16.msra.mxu0 0
        %2536 = vmatprep.subr.bf16.mxu0 0
        %2537 = vmatpush1.bf16.msra.mxu0 0
        %2538 = vmatprep.subr.bf16.mxu0 0
        %2539 = vmatpush1.bf16.msra.mxu0 0
        %2540 = vmatprep.subr.bf16.mxu0 0
        %2541 = vmatpush1.bf16.msra.mxu0 %v2524
        %2542 = vmatprep.subr.bf16.mxu0 0
        %2543 = vmatpush2.bf16.msra.mxu0 0
        %2544 = vmatprep.subr.bf16.mxu0 0
        %2545 = vmatpush2.bf16.msra.mxu0 0
        %2546 = vmatprep.subr.bf16.mxu0 0
        %2547 = vmatpush2.bf16.msra.mxu0 0
        %2548 = vmatprep.subr.bf16.mxu0 0
        %2549 = vmatpush2.bf16.msra.mxu0 0
        %2550 = vmatprep.subr.bf16.mxu0 0
        %2551 = vmatpush2.bf16.msra.mxu0 0
        %2552 = vmatprep.subr.bf16.mxu0 0
        %2553 = vmatpush2.bf16.msra.mxu0 0
        %2554 = vmatprep.subr.bf16.mxu0 0
        %2555 = vmatpush2.bf16.msra.mxu0 0
        %2556 = vmatprep.subr.bf16.mxu0 0
        %2557 = vmatpush2.bf16.msra.mxu0 0
        %2558 = vmatprep.mubr.bf16.mxu0 0
        %2559 = vmatmul.mubr.bf16.gmra.mxu0 %v2521
        %v2560 = vpop.f32.mrf.mxu0
        %v2561 = vadd.f32 0.0, %v2560
        %v2562 = vpop.f32.mrf.mxu0
        %v2563 = vpop.f32.mrf.mxu0
        %v2564 = vpop.f32.mrf.mxu0
        %2565 = vdwg.mxu0
        %v2567 = vsel %vm1100, %v2427, 0
        %v2570 = vsel %vm1417, %v2189, 0
        %2572 = vmatprep.subr.bf16.mxu0 0
        %2573 = vmatpush1.bf16.msra.mxu0 0
        %2574 = vmatprep.subr.bf16.mxu0 0
        %2575 = vmatpush1.bf16.msra.mxu0 0
        %2576 = vmatprep.subr.bf16.mxu0 0
        %2577 = vmatpush1.bf16.msra.mxu0 0
        %2578 = vmatprep.subr.bf16.mxu0 0
        %2579 = vmatpush1.bf16.msra.mxu0 0
        %2580 = vmatprep.subr.bf16.mxu0 0
        %2581 = vmatpush1.bf16.msra.mxu0 0
        %2582 = vmatprep.subr.bf16.mxu0 0
        %2583 = vmatpush1.bf16.msra.mxu0 0
        %2584 = vmatprep.subr.bf16.mxu0 0
        %2585 = vmatpush1.bf16.msra.mxu0 0
        %2586 = vmatprep.subr.bf16.mxu0 0
        %2587 = vmatpush1.bf16.msra.mxu0 %v2570
        %2588 = vmatprep.subr.bf16.mxu0 0
        %2589 = vmatpush2.bf16.msra.mxu0 0
        %2590 = vmatprep.subr.bf16.mxu0 0
        %2591 = vmatpush2.bf16.msra.mxu0 0
        %2592 = vmatprep.subr.bf16.mxu0 0
        %2593 = vmatpush2.bf16.msra.mxu0 0
        %2594 = vmatprep.subr.bf16.mxu0 0
        %2595 = vmatpush2.bf16.msra.mxu0 0
        %2596 = vmatprep.subr.bf16.mxu0 0
        %2597 = vmatpush2.bf16.msra.mxu0 0
        %2598 = vmatprep.subr.bf16.mxu0 0
        %2599 = vmatpush2.bf16.msra.mxu0 0
        %2600 = vmatprep.subr.bf16.mxu0 0
        %2601 = vmatpush2.bf16.msra.mxu0 0
        %2602 = vmatprep.subr.bf16.mxu0 0
        %2603 = vmatpush2.bf16.msra.mxu0 0
        %2604 = vmatprep.mubr.bf16.mxu0 0
        %2605 = vmatmul.mubr.bf16.gmra.mxu0 %v2567
        %v2606 = vpop.f32.mrf.mxu0
        %v2607 = vadd.f32 0.0, %v2606
        %v2608 = vpop.f32.mrf.mxu0
        %v2609 = vpop.f32.mrf.mxu0
        %v2610 = vpop.f32.mrf.mxu0
        %2611 = vdwg.mxu0
        %v2612 = vpack.c.bf16 %v2469, %v2469
        %v2613 = vpack.c.bf16 %v2515, %v2515
        %v2614 = vpack.c.bf16 %v2561, %v2561
        %v2615 = vpack.c.bf16 %v2607, %v2607
        %v2617 = vsel %vm1100, %v2612, 0
        %2619 = vmatprep.subr.bf16.mxu0 0
        %2620 = vmatpush1.bf16.msra.mxu0 0
        %2621 = vmatprep.subr.bf16.mxu0 0
        %2622 = vmatpush1.bf16.msra.mxu0 0
        %2623 = vmatprep.subr.bf16.mxu0 0
        %2624 = vmatpush1.bf16.msra.mxu0 0
        %2625 = vmatprep.subr.bf16.mxu0 0
        %2626 = vmatpush1.bf16.msra.mxu0 0
        %2627 = vmatprep.subr.bf16.mxu0 0
        %2628 = vmatpush1.bf16.msra.mxu0 0
        %2629 = vmatprep.subr.bf16.mxu0 0
        %2630 = vmatpush1.bf16.msra.mxu0 0
        %2631 = vmatprep.subr.bf16.mxu0 0
        %2632 = vmatpush1.bf16.msra.mxu0 0
        %2633 = vmatprep.subr.bf16.mxu0 0
        %2634 = vmatpush1.bf16.msra.mxu0 %v1607
        %2635 = vmatprep.subr.bf16.mxu0 0
        %2636 = vmatpush2.bf16.msra.mxu0 0
        %2637 = vmatprep.subr.bf16.mxu0 0
        %2638 = vmatpush2.bf16.msra.mxu0 0
        %2639 = vmatprep.subr.bf16.mxu0 0
        %2640 = vmatpush2.bf16.msra.mxu0 0
        %2641 = vmatprep.subr.bf16.mxu0 0
        %2642 = vmatpush2.bf16.msra.mxu0 0
        %2643 = vmatprep.subr.bf16.mxu0 0
        %2644 = vmatpush2.bf16.msra.mxu0 0
        %2645 = vmatprep.subr.bf16.mxu0 0
        %2646 = vmatpush2.bf16.msra.mxu0 0
        %2647 = vmatprep.subr.bf16.mxu0 0
        %2648 = vmatpush2.bf16.msra.mxu0 0
        %2649 = vmatprep.subr.bf16.mxu0 0
        %2650 = vmatpush2.bf16.msra.mxu0 0
        %2651 = vmatprep.mubr.bf16.mxu0 0
        %2652 = vmatmul.mubr.bf16.gmra.mxu0 %v2617
        %v2653 = vpop.f32.mrf.mxu0
        %v2654 = vadd.f32 0.0, %v2653
        %v2655 = vpop.f32.mrf.mxu0
        %v2656 = vpop.f32.mrf.mxu0
        %v2657 = vpop.f32.mrf.mxu0
        %2658 = vdwg.mxu0
        %v2660 = vsel %vm1100, %v2613, 0
        %2662 = vmatprep.subr.bf16.mxu0 0
        %2663 = vmatpush1.bf16.msra.mxu0 0
        %2664 = vmatprep.subr.bf16.mxu0 0
        %2665 = vmatpush1.bf16.msra.mxu0 0
        %2666 = vmatprep.subr.bf16.mxu0 0
        %2667 = vmatpush1.bf16.msra.mxu0 0
        %2668 = vmatprep.subr.bf16.mxu0 0
        %2669 = vmatpush1.bf16.msra.mxu0 0
        %2670 = vmatprep.subr.bf16.mxu0 0
        %2671 = vmatpush1.bf16.msra.mxu0 0
        %2672 = vmatprep.subr.bf16.mxu0 0
        %2673 = vmatpush1.bf16.msra.mxu0 0
        %2674 = vmatprep.subr.bf16.mxu0 0
        %2675 = vmatpush1.bf16.msra.mxu0 0
        %2676 = vmatprep.subr.bf16.mxu0 0
        %2677 = vmatpush1.bf16.msra.mxu0 %v1653
        %2678 = vmatprep.subr.bf16.mxu0 0
        %2679 = vmatpush2.bf16.msra.mxu0 0
        %2680 = vmatprep.subr.bf16.mxu0 0
        %2681 = vmatpush2.bf16.msra.mxu0 0
        %2682 = vmatprep.subr.bf16.mxu0 0
        %2683 = vmatpush2.bf16.msra.mxu0 0
        %2684 = vmatprep.subr.bf16.mxu0 0
        %2685 = vmatpush2.bf16.msra.mxu0 0
        %2686 = vmatprep.subr.bf16.mxu0 0
        %2687 = vmatpush2.bf16.msra.mxu0 0
        %2688 = vmatprep.subr.bf16.mxu0 0
        %2689 = vmatpush2.bf16.msra.mxu0 0
        %2690 = vmatprep.subr.bf16.mxu0 0
        %2691 = vmatpush2.bf16.msra.mxu0 0
        %2692 = vmatprep.subr.bf16.mxu0 0
        %2693 = vmatpush2.bf16.msra.mxu0 0
        %2694 = vmatprep.mubr.bf16.mxu0 0
        %2695 = vmatmul.mubr.bf16.gmra.mxu0 %v2660
        %v2696 = vpop.f32.mrf.mxu0
        %v2697 = vadd.f32 0.0, %v2696
        %v2698 = vpop.f32.mrf.mxu0
        %v2699 = vpop.f32.mrf.mxu0
        %v2700 = vpop.f32.mrf.mxu0
        %2701 = vdwg.mxu0
        %v2703 = vsel %vm1100, %v2614, 0
        %2705 = vmatprep.subr.bf16.mxu0 0
        %2706 = vmatpush1.bf16.msra.mxu0 0
        %2707 = vmatprep.subr.bf16.mxu0 0
        %2708 = vmatpush1.bf16.msra.mxu0 0
        %2709 = vmatprep.subr.bf16.mxu0 0
        %2710 = vmatpush1.bf16.msra.mxu0 0
        %2711 = vmatprep.subr.bf16.mxu0 0
        %2712 = vmatpush1.bf16.msra.mxu0 0
        %2713 = vmatprep.subr.bf16.mxu0 0
        %2714 = vmatpush1.bf16.msra.mxu0 0
        %2715 = vmatprep.subr.bf16.mxu0 0
        %2716 = vmatpush1.bf16.msra.mxu0 0
        %2717 = vmatprep.subr.bf16.mxu0 0
        %2718 = vmatpush1.bf16.msra.mxu0 0
        %2719 = vmatprep.subr.bf16.mxu0 0
        %2720 = vmatpush1.bf16.msra.mxu0 %v1699
        %2721 = vmatprep.subr.bf16.mxu0 0
        %2722 = vmatpush2.bf16.msra.mxu0 0
        %2723 = vmatprep.subr.bf16.mxu0 0
        %2724 = vmatpush2.bf16.msra.mxu0 0
        %2725 = vmatprep.subr.bf16.mxu0 0
        %2726 = vmatpush2.bf16.msra.mxu0 0
        %2727 = vmatprep.subr.bf16.mxu0 0
        %2728 = vmatpush2.bf16.msra.mxu0 0
        %2729 = vmatprep.subr.bf16.mxu0 0
        %2730 = vmatpush2.bf16.msra.mxu0 0
        %2731 = vmatprep.subr.bf16.mxu0 0
        %2732 = vmatpush2.bf16.msra.mxu0 0
        %2733 = vmatprep.subr.bf16.mxu0 0
        %2734 = vmatpush2.bf16.msra.mxu0 0
        %2735 = vmatprep.subr.bf16.mxu0 0
        %2736 = vmatpush2.bf16.msra.mxu0 0
        %2737 = vmatprep.mubr.bf16.mxu0 0
        %2738 = vmatmul.mubr.bf16.gmra.mxu0 %v2703
        %v2739 = vpop.f32.mrf.mxu0
        %v2740 = vadd.f32 0.0, %v2739
        %v2741 = vpop.f32.mrf.mxu0
        %v2742 = vpop.f32.mrf.mxu0
        %v2743 = vpop.f32.mrf.mxu0
        %2744 = vdwg.mxu0
        %v2746 = vsel %vm1100, %v2615, 0
        %2748 = vmatprep.subr.bf16.mxu0 0
        %2749 = vmatpush1.bf16.msra.mxu0 0
        %2750 = vmatprep.subr.bf16.mxu0 0
        %2751 = vmatpush1.bf16.msra.mxu0 0
        %2752 = vmatprep.subr.bf16.mxu0 0
        %2753 = vmatpush1.bf16.msra.mxu0 0
        %2754 = vmatprep.subr.bf16.mxu0 0
        %2755 = vmatpush1.bf16.msra.mxu0 0
        %2756 = vmatprep.subr.bf16.mxu0 0
        %2757 = vmatpush1.bf16.msra.mxu0 0
        %2758 = vmatprep.subr.bf16.mxu0 0
        %2759 = vmatpush1.bf16.msra.mxu0 0
        %2760 = vmatprep.subr.bf16.mxu0 0
        %2761 = vmatpush1.bf16.msra.mxu0 0
        %2762 = vmatprep.subr.bf16.mxu0 0
        %2763 = vmatpush1.bf16.msra.mxu0 %v1745
        %2764 = vmatprep.subr.bf16.mxu0 0
        %2765 = vmatpush2.bf16.msra.mxu0 0
        %2766 = vmatprep.subr.bf16.mxu0 0
        %2767 = vmatpush2.bf16.msra.mxu0 0
        %2768 = vmatprep.subr.bf16.mxu0 0
        %2769 = vmatpush2.bf16.msra.mxu0 0
        %2770 = vmatprep.subr.bf16.mxu0 0
        %2771 = vmatpush2.bf16.msra.mxu0 0
        %2772 = vmatprep.subr.bf16.mxu0 0
        %2773 = vmatpush2.bf16.msra.mxu0 0
        %2774 = vmatprep.subr.bf16.mxu0 0
        %2775 = vmatpush2.bf16.msra.mxu0 0
        %2776 = vmatprep.subr.bf16.mxu0 0
        %2777 = vmatpush2.bf16.msra.mxu0 0
        %2778 = vmatprep.subr.bf16.mxu0 0
        %2779 = vmatpush2.bf16.msra.mxu0 0
        %2780 = vmatprep.mubr.bf16.mxu0 0
        %2781 = vmatmul.mubr.bf16.gmra.mxu0 %v2746
        %v2782 = vpop.f32.mrf.mxu0
        %v2783 = vadd.f32 0.0, %v2782
        %v2784 = vpop.f32.mrf.mxu0
        %v2785 = vpop.f32.mrf.mxu0
        %v2786 = vpop.f32.mrf.mxu0
        %2787 = vdwg.mxu0
        %v2788 = vsel %vm940, %v2654, 0.0
        %v2789 = vsel %vm940, %v2697, 0.0
        %v2790 = vadd.f32 %v2788, %v2789
        %v2791 = vsel %vm940, %v2740, 0.0
        %v2792 = vadd.f32 %v2790, %v2791
        %v2793 = vsel %vm940, %v2783, 0.0
        %v2794 = vadd.f32 %v2792, %v2793
        %v2795 = vadd.f32 %v2794, %v1798
        %v2796 = vadd.f32 %v1999, %v2795
        %v2797 = vsel %vm940, %v2796, 0.0
        %2798 = vadd.xlane.f32.xlu0 %v2797
        %v2799 = vpop.xlane.xlu0 %2798
        %v2800 = vmul.f32 %v2799, %v1805
        %v2801 = vsub.f32 %v2796, %v2800
        %v2802 = vmul.f32 %v2801, %v2801
        %v2803 = vsel %vm940, %v2802, 0.0
        %2804 = vadd.xlane.f32.xlu0 %v2803
        %v2805 = vpop.xlane.xlu0 %2804
        %v2806 = vmul.f32 %v2805, %v1805
        %v2807 = vadd.f32 %v2806, 1e-05
        %v2808 = vrsqrt.pop %v2807
        %v2809 = vmul.f32 %v2801, %v2808
        %v2810 = vmul.f32 %v2809, %v1820
        %v2811 = vadd.f32 %v2810, %v1827
        %v2812 = vpack.c.bf16 %v2811, %v2811
        %v2814 = vsel %vm940, %v2812, 0
        %2816 = vmatprep.subr.bf16.mxu0 0
        %2817 = vmatpush1.bf16.msra.mxu0 0
        %2818 = vmatprep.subr.bf16.mxu0 0
        %2819 = vmatpush1.bf16.msra.mxu0 0
        %2820 = vmatprep.subr.bf16.mxu0 0
        %2821 = vmatpush1.bf16.msra.mxu0 0
        %2822 = vmatprep.subr.bf16.mxu0 0
        %2823 = vmatpush1.bf16.msra.mxu0 0
        %2824 = vmatprep.subr.bf16.mxu0 0
        %2825 = vmatpush1.bf16.msra.mxu0 0
        %2826 = vmatprep.subr.bf16.mxu0 0
        %2827 = vmatpush1.bf16.msra.mxu0 0
        %2828 = vmatprep.subr.bf16.mxu0 0
        %2829 = vmatpush1.bf16.msra.mxu0 %v1846
        %2830 = vmatprep.subr.bf16.mxu0 0
        %2831 = vmatpush1.bf16.msra.mxu0 %v1845
        %2832 = vmatprep.subr.bf16.mxu0 0
        %2833 = vmatpush2.bf16.msra.mxu0 0
        %2834 = vmatprep.subr.bf16.mxu0 0
        %2835 = vmatpush2.bf16.msra.mxu0 0
        %2836 = vmatprep.subr.bf16.mxu0 0
        %2837 = vmatpush2.bf16.msra.mxu0 0
        %2838 = vmatprep.subr.bf16.mxu0 0
        %2839 = vmatpush2.bf16.msra.mxu0 0
        %2840 = vmatprep.subr.bf16.mxu0 0
        %2841 = vmatpush2.bf16.msra.mxu0 0
        %2842 = vmatprep.subr.bf16.mxu0 0
        %2843 = vmatpush2.bf16.msra.mxu0 0
        %2844 = vmatprep.subr.bf16.mxu0 0
        %2845 = vmatpush2.bf16.msra.mxu0 0
        %2846 = vmatprep.subr.bf16.mxu0 0
        %2847 = vmatpush2.bf16.msra.mxu0 0
        %2848 = vmatprep.mubr.bf16.mxu0 0
        %2849 = vmatmul.mubr.bf16.gmra.mxu0 %v2814
        %v2850 = vpop.f32.mrf.mxu0
        %v2851 = vadd.f32 %v1835, %v2850
        %v2852 = vpop.f32.mrf.mxu0
        %v2853 = vpop.f32.mrf.mxu0
        %v2854 = vpop.f32.mrf.mxu0
        %2855 = vdwg.mxu0
        %v2856 = vmax.f32 %v2851, 0.0
        %v2857 = vpack.c.bf16 %v2856, %v2856
        %v2859 = vsel %vm1924, %v2857, 0
        %2861 = vmatprep.subr.bf16.mxu0 0
        %2862 = vmatpush1.bf16.msra.mxu0 0
        %2863 = vmatprep.subr.bf16.mxu0 0
        %2864 = vmatpush1.bf16.msra.mxu0 0
        %2865 = vmatprep.subr.bf16.mxu0 0
        %2866 = vmatpush1.bf16.msra.mxu0 0
        %2867 = vmatprep.subr.bf16.mxu0 0
        %2868 = vmatpush1.bf16.msra.mxu0 0
        %2869 = vmatprep.subr.bf16.mxu0 0
        %2870 = vmatpush1.bf16.msra.mxu0 %v1919
        %2871 = vmatprep.subr.bf16.mxu0 0
        %2872 = vmatpush1.bf16.msra.mxu0 %v1918
        %2873 = vmatprep.subr.bf16.mxu0 0
        %2874 = vmatpush1.bf16.msra.mxu0 %v1917
        %2875 = vmatprep.subr.bf16.mxu0 0
        %2876 = vmatpush1.bf16.msra.mxu0 %v1916
        %2877 = vmatprep.subr.bf16.mxu0 0
        %2878 = vmatpush2.bf16.msra.mxu0 0
        %2879 = vmatprep.subr.bf16.mxu0 0
        %2880 = vmatpush2.bf16.msra.mxu0 0
        %2881 = vmatprep.subr.bf16.mxu0 0
        %2882 = vmatpush2.bf16.msra.mxu0 0
        %2883 = vmatprep.subr.bf16.mxu0 0
        %2884 = vmatpush2.bf16.msra.mxu0 0
        %2885 = vmatprep.subr.bf16.mxu0 0
        %2886 = vmatpush2.bf16.msra.mxu0 0
        %2887 = vmatprep.subr.bf16.mxu0 0
        %2888 = vmatpush2.bf16.msra.mxu0 0
        %2889 = vmatprep.subr.bf16.mxu0 0
        %2890 = vmatpush2.bf16.msra.mxu0 0
        %2891 = vmatprep.subr.bf16.mxu0 0
        %2892 = vmatpush2.bf16.msra.mxu0 0
        %2893 = vmatprep.mubr.bf16.mxu0 0
        %2894 = vmatmul.mubr.bf16.gmra.mxu0 %v2859
        %v2895 = vpop.f32.mrf.mxu0
        %v2896 = vadd.f32 %v1898, %v2895
        %v2897 = vpop.f32.mrf.mxu0
        %v2898 = vpop.f32.mrf.mxu0
        %v2899 = vpop.f32.mrf.mxu0
        %2900 = vdwg.mxu0
        %v2901 = vmax.f32 %v2896, 0.0
        %v2902 = vadd.f32 %v2811, %v2901
        %v2903 = vsel %vm940, %v2902, 0.0
        %2904 = vadd.xlane.f32.xlu0 %v2903
        %v2905 = vpop.xlane.xlu0 %2904
        %v2906 = vmul.f32 %v2905, %v1805
        %v2907 = vsub.f32 %v2902, %v2906
        %v2908 = vmul.f32 %v2907, %v2907
        %v2909 = vsel %vm940, %v2908, 0.0
        %2910 = vadd.xlane.f32.xlu0 %v2909
        %v2911 = vpop.xlane.xlu0 %2910
        %v2912 = vmul.f32 %v2911, %v1805
        %v2913 = vadd.f32 %v2912, 1e-05
        %v2914 = vrsqrt.pop %v2913
        %v2915 = vmul.f32 %v2907, %v2914
        %v2916 = vmul.f32 %v2915, %v1987
        %v2917 = vadd.f32 %v2916, %v1994
        %2918 = vst.msk [vmem:[%s1998] sm:$0xff] %vm940, %v2917
        %p2919 = scmp.eq.s32.totalorder %s32, 1
        // Predicated region
        $region113: #{tpu_custom_call.1} parent=91 // pred_check
          %p2920 = pneg %p2919
        $region114: #{tpu_custom_call.1} parent=91 // pred_check_branch
          %2922 = sbr.rel (%p2920) target = $region116
        $region115: #{tpu_custom_call.1} parent=91 // pred_region
          %v2923 = vld [vmem:[#allocation2] sm:$0xff]
          %v2924 = vld [vmem:[#allocation2 + $0x8] sm:$0xff]
          %2925 = vst.msk [vmem:[#allocation13] sm:$0xff] %vm940, %v2923
          %2926 = vst.msk [vmem:[#allocation13 + $0x8] sm:$0xff] %vm940, %v2924
        $region116: #{tpu_custom_call.1} parent=91 // pred_fallthru
          _
        // Predicated region
        $region117: #{tpu_custom_call.1} parent=91 // pred_check
          %p2927 = pneg %p503
        $region118: #{tpu_custom_call.1} parent=91 // pred_check_branch
          %2929 = sbr.rel (%p2927) target = $region120
        $region119: #{tpu_custom_call.1} parent=91 // pred_region
          %s2931 = ssub.s32 256, 256
          %2932 = vsyncadd [#allocation8], %s2931
          %s2933 = sshll.u32 [#allocation13], 4
          %s2934 = int_to_ptr.vmem [resolvable:$true] %s2933
          %2939 = dma.vmem_to_hbm [thread:$0]  %s2934, 256, %s18, [#allocation8], 128, 128, 8
        $region120: #{tpu_custom_call.1} parent=91 // pred_fallthru
          _
        // Predicated region
        $region121: #{tpu_custom_call.1} parent=91 // pred_check
          %p2940 = pneg %p503
        $region122: #{tpu_custom_call.1} parent=91 // pred_check_branch
          %2942 = sbr.rel (%p2940) target = $region124
        $region123: #{tpu_custom_call.1} parent=91 // pred_region
          %2943 = dma.done [#allocation8], 256
        $region124: #{tpu_custom_call.1} parent=91 // pred_fallthru
          _
      $region92: #{tpu_custom_call.1} parent=5 // pred_fallthru
        _
      %p2944 = scmp.le.s32.totalorder 2, %s27
      // Predicated region
      $region125: #{tpu_custom_call.1} parent=5 // pred_check
        %p2945 = pneg %p2944
      $region126: #{tpu_custom_call.1} parent=5 // pred_check_branch
        %2947 = sbr.rel (%p2945) target = $region128
      $region127: #{tpu_custom_call.1} parent=5 // pred_region
        %s2948 = ssub.s32 %s27, 2
      $region128: #{tpu_custom_call.1} parent=5 // pred_fallthru
        _
    $region6: #{tpu_custom_call.1} parent=1 // loop_footer
      %s31 = sadd.s32 1, %s27
    $region7: #{tpu_custom_call.1} parent=1 // loop_footer_branch
      %26 = sbr.rel target = $region3
    $region8: #{tpu_custom_call.1} parent=1 // loop_exit
      _
    %2949 = vsyncpa [#allocation7], 1
    %s2950 = scalar_lea.sflag [#allocation7], 1
    %2951 = vsyncpa %s2950, 1
    %2952 = vsyncpa [#allocation10], 1
    %2953 = vsyncpa [#allocation8], 1
    %s2954 = scalar_lea.sflag [#allocation8], 1
    %2955 = vsyncpa %s2954, 1

</llo_original>
